<compile_context>
chip_gen: v5e
topology: v5e:2x2
jax: 0.10.0
libtpu: 0.0.40
codegen_flags: <defaults>
</compile_context>

<pallas_src>
import functools
import math

import jax
import jax.numpy as jnp
from jax.experimental import pallas as pl
from jax.experimental.pallas import tpu as pltpu


# ----------------------------------------------------------------------------
# In-kernel helpers (traced inside the Pallas kernel)
# ----------------------------------------------------------------------------

def _layer_norm(v, gamma, beta):
    """LayerNorm with PyTorch semantics (eps=1e-5, biased variance)."""
    mu = jnp.mean(v, axis=-1, keepdims=True)
    var = jnp.mean(jnp.square(v - mu), axis=-1, keepdims=True)
    return (v - mu) * jax.lax.rsqrt(var + 1e-5) * gamma + beta


def _mha_core(q, k, v, bias, B, Sq, Skv, H, dh, wo_t, bo):
    """Scaled-dot-product attention over all batches & heads at once.

    q: (B*Sq, H*dh), k/v: (B*Skv, H*dh) -- softmax scale already folded into q.
    bias: additive mask broadcastable to (B, H, Sq, Skv) with 0 / -1e9 entries.
    wo_t: (H*dh, D) output projection; the head merge folds into this matmul
    so the cross-head sum is carried by the MXU f32 accumulator.
    """
    def split(t, s):
        # (B*s, H*dh) -> (B*H, s, dh): heads move to the leading batch dim.
        return t.reshape(B, s, H, dh).transpose(0, 2, 1, 3).reshape(B * H, s, dh)

    qh, kh, vh = split(q, Sq), split(k, Skv), split(v, Skv)

    s = jnp.einsum('nqe,nke->nqk', qh, kh, preferred_element_type=jnp.float32)
    s = s.reshape(B, H, Sq, Skv) + bias
    s = s - jnp.max(s, axis=-1, keepdims=True)
    p = jnp.exp(s)
    p = p * pl.reciprocal(jnp.sum(p, axis=-1, keepdims=True), approx=True)

    o = jnp.einsum('nqk,nke->nqe', p.reshape(B * H, Sq, Skv), vh,
                   preferred_element_type=jnp.float32)
    # Merge heads back to (B*Sq, H*dh); the projection below performs the
    # head-merge contraction in one lane-dense (B*Sq, D)@(D, D) matmul.
    om = o.reshape(B, H, Sq, dh).transpose(0, 2, 1, 3).reshape(B * Sq, H * dh)
    return jnp.dot(om, wo_t, preferred_element_type=jnp.float32) + bo


# ----------------------------------------------------------------------------
# Fused decoder-layer kernel (whole batch in one invocation)
# ----------------------------------------------------------------------------

def _decoder_kernel(num_heads,
                    x_ref, enc_ref, dkb_ref, ekb_ref,
                    s_wqkv, s_bqkv, s_wo, s_bo,
                    c_wq, c_bq, c_wkv, c_bkv, c_wo, c_bo,
                    g1, be1, g2, be2, g3, be3,
                    w1, b1, w2, b2,
                    o_ref):
    B, S, D = x_ref.shape
    Se = enc_ref.shape[1]
    H = num_heads
    dh = D // H

    x = x_ref[...].reshape(B * S, D).astype(jnp.float32)     # (B*S, D)
    enc = enc_ref[...].reshape(B * Se, D).astype(jnp.float32)  # (B*Se, D)

    # Additive attention biases. Causal part is built in-kernel (no O(S^2) HBM
    # traffic); key-side pad biases are linear-size inputs. The query-side pad
    # bias is dropped: it only shifts rows that are themselves padding (the
    # PyTorch module gives those garbage rows uniform attention instead; both
    # are discarded downstream and do not occur in this test).
    row = jax.lax.broadcasted_iota(jnp.int32, (S, S), 0)
    col = jax.lax.broadcasted_iota(jnp.int32, (S, S), 1)
    causal = jnp.where(col <= row, 0.0, -1e9).astype(jnp.float32)        # (S, S)
    self_bias = causal[None, None, :, :] + dkb_ref[...][:, None, :, :]   # (B,1,S,S)
    cross_bias = ekb_ref[...][:, None, :, :]                             # (B,1,1,Se)

    # ---- masked self-attention + add & LayerNorm (dropout = identity) -------
    qkv = jnp.dot(x, s_wqkv[...], preferred_element_type=jnp.float32) + s_bqkv[...]
    self_out = _mha_core(qkv[:, :D], qkv[:, D:2 * D], qkv[:, 2 * D:],
                         self_bias, B, S, S, H, dh, s_wo[...], s_bo[...])
    y = _layer_norm(x + self_out, g1[...], be1[...])

    # ---- cross-attention (K/V from encoder) + add & LayerNorm ---------------
    q2 = jnp.dot(y, c_wq[...], preferred_element_type=jnp.float32) + c_bq[...]
    kv = jnp.dot(enc, c_wkv[...], preferred_element_type=jnp.float32) + c_bkv[...]
    cross_out = _mha_core(q2, kv[:, :D], kv[:, D:],
                          cross_bias, B, S, Se, H, dh, c_wo[...], c_bo[...])
    z = _layer_norm(y + cross_out, g2[...], be2[...])

    # ---- MLP (Linear -> SiLU -> Linear) + add & LayerNorm, single store ------
    h = jnp.dot(z, w1[...], preferred_element_type=jnp.float32) + b1[...]
    h = h * jax.nn.sigmoid(h)
    m = jnp.dot(h, w2[...], preferred_element_type=jnp.float32) + b2[...]
    out = _layer_norm(z + m, g3[...], be3[...])
    o_ref[...] = out.reshape(B, S, D).astype(o_ref.dtype)


# ----------------------------------------------------------------------------
# Wrapper: parameter prep (PyTorch layout -> kernel layout) + pallas_call
# ----------------------------------------------------------------------------

def _full_spec(shape):
    nd = len(shape)
    return pl.BlockSpec(shape, lambda i, _nd=nd: (0,) * _nd)


def _prepare_weights(params, num_heads):
    """nn.Linear [out,in] -> [in,out]; QKV fused; softmax scale folded into Q."""
    sa, ca, mlp = params["self_attn"], params["attn"], params["mlp"]
    D = sa["wq"].shape[0]
    Hm = mlp["w1"].shape[0]
    scale = 1.0 / math.sqrt(D // num_heads)

    # Self-attention: fused Q|K|V weight (D, 3D); scale folded into the Q block.
    s_wqkv = jnp.concatenate([sa["wq"].T * scale, sa["wk"].T, sa["wv"].T], axis=1)
    s_bqkv = jnp.concatenate([sa["bq"] * scale, sa["bk"], sa["bv"]]).reshape(1, 3 * D)

    # Cross-attention: Q alone (decoder stream), fused K|V (encoder stream).
    c_wq = ca["wq"].T * scale
    c_bq = (ca["bq"] * scale).reshape(1, D)
    c_wkv = jnp.concatenate([ca["wk"].T, ca["wv"].T], axis=1)
    c_bkv = jnp.concatenate([ca["bk"], ca["bv"]]).reshape(1, 2 * D)

    return (
        s_wqkv, s_bqkv, sa["wo"].T, sa["bo"].reshape(1, D),
        c_wq, c_bq, c_wkv, c_bkv, ca["wo"].T, ca["bo"].reshape(1, D),
        params["ln_self"]["gamma"].reshape(1, D), params["ln_self"]["beta"].reshape(1, D),
        params["ln_attn"]["gamma"].reshape(1, D), params["ln_attn"]["beta"].reshape(1, D),
        params["ln_mlp"]["gamma"].reshape(1, D), params["ln_mlp"]["beta"].reshape(1, D),
        mlp["w1"].T, mlp["b1"].reshape(1, Hm),
        mlp["w2"].T, mlp["b2"].reshape(1, D),
    )


def decoder_forward(params, x, encoder_inputs, enc_mask, dec_mask=None,
                    num_heads=4):
    B, S, D = x.shape
    Se = encoder_inputs.shape[1]
    if dec_mask is None:
        dec_mask = jnp.ones((B, S), jnp.float32)

    # Linear-size additive key-side pad biases (quadratic masks built in-kernel).
    neg = jnp.float32(-1e9)
    dec_k_bias = jnp.where(dec_mask > 0, 0.0, neg).astype(jnp.float32).reshape(B, 1, S)
    enc_k_bias = jnp.where(enc_mask > 0, 0.0, neg).astype(jnp.float32).reshape(B, 1, Se)

    weights = _prepare_weights(params, num_heads)
    kernel = functools.partial(_decoder_kernel, num_heads)
    data = (x, encoder_inputs, dec_k_bias, enc_k_bias)

    return pl.pallas_call(
        kernel,
        out_shape=jax.ShapeDtypeStruct((B, S, D), x.dtype),
        grid=(1,),
        in_specs=[_full_spec(a.shape) for a in data]
        + [_full_spec(w.shape) for w in weights],
        out_specs=_full_spec((B, S, D)),
        compiler_params=pltpu.CompilerParams(
            dimension_semantics=("arbitrary",)),
    )(*data, *weights)


# ----------------------------------------------------------------------------
# Pure-JAX reference (PyTorch semantics, for correctness check)
# ----------------------------------------------------------------------------

def _ref_mha(q_in, kv_in, mask, p, num_heads):
    q = jnp.einsum('bsd,ed->bse', q_in, p["wq"]) + p["bq"]
    k = jnp.einsum('bsd,ed->bse', kv_in, p["wk"]) + p["bk"]
    v = jnp.einsum('bsd,ed->bse', kv_in, p["wv"]) + p["bv"]
    B, S, D = q.shape
    Skv = k.shape[1]
    dh = D // num_heads
    qh = q.reshape(B, S, num_heads, dh).transpose(0, 2, 1, 3)
    kh = k.reshape(B, Skv, num_heads, dh).transpose(0, 2, 1, 3)
    vh = v.reshape(B, Skv, num_heads, dh).transpose(0, 2, 1, 3)
    s = jnp.einsum('bhqd,bhkd->bhqk', qh, kh) / math.sqrt(dh)
    s = jnp.where(mask[:, None, :, :] > 0, s, -1e9)
    p_att = jax.nn.softmax(s, axis=-1)
    o = jnp.einsum('bhqk,bhkd->bhqd', p_att, vh)
    o = o.transpose(0, 2, 1, 3).reshape(B, S, D)
    return jnp.einsum('bsd,ed->bse', o, p["wo"]) + p["bo"]


def _ref_ln(v, p):
    mu = jnp.mean(v, axis=-1, keepdims=True)
    var = jnp.mean(jnp.square(v - mu), axis=-1, keepdims=True)
    return (v - mu) / jnp.sqrt(var + 1e-5) * p["gamma"] + p["beta"]


def _ref_forward(params, x, enc, enc_mask, num_heads):
    B, S, _ = x.shape
    dec_mask = jnp.ones((B, S), dtype=jnp.float32)
    causal = jnp.tril(jnp.einsum('bs,bj->bsj', dec_mask, dec_mask))
    cross = jnp.einsum('bs,bj->bsj', dec_mask, enc_mask)
    y = _ref_ln(x + _ref_mha(x, x, causal, params["self_attn"], num_heads),
                params["ln_self"])
    z = _ref_ln(y + _ref_mha(y, enc, cross, params["attn"], num_heads),
                params["ln_attn"])
    h = jnp.einsum('bsd,hd->bsh', z, params["mlp"]["w1"]) + params["mlp"]["b1"]
    h = h * jax.nn.sigmoid(h)
    m = jnp.einsum('bsh,dh->bsd', h, params["mlp"]["w2"]) + params["mlp"]["b2"]
    return _ref_ln(z + m, params["ln_mlp"])


# ----------------------------------------------------------------------------
# Deterministic parameter init (mirrors nn.Linear / nn.LayerNorm, PyTorch layout)
# ----------------------------------------------------------------------------

def _init_linear(key, out_f, in_f):
    k1, k2 = jax.random.split(key)
    bound = 1.0 / math.sqrt(in_f)
    w = jax.random.uniform(k1, (out_f, in_f), jnp.float32, -bound, bound)
    b = jax.random.uniform(k2, (out_f,), jnp.float32, -bound, bound)
    return w, b


def init_decoder_params(key, embedding_dim, mlp_hidden_dim):
    keys = jax.random.split(key, 10)

    def mha_params(ks):
        wq, bq = _init_linear(ks[0], embedding_dim, embedding_dim)
        wk, bk = _init_linear(ks[1], embedding_dim, embedding_dim)
        wv, bv = _init_linear(ks[2], embedding_dim, embedding_dim)
        wo, bo = _init_linear(ks[3], embedding_dim, embedding_dim)
        return dict(wq=wq, bq=bq, wk=wk, bk=bk, wv=wv, bv=bv, wo=wo, bo=bo)

    def ln_params():
        return dict(gamma=jnp.ones((embedding_dim,), jnp.float32),
                    beta=jnp.zeros((embedding_dim,), jnp.float32))

    w1, b1 = _init_linear(keys[8], mlp_hidden_dim, embedding_dim)
    w2, b2 = _init_linear(keys[9], embedding_dim, mlp_hidden_dim)
    return dict(
        self_attn=mha_params(keys[0:4]),
        attn=mha_params(keys[4:8]),
        ln_self=ln_params(),
        ln_attn=ln_params(),
        ln_mlp=ln_params(),
        mlp=dict(w1=w1, b1=b1, w2=w2, b2=b2),
    )


# ----------------------------------------------------------------------------
# Main
# ----------------------------------------------------------------------------

if __name__ == "__main__":
    B, S_dec, S_enc = 2, 16, 16
    embedding_dim, mlp_hidden_dim, num_heads = 128, 256, 4   # lane-dense D

    key = jax.random.PRNGKey(0)
    k_params, k_x, k_enc = jax.random.split(key, 3)

    params = init_decoder_params(k_params, embedding_dim, mlp_hidden_dim)
    x = jax.random.normal(k_x, (B, S_dec, embedding_dim), jnp.float32)
    encoder_inputs = jax.random.normal(k_enc, (B, S_enc, embedding_dim),
                                       jnp.float32)
    # Encoder padding mask: last three encoder positions of batch 1 are padding.
    enc_mask = jnp.ones((B, S_enc), jnp.float32).at[1, -3:].set(0.0)

    out = decoder_forward(params, x, encoder_inputs, enc_mask,
                          num_heads=num_heads)
    out = jax.block_until_ready(out)

    ref = _ref_forward(params, x, encoder_inputs, enc_mask, num_heads)
    assert out.shape == (B, S_dec, embedding_dim)
    # Tolerance accounts for the approximate EUP reciprocal in the softmax.
    max_err = float(jnp.max(jnp.abs(out - ref)))
    assert jnp.allclose(out, ref, atol=5e-3, rtol=5e-3), f"max abs err {max_err}"

    print("KERNEL_OK")
</pallas_src>

<mosaic_0001>
module attributes {stable_mosaic.version = 11 : i64} {
  func.func @_decoder_kernel(%arg0: i32, %arg1: memref<2x16x128xf32, #tpu.memory_space<vmem>>, %arg2: memref<2x16x128xf32, #tpu.memory_space<vmem>>, %arg3: memref<2x1x16xf32, #tpu.memory_space<vmem>>, %arg4: memref<2x1x16xf32, #tpu.memory_space<vmem>>, %arg5: memref<128x384xf32, #tpu.memory_space<vmem>>, %arg6: memref<1x384xf32, #tpu.memory_space<vmem>>, %arg7: memref<128x128xf32, #tpu.memory_space<vmem>>, %arg8: memref<1x128xf32, #tpu.memory_space<vmem>>, %arg9: memref<128x128xf32, #tpu.memory_space<vmem>>, %arg10: memref<1x128xf32, #tpu.memory_space<vmem>>, %arg11: memref<128x256xf32, #tpu.memory_space<vmem>>, %arg12: memref<1x256xf32, #tpu.memory_space<vmem>>, %arg13: memref<128x128xf32, #tpu.memory_space<vmem>>, %arg14: memref<1x128xf32, #tpu.memory_space<vmem>>, %arg15: memref<1x128xf32, #tpu.memory_space<vmem>>, %arg16: memref<1x128xf32, #tpu.memory_space<vmem>>, %arg17: memref<1x128xf32, #tpu.memory_space<vmem>>, %arg18: memref<1x128xf32, #tpu.memory_space<vmem>>, %arg19: memref<1x128xf32, #tpu.memory_space<vmem>>, %arg20: memref<1x128xf32, #tpu.memory_space<vmem>>, %arg21: memref<128x256xf32, #tpu.memory_space<vmem>>, %arg22: memref<1x256xf32, #tpu.memory_space<vmem>>, %arg23: memref<256x128xf32, #tpu.memory_space<vmem>>, %arg24: memref<1x128xf32, #tpu.memory_space<vmem>>, %arg25: memref<2x16x128xf32, #tpu.memory_space<vmem>>) attributes {dimension_semantics = [#tpu.dimension_semantics<arbitrary>], iteration_bounds = array<i64: 1>, scalar_prefetch = 0 : i64, scratch_operands = 0 : i64, tpu.core_type = #tpu.core_type<tc>, window_params = [{pipeline_mode = #tpu.pipeline_mode<synchronous>, transform_indices = @transform_0, window_bounds = array<i64: 2, 16, 128>}, {pipeline_mode = #tpu.pipeline_mode<synchronous>, transform_indices = @transform_1, window_bounds = array<i64: 2, 16, 128>}, {pipeline_mode = #tpu.pipeline_mode<synchronous>, transform_indices = @transform_2, window_bounds = array<i64: 2, 1, 16>}, {pipeline_mode = #tpu.pipeline_mode<synchronous>, transform_indices = @transform_3, window_bounds = array<i64: 2, 1, 16>}, {pipeline_mode = #tpu.pipeline_mode<synchronous>, transform_indices = @transform_4, window_bounds = array<i64: 128, 384>}, {pipeline_mode = #tpu.pipeline_mode<synchronous>, transform_indices = @transform_5, window_bounds = array<i64: 1, 384>}, {pipeline_mode = #tpu.pipeline_mode<synchronous>, transform_indices = @transform_6, window_bounds = array<i64: 128, 128>}, {pipeline_mode = #tpu.pipeline_mode<synchronous>, transform_indices = @transform_7, window_bounds = array<i64: 1, 128>}, {pipeline_mode = #tpu.pipeline_mode<synchronous>, transform_indices = @transform_8, window_bounds = array<i64: 128, 128>}, {pipeline_mode = #tpu.pipeline_mode<synchronous>, transform_indices = @transform_9, window_bounds = array<i64: 1, 128>}, {pipeline_mode = #tpu.pipeline_mode<synchronous>, transform_indices = @transform_10, window_bounds = array<i64: 128, 256>}, {pipeline_mode = #tpu.pipeline_mode<synchronous>, transform_indices = @transform_11, window_bounds = array<i64: 1, 256>}, {pipeline_mode = #tpu.pipeline_mode<synchronous>, transform_indices = @transform_12, window_bounds = array<i64: 128, 128>}, {pipeline_mode = #tpu.pipeline_mode<synchronous>, transform_indices = @transform_13, window_bounds = array<i64: 1, 128>}, {pipeline_mode = #tpu.pipeline_mode<synchronous>, transform_indices = @transform_14, window_bounds = array<i64: 1, 128>}, {pipeline_mode = #tpu.pipeline_mode<synchronous>, transform_indices = @transform_15, window_bounds = array<i64: 1, 128>}, {pipeline_mode = #tpu.pipeline_mode<synchronous>, transform_indices = @transform_16, window_bounds = array<i64: 1, 128>}, {pipeline_mode = #tpu.pipeline_mode<synchronous>, transform_indices = @transform_17, window_bounds = array<i64: 1, 128>}, {pipeline_mode = #tpu.pipeline_mode<synchronous>, transform_indices = @transform_18, window_bounds = array<i64: 1, 128>}, {pipeline_mode = #tpu.pipeline_mode<synchronous>, transform_indices = @transform_19, window_bounds = array<i64: 1, 128>}, {pipeline_mode = #tpu.pipeline_mode<synchronous>, transform_indices = @transform_20, window_bounds = array<i64: 128, 256>}, {pipeline_mode = #tpu.pipeline_mode<synchronous>, transform_indices = @transform_21, window_bounds = array<i64: 1, 256>}, {pipeline_mode = #tpu.pipeline_mode<synchronous>, transform_indices = @transform_22, window_bounds = array<i64: 256, 128>}, {pipeline_mode = #tpu.pipeline_mode<synchronous>, transform_indices = @transform_23, window_bounds = array<i64: 1, 128>}, {pipeline_mode = #tpu.pipeline_mode<synchronous>, transform_indices = @transform_24, window_bounds = array<i64: 2, 16, 128>}]} {
    %c0 = arith.constant 0 : index
    %c0_0 = arith.constant 0 : index
    %c0_1 = arith.constant 0 : index
    %0 = vector.load %arg1[%c0, %c0_0, %c0_1] : memref<2x16x128xf32, #tpu.memory_space<vmem>>, vector<2x16x128xf32>
    %1 = vector.shape_cast %0 : vector<2x16x128xf32> to vector<32x128xf32>
    %c0_2 = arith.constant 0 : index
    %c0_3 = arith.constant 0 : index
    %c0_4 = arith.constant 0 : index
    %2 = vector.load %arg2[%c0_2, %c0_3, %c0_4] : memref<2x16x128xf32, #tpu.memory_space<vmem>>, vector<2x16x128xf32>
    %3 = vector.shape_cast %2 : vector<2x16x128xf32> to vector<32x128xf32>
    %4 = tpu.iota {dimensions = array<i32: 0>} : vector<16x16xi32>
    %5 = tpu.iota {dimensions = array<i32: 1>} : vector<16x16xi32>
    %6 = arith.cmpi sle, %5, %4 : vector<16x16xi32>
    %cst = arith.constant 0.000000e+00 : f32
    %cst_5 = arith.constant -1.000000e+09 : f32
    %7 = vector.broadcast %cst : f32 to vector<16x16xf32>
    %8 = vector.broadcast %cst_5 : f32 to vector<16x16xf32>
    %9 = arith.select %6, %7, %8 : vector<16x16xi1>, vector<16x16xf32>
    %10 = vector.shape_cast %9 : vector<16x16xf32> to vector<1x1x16x16xf32>
    %c0_6 = arith.constant 0 : index
    %c0_7 = arith.constant 0 : index
    %c0_8 = arith.constant 0 : index
    %11 = vector.load %arg3[%c0_6, %c0_7, %c0_8] : memref<2x1x16xf32, #tpu.memory_space<vmem>>, vector<2x1x16xf32>
    %12 = vector.shape_cast %11 : vector<2x1x16xf32> to vector<2x1x1x16xf32>
    %13 = vector.broadcast %10 : vector<1x1x16x16xf32> to vector<2x1x16x16xf32>
    %14 = vector.broadcast %12 : vector<2x1x1x16xf32> to vector<2x1x16x16xf32>
    %15 = arith.addf %13, %14 : vector<2x1x16x16xf32>
    %c0_9 = arith.constant 0 : index
    %c0_10 = arith.constant 0 : index
    %c0_11 = arith.constant 0 : index
    %16 = vector.load %arg4[%c0_9, %c0_10, %c0_11] : memref<2x1x16xf32, #tpu.memory_space<vmem>>, vector<2x1x16xf32>
    %17 = vector.shape_cast %16 : vector<2x1x16xf32> to vector<2x1x1x16xf32>
    %c0_12 = arith.constant 0 : index
    %c0_13 = arith.constant 0 : index
    %18 = vector.load %arg5[%c0_12, %c0_13] : memref<128x384xf32, #tpu.memory_space<vmem>>, vector<128x384xf32>
    %cst_14 = arith.constant dense<0.000000e+00> : vector<32x384xf32>
    %19 = tpu.matmul %1, %18, %cst_14 {dimension_numbers = #tpu.dot_dimension_numbers<[1], [0], [0], [1], [0, 0, 1, 1], [], []>} : vector<32x128xf32>, vector<128x384xf32>, vector<32x384xf32> -> vector<32x384xf32>
    %c0_15 = arith.constant 0 : index
    %c0_16 = arith.constant 0 : index
    %20 = vector.load %arg6[%c0_15, %c0_16] : memref<1x384xf32, #tpu.memory_space<vmem>>, vector<1x384xf32>
    %21 = vector.broadcast %20 : vector<1x384xf32> to vector<32x384xf32>
    %22 = arith.addf %19, %21 : vector<32x384xf32>
    %23 = vector.extract_strided_slice %22 {offsets = [0, 0], sizes = [32, 128], strides = [1, 1]} : vector<32x384xf32> to vector<32x128xf32>
    %24 = vector.extract_strided_slice %22 {offsets = [0, 128], sizes = [32, 128], strides = [1, 1]} : vector<32x384xf32> to vector<32x128xf32>
    %25 = vector.extract_strided_slice %22 {offsets = [0, 256], sizes = [32, 128], strides = [1, 1]} : vector<32x384xf32> to vector<32x128xf32>
    %c0_17 = arith.constant 0 : index
    %c0_18 = arith.constant 0 : index
    %26 = vector.load %arg7[%c0_17, %c0_18] : memref<128x128xf32, #tpu.memory_space<vmem>>, vector<128x128xf32>
    %c0_19 = arith.constant 0 : index
    %c0_20 = arith.constant 0 : index
    %27 = vector.load %arg8[%c0_19, %c0_20] : memref<1x128xf32, #tpu.memory_space<vmem>>, vector<1x128xf32>
    %28 = vector.shape_cast %23 : vector<32x128xf32> to vector<2x16x4x32xf32>
    %29 = tpu.transpose %28, [0, 2, 1, 3] : vector<2x16x4x32xf32> -> vector<2x4x16x32xf32>
    %30 = vector.shape_cast %29 : vector<2x4x16x32xf32> to vector<8x16x32xf32>
    %31 = vector.shape_cast %24 : vector<32x128xf32> to vector<2x16x4x32xf32>
    %32 = tpu.transpose %31, [0, 2, 1, 3] : vector<2x16x4x32xf32> -> vector<2x4x16x32xf32>
    %33 = vector.shape_cast %32 : vector<2x4x16x32xf32> to vector<8x16x32xf32>
    %34 = vector.shape_cast %25 : vector<32x128xf32> to vector<2x16x4x32xf32>
    %35 = tpu.transpose %34, [0, 2, 1, 3] : vector<2x16x4x32xf32> -> vector<2x4x16x32xf32>
    %36 = vector.shape_cast %35 : vector<2x4x16x32xf32> to vector<8x16x32xf32>
    "tpu.trace_start"() <{level = 10 : i32, message = "nqe,nke->nqk"}> : () -> ()
    %cst_21 = arith.constant dense<0.000000e+00> : vector<8x16x16xf32>
    %37 = tpu.matmul %30, %33, %cst_21 {dimension_numbers = #tpu.dot_dimension_numbers<[2], [2], [1], [1], [0, 0, 0, 1, 1, 1], [0], [0]>} : vector<8x16x32xf32>, vector<8x16x32xf32>, vector<8x16x16xf32> -> vector<8x16x16xf32>
    "tpu.trace_stop"() : () -> ()
    %38 = vector.shape_cast %37 : vector<8x16x16xf32> to vector<2x4x16x16xf32>
    %39 = vector.broadcast %15 : vector<2x1x16x16xf32> to vector<2x4x16x16xf32>
    %40 = arith.addf %38, %39 : vector<2x4x16x16xf32>
    %cst_22 = arith.constant dense<0xFF800000> : vector<2x4x16xf32>
    %41 = vector.multi_reduction <maximumf>, %40, %cst_22 [3] : vector<2x4x16x16xf32> to vector<2x4x16xf32>
    %42 = vector.shape_cast %41 : vector<2x4x16xf32> to vector<2x4x16x1xf32>
    %43 = vector.broadcast %42 : vector<2x4x16x1xf32> to vector<2x4x16x16xf32>
    %44 = arith.subf %40, %43 : vector<2x4x16x16xf32>
    %45 = math.exp %44 : vector<2x4x16x16xf32>
    %cst_23 = arith.constant dense<0.000000e+00> : vector<2x4x16xf32>
    %46 = vector.multi_reduction <add>, %45, %cst_23 [3] : vector<2x4x16x16xf32> to vector<2x4x16xf32>
    %47 = vector.shape_cast %46 : vector<2x4x16xf32> to vector<2x4x16x1xf32>
    %48 = tpu.reciprocal %47 {approx = true} : vector<2x4x16x1xf32> -> vector<2x4x16x1xf32>
    %49 = vector.broadcast %48 : vector<2x4x16x1xf32> to vector<2x4x16x16xf32>
    %50 = arith.mulf %45, %49 : vector<2x4x16x16xf32>
    %51 = vector.shape_cast %50 : vector<2x4x16x16xf32> to vector<8x16x16xf32>
    "tpu.trace_start"() <{level = 10 : i32, message = "nqk,nke->nqe"}> : () -> ()
    %cst_24 = arith.constant dense<0.000000e+00> : vector<8x16x32xf32>
    %52 = tpu.matmul %51, %36, %cst_24 {dimension_numbers = #tpu.dot_dimension_numbers<[2], [1], [1], [2], [0, 0, 0, 1, 1, 2], [0], [0]>} : vector<8x16x16xf32>, vector<8x16x32xf32>, vector<8x16x32xf32> -> vector<8x16x32xf32>
    "tpu.trace_stop"() : () -> ()
    %53 = vector.shape_cast %52 : vector<8x16x32xf32> to vector<2x4x16x32xf32>
    %54 = tpu.transpose %53, [0, 2, 1, 3] : vector<2x4x16x32xf32> -> vector<2x16x4x32xf32>
    %55 = vector.shape_cast %54 : vector<2x16x4x32xf32> to vector<32x128xf32>
    %cst_25 = arith.constant dense<0.000000e+00> : vector<32x128xf32>
    %56 = tpu.matmul %55, %26, %cst_25 {dimension_numbers = #tpu.dot_dimension_numbers<[1], [0], [0], [1], [0, 0, 1, 1], [], []>} : vector<32x128xf32>, vector<128x128xf32>, vector<32x128xf32> -> vector<32x128xf32>
    %57 = vector.broadcast %27 : vector<1x128xf32> to vector<32x128xf32>
    %58 = arith.addf %56, %57 : vector<32x128xf32>
    %59 = arith.addf %1, %58 : vector<32x128xf32>
    %c0_26 = arith.constant 0 : index
    %c0_27 = arith.constant 0 : index
    %60 = vector.load %arg15[%c0_26, %c0_27] : memref<1x128xf32, #tpu.memory_space<vmem>>, vector<1x128xf32>
    %c0_28 = arith.constant 0 : index
    %c0_29 = arith.constant 0 : index
    %61 = vector.load %arg16[%c0_28, %c0_29] : memref<1x128xf32, #tpu.memory_space<vmem>>, vector<1x128xf32>
    %cst_30 = arith.constant dense<0.000000e+00> : vector<32xf32>
    %62 = vector.multi_reduction <add>, %59, %cst_30 [1] : vector<32x128xf32> to vector<32xf32>
    %63 = vector.shape_cast %62 : vector<32xf32> to vector<32x1xf32>
    %cst_31 = arith.constant 1.280000e+02 : f32
    %64 = vector.broadcast %cst_31 : f32 to vector<32x1xf32>
    %65 = arith.divf %63, %64 : vector<32x1xf32>
    %66 = vector.broadcast %65 : vector<32x1xf32> to vector<32x128xf32>
    %67 = arith.subf %59, %66 : vector<32x128xf32>
    %68 = arith.mulf %67, %67 : vector<32x128xf32>
    %cst_32 = arith.constant dense<0.000000e+00> : vector<32xf32>
    %69 = vector.multi_reduction <add>, %68, %cst_32 [1] : vector<32x128xf32> to vector<32xf32>
    %70 = vector.shape_cast %69 : vector<32xf32> to vector<32x1xf32>
    %cst_33 = arith.constant 1.280000e+02 : f32
    %71 = vector.broadcast %cst_33 : f32 to vector<32x1xf32>
    %72 = arith.divf %70, %71 : vector<32x1xf32>
    %73 = vector.broadcast %65 : vector<32x1xf32> to vector<32x128xf32>
    %74 = arith.subf %59, %73 : vector<32x128xf32>
    %cst_34 = arith.constant 9.99999974E-6 : f32
    %75 = vector.broadcast %cst_34 : f32 to vector<32x1xf32>
    %76 = arith.addf %72, %75 : vector<32x1xf32>
    %77 = math.rsqrt %76 : vector<32x1xf32>
    %78 = vector.broadcast %77 : vector<32x1xf32> to vector<32x128xf32>
    %79 = arith.mulf %74, %78 : vector<32x128xf32>
    %80 = vector.broadcast %60 : vector<1x128xf32> to vector<32x128xf32>
    %81 = arith.mulf %79, %80 : vector<32x128xf32>
    %82 = vector.broadcast %61 : vector<1x128xf32> to vector<32x128xf32>
    %83 = arith.addf %81, %82 : vector<32x128xf32>
    %c0_35 = arith.constant 0 : index
    %c0_36 = arith.constant 0 : index
    %84 = vector.load %arg9[%c0_35, %c0_36] : memref<128x128xf32, #tpu.memory_space<vmem>>, vector<128x128xf32>
    %cst_37 = arith.constant dense<0.000000e+00> : vector<32x128xf32>
    %85 = tpu.matmul %83, %84, %cst_37 {dimension_numbers = #tpu.dot_dimension_numbers<[1], [0], [0], [1], [0, 0, 1, 1], [], []>} : vector<32x128xf32>, vector<128x128xf32>, vector<32x128xf32> -> vector<32x128xf32>
    %c0_38 = arith.constant 0 : index
    %c0_39 = arith.constant 0 : index
    %86 = vector.load %arg10[%c0_38, %c0_39] : memref<1x128xf32, #tpu.memory_space<vmem>>, vector<1x128xf32>
    %87 = vector.broadcast %86 : vector<1x128xf32> to vector<32x128xf32>
    %88 = arith.addf %85, %87 : vector<32x128xf32>
    %c0_40 = arith.constant 0 : index
    %c0_41 = arith.constant 0 : index
    %89 = vector.load %arg11[%c0_40, %c0_41] : memref<128x256xf32, #tpu.memory_space<vmem>>, vector<128x256xf32>
    %cst_42 = arith.constant dense<0.000000e+00> : vector<32x256xf32>
    %90 = tpu.matmul %3, %89, %cst_42 {dimension_numbers = #tpu.dot_dimension_numbers<[1], [0], [0], [1], [0, 0, 1, 1], [], []>} : vector<32x128xf32>, vector<128x256xf32>, vector<32x256xf32> -> vector<32x256xf32>
    %c0_43 = arith.constant 0 : index
    %c0_44 = arith.constant 0 : index
    %91 = vector.load %arg12[%c0_43, %c0_44] : memref<1x256xf32, #tpu.memory_space<vmem>>, vector<1x256xf32>
    %92 = vector.broadcast %91 : vector<1x256xf32> to vector<32x256xf32>
    %93 = arith.addf %90, %92 : vector<32x256xf32>
    %94 = vector.extract_strided_slice %93 {offsets = [0, 0], sizes = [32, 128], strides = [1, 1]} : vector<32x256xf32> to vector<32x128xf32>
    %95 = vector.extract_strided_slice %93 {offsets = [0, 128], sizes = [32, 128], strides = [1, 1]} : vector<32x256xf32> to vector<32x128xf32>
    %c0_45 = arith.constant 0 : index
    %c0_46 = arith.constant 0 : index
    %96 = vector.load %arg13[%c0_45, %c0_46] : memref<128x128xf32, #tpu.memory_space<vmem>>, vector<128x128xf32>
    %c0_47 = arith.constant 0 : index
    %c0_48 = arith.constant 0 : index
    %97 = vector.load %arg14[%c0_47, %c0_48] : memref<1x128xf32, #tpu.memory_space<vmem>>, vector<1x128xf32>
    %98 = vector.shape_cast %88 : vector<32x128xf32> to vector<2x16x4x32xf32>
    %99 = tpu.transpose %98, [0, 2, 1, 3] : vector<2x16x4x32xf32> -> vector<2x4x16x32xf32>
    %100 = vector.shape_cast %99 : vector<2x4x16x32xf32> to vector<8x16x32xf32>
    %101 = vector.shape_cast %94 : vector<32x128xf32> to vector<2x16x4x32xf32>
    %102 = tpu.transpose %101, [0, 2, 1, 3] : vector<2x16x4x32xf32> -> vector<2x4x16x32xf32>
    %103 = vector.shape_cast %102 : vector<2x4x16x32xf32> to vector<8x16x32xf32>
    %104 = vector.shape_cast %95 : vector<32x128xf32> to vector<2x16x4x32xf32>
    %105 = tpu.transpose %104, [0, 2, 1, 3] : vector<2x16x4x32xf32> -> vector<2x4x16x32xf32>
    %106 = vector.shape_cast %105 : vector<2x4x16x32xf32> to vector<8x16x32xf32>
    "tpu.trace_start"() <{level = 10 : i32, message = "nqe,nke->nqk"}> : () -> ()
    %cst_49 = arith.constant dense<0.000000e+00> : vector<8x16x16xf32>
    %107 = tpu.matmul %100, %103, %cst_49 {dimension_numbers = #tpu.dot_dimension_numbers<[2], [2], [1], [1], [0, 0, 0, 1, 1, 1], [0], [0]>} : vector<8x16x32xf32>, vector<8x16x32xf32>, vector<8x16x16xf32> -> vector<8x16x16xf32>
    "tpu.trace_stop"() : () -> ()
    %108 = vector.shape_cast %107 : vector<8x16x16xf32> to vector<2x4x16x16xf32>
    %109 = vector.broadcast %17 : vector<2x1x1x16xf32> to vector<2x4x16x16xf32>
    %110 = arith.addf %108, %109 : vector<2x4x16x16xf32>
    %cst_50 = arith.constant dense<0xFF800000> : vector<2x4x16xf32>
    %111 = vector.multi_reduction <maximumf>, %110, %cst_50 [3] : vector<2x4x16x16xf32> to vector<2x4x16xf32>
    %112 = vector.shape_cast %111 : vector<2x4x16xf32> to vector<2x4x16x1xf32>
    %113 = vector.broadcast %112 : vector<2x4x16x1xf32> to vector<2x4x16x16xf32>
    %114 = arith.subf %110, %113 : vector<2x4x16x16xf32>
    %115 = math.exp %114 : vector<2x4x16x16xf32>
    %cst_51 = arith.constant dense<0.000000e+00> : vector<2x4x16xf32>
    %116 = vector.multi_reduction <add>, %115, %cst_51 [3] : vector<2x4x16x16xf32> to vector<2x4x16xf32>
    %117 = vector.shape_cast %116 : vector<2x4x16xf32> to vector<2x4x16x1xf32>
    %118 = tpu.reciprocal %117 {approx = true} : vector<2x4x16x1xf32> -> vector<2x4x16x1xf32>
    %119 = vector.broadcast %118 : vector<2x4x16x1xf32> to vector<2x4x16x16xf32>
    %120 = arith.mulf %115, %119 : vector<2x4x16x16xf32>
    %121 = vector.shape_cast %120 : vector<2x4x16x16xf32> to vector<8x16x16xf32>
    "tpu.trace_start"() <{level = 10 : i32, message = "nqk,nke->nqe"}> : () -> ()
    %cst_52 = arith.constant dense<0.000000e+00> : vector<8x16x32xf32>
    %122 = tpu.matmul %121, %106, %cst_52 {dimension_numbers = #tpu.dot_dimension_numbers<[2], [1], [1], [2], [0, 0, 0, 1, 1, 2], [0], [0]>} : vector<8x16x16xf32>, vector<8x16x32xf32>, vector<8x16x32xf32> -> vector<8x16x32xf32>
    "tpu.trace_stop"() : () -> ()
    %123 = vector.shape_cast %122 : vector<8x16x32xf32> to vector<2x4x16x32xf32>
    %124 = tpu.transpose %123, [0, 2, 1, 3] : vector<2x4x16x32xf32> -> vector<2x16x4x32xf32>
    %125 = vector.shape_cast %124 : vector<2x16x4x32xf32> to vector<32x128xf32>
    %cst_53 = arith.constant dense<0.000000e+00> : vector<32x128xf32>
    %126 = tpu.matmul %125, %96, %cst_53 {dimension_numbers = #tpu.dot_dimension_numbers<[1], [0], [0], [1], [0, 0, 1, 1], [], []>} : vector<32x128xf32>, vector<128x128xf32>, vector<32x128xf32> -> vector<32x128xf32>
    %127 = vector.broadcast %97 : vector<1x128xf32> to vector<32x128xf32>
    %128 = arith.addf %126, %127 : vector<32x128xf32>
    %129 = arith.addf %83, %128 : vector<32x128xf32>
    %c0_54 = arith.constant 0 : index
    %c0_55 = arith.constant 0 : index
    %130 = vector.load %arg17[%c0_54, %c0_55] : memref<1x128xf32, #tpu.memory_space<vmem>>, vector<1x128xf32>
    %c0_56 = arith.constant 0 : index
    %c0_57 = arith.constant 0 : index
    %131 = vector.load %arg18[%c0_56, %c0_57] : memref<1x128xf32, #tpu.memory_space<vmem>>, vector<1x128xf32>
    %cst_58 = arith.constant dense<0.000000e+00> : vector<32xf32>
    %132 = vector.multi_reduction <add>, %129, %cst_58 [1] : vector<32x128xf32> to vector<32xf32>
    %133 = vector.shape_cast %132 : vector<32xf32> to vector<32x1xf32>
    %cst_59 = arith.constant 1.280000e+02 : f32
    %134 = vector.broadcast %cst_59 : f32 to vector<32x1xf32>
    %135 = arith.divf %133, %134 : vector<32x1xf32>
    %136 = vector.broadcast %135 : vector<32x1xf32> to vector<32x128xf32>
    %137 = arith.subf %129, %136 : vector<32x128xf32>
    %138 = arith.mulf %137, %137 : vector<32x128xf32>
    %cst_60 = arith.constant dense<0.000000e+00> : vector<32xf32>
    %139 = vector.multi_reduction <add>, %138, %cst_60 [1] : vector<32x128xf32> to vector<32xf32>
    %140 = vector.shape_cast %139 : vector<32xf32> to vector<32x1xf32>
    %cst_61 = arith.constant 1.280000e+02 : f32
    %141 = vector.broadcast %cst_61 : f32 to vector<32x1xf32>
    %142 = arith.divf %140, %141 : vector<32x1xf32>
    %143 = vector.broadcast %135 : vector<32x1xf32> to vector<32x128xf32>
    %144 = arith.subf %129, %143 : vector<32x128xf32>
    %cst_62 = arith.constant 9.99999974E-6 : f32
    %145 = vector.broadcast %cst_62 : f32 to vector<32x1xf32>
    %146 = arith.addf %142, %145 : vector<32x1xf32>
    %147 = math.rsqrt %146 : vector<32x1xf32>
    %148 = vector.broadcast %147 : vector<32x1xf32> to vector<32x128xf32>
    %149 = arith.mulf %144, %148 : vector<32x128xf32>
    %150 = vector.broadcast %130 : vector<1x128xf32> to vector<32x128xf32>
    %151 = arith.mulf %149, %150 : vector<32x128xf32>
    %152 = vector.broadcast %131 : vector<1x128xf32> to vector<32x128xf32>
    %153 = arith.addf %151, %152 : vector<32x128xf32>
    %c0_63 = arith.constant 0 : index
    %c0_64 = arith.constant 0 : index
    %154 = vector.load %arg21[%c0_63, %c0_64] : memref<128x256xf32, #tpu.memory_space<vmem>>, vector<128x256xf32>
    %cst_65 = arith.constant dense<0.000000e+00> : vector<32x256xf32>
    %155 = tpu.matmul %153, %154, %cst_65 {dimension_numbers = #tpu.dot_dimension_numbers<[1], [0], [0], [1], [0, 0, 1, 1], [], []>} : vector<32x128xf32>, vector<128x256xf32>, vector<32x256xf32> -> vector<32x256xf32>
    %c0_66 = arith.constant 0 : index
    %c0_67 = arith.constant 0 : index
    %156 = vector.load %arg22[%c0_66, %c0_67] : memref<1x256xf32, #tpu.memory_space<vmem>>, vector<1x256xf32>
    %157 = vector.broadcast %156 : vector<1x256xf32> to vector<32x256xf32>
    %158 = arith.addf %155, %157 : vector<32x256xf32>
    %159 = arith.negf %158 : vector<32x256xf32>
    %160 = math.exp %159 : vector<32x256xf32>
    %cst_68 = arith.constant 1.000000e+00 : f32
    %161 = vector.broadcast %cst_68 : f32 to vector<32x256xf32>
    %162 = arith.addf %161, %160 : vector<32x256xf32>
    %163 = arith.divf %161, %162 : vector<32x256xf32>
    %164 = arith.mulf %158, %163 : vector<32x256xf32>
    %c0_69 = arith.constant 0 : index
    %c0_70 = arith.constant 0 : index
    %165 = vector.load %arg23[%c0_69, %c0_70] : memref<256x128xf32, #tpu.memory_space<vmem>>, vector<256x128xf32>
    %cst_71 = arith.constant dense<0.000000e+00> : vector<32x128xf32>
    %166 = tpu.matmul %164, %165, %cst_71 {dimension_numbers = #tpu.dot_dimension_numbers<[1], [0], [0], [1], [0, 0, 1, 1], [], []>} : vector<32x256xf32>, vector<256x128xf32>, vector<32x128xf32> -> vector<32x128xf32>
    %c0_72 = arith.constant 0 : index
    %c0_73 = arith.constant 0 : index
    %167 = vector.load %arg24[%c0_72, %c0_73] : memref<1x128xf32, #tpu.memory_space<vmem>>, vector<1x128xf32>
    %168 = vector.broadcast %167 : vector<1x128xf32> to vector<32x128xf32>
    %169 = arith.addf %166, %168 : vector<32x128xf32>
    %170 = arith.addf %153, %169 : vector<32x128xf32>
    %c0_74 = arith.constant 0 : index
    %c0_75 = arith.constant 0 : index
    %171 = vector.load %arg19[%c0_74, %c0_75] : memref<1x128xf32, #tpu.memory_space<vmem>>, vector<1x128xf32>
    %c0_76 = arith.constant 0 : index
    %c0_77 = arith.constant 0 : index
    %172 = vector.load %arg20[%c0_76, %c0_77] : memref<1x128xf32, #tpu.memory_space<vmem>>, vector<1x128xf32>
    %cst_78 = arith.constant dense<0.000000e+00> : vector<32xf32>
    %173 = vector.multi_reduction <add>, %170, %cst_78 [1] : vector<32x128xf32> to vector<32xf32>
    %174 = vector.shape_cast %173 : vector<32xf32> to vector<32x1xf32>
    %cst_79 = arith.constant 1.280000e+02 : f32
    %175 = vector.broadcast %cst_79 : f32 to vector<32x1xf32>
    %176 = arith.divf %174, %175 : vector<32x1xf32>
    %177 = vector.broadcast %176 : vector<32x1xf32> to vector<32x128xf32>
    %178 = arith.subf %170, %177 : vector<32x128xf32>
    %179 = arith.mulf %178, %178 : vector<32x128xf32>
    %cst_80 = arith.constant dense<0.000000e+00> : vector<32xf32>
    %180 = vector.multi_reduction <add>, %179, %cst_80 [1] : vector<32x128xf32> to vector<32xf32>
    %181 = vector.shape_cast %180 : vector<32xf32> to vector<32x1xf32>
    %cst_81 = arith.constant 1.280000e+02 : f32
    %182 = vector.broadcast %cst_81 : f32 to vector<32x1xf32>
    %183 = arith.divf %181, %182 : vector<32x1xf32>
    %184 = vector.broadcast %176 : vector<32x1xf32> to vector<32x128xf32>
    %185 = arith.subf %170, %184 : vector<32x128xf32>
    %cst_82 = arith.constant 9.99999974E-6 : f32
    %186 = vector.broadcast %cst_82 : f32 to vector<32x1xf32>
    %187 = arith.addf %183, %186 : vector<32x1xf32>
    %188 = math.rsqrt %187 : vector<32x1xf32>
    %189 = vector.broadcast %188 : vector<32x1xf32> to vector<32x128xf32>
    %190 = arith.mulf %185, %189 : vector<32x128xf32>
    %191 = vector.broadcast %171 : vector<1x128xf32> to vector<32x128xf32>
    %192 = arith.mulf %190, %191 : vector<32x128xf32>
    %193 = vector.broadcast %172 : vector<1x128xf32> to vector<32x128xf32>
    %194 = arith.addf %192, %193 : vector<32x128xf32>
    %195 = vector.shape_cast %194 : vector<32x128xf32> to vector<2x16x128xf32>
    %c0_83 = arith.constant 0 : index
    %c0_84 = arith.constant 0 : index
    %c0_85 = arith.constant 0 : index
    %196 = vector.load %arg25[%c0_83, %c0_84, %c0_85] : memref<2x16x128xf32, #tpu.memory_space<vmem>>, vector<2x16x128xf32>
    tpu.vector_store %arg25[%c0_83, %c0_84, %c0_85], %195 {strides = array<i32>} : memref<2x16x128xf32, #tpu.memory_space<vmem>>, vector<2x16x128xf32>,
    return
  }
  func.func @transform_0(%arg0: i32) -> (i32, i32, i32) {
    %c0_i32 = arith.constant 0 : i32
    %c0_i32_0 = arith.constant 0 : i32
    %c0_i32_1 = arith.constant 0 : i32
    %c0_i32_2 = arith.constant 0 : i32
    return %c0_i32, %c0_i32_0, %c0_i32_1 : i32, i32, i32
  }
  func.func @transform_1(%arg0: i32) -> (i32, i32, i32) {
    %c0_i32 = arith.constant 0 : i32
    %c0_i32_0 = arith.constant 0 : i32
    %c0_i32_1 = arith.constant 0 : i32
    %c0_i32_2 = arith.constant 0 : i32
    return %c0_i32, %c0_i32_0, %c0_i32_1 : i32, i32, i32
  }
  func.func @transform_2(%arg0: i32) -> (i32, i32, i32) {
    %c0_i32 = arith.constant 0 : i32
    %c0_i32_0 = arith.constant 0 : i32
    %c0_i32_1 = arith.constant 0 : i32
    %c0_i32_2 = arith.constant 0 : i32
    return %c0_i32, %c0_i32_0, %c0_i32_1 : i32, i32, i32
  }
  func.func @transform_3(%arg0: i32) -> (i32, i32, i32) {
    %c0_i32 = arith.constant 0 : i32
    %c0_i32_0 = arith.constant 0 : i32
    %c0_i32_1 = arith.constant 0 : i32
    %c0_i32_2 = arith.constant 0 : i32
    return %c0_i32, %c0_i32_0, %c0_i32_1 : i32, i32, i32
  }
  func.func @transform_4(%arg0: i32) -> (i32, i32) {
    %c0_i32 = arith.constant 0 : i32
    %c0_i32_0 = arith.constant 0 : i32
    %c0_i32_1 = arith.constant 0 : i32
    return %c0_i32, %c0_i32_0 : i32, i32
  }
  func.func @transform_5(%arg0: i32) -> (i32, i32) {
    %c0_i32 = arith.constant 0 : i32
    %c0_i32_0 = arith.constant 0 : i32
    %c0_i32_1 = arith.constant 0 : i32
    return %c0_i32, %c0_i32_0 : i32, i32
  }
  func.func @transform_6(%arg0: i32) -> (i32, i32) {
    %c0_i32 = arith.constant 0 : i32
    %c0_i32_0 = arith.constant 0 : i32
    %c0_i32_1 = arith.constant 0 : i32
    return %c0_i32, %c0_i32_0 : i32, i32
  }
  func.func @transform_7(%arg0: i32) -> (i32, i32) {
    %c0_i32 = arith.constant 0 : i32
    %c0_i32_0 = arith.constant 0 : i32
    %c0_i32_1 = arith.constant 0 : i32
    return %c0_i32, %c0_i32_0 : i32, i32
  }
  func.func @transform_8(%arg0: i32) -> (i32, i32) {
    %c0_i32 = arith.constant 0 : i32
    %c0_i32_0 = arith.constant 0 : i32
    %c0_i32_1 = arith.constant 0 : i32
    return %c0_i32, %c0_i32_0 : i32, i32
  }
  func.func @transform_9(%arg0: i32) -> (i32, i32) {
    %c0_i32 = arith.constant 0 : i32
    %c0_i32_0 = arith.constant 0 : i32
    %c0_i32_1 = arith.constant 0 : i32
    return %c0_i32, %c0_i32_0 : i32, i32
  }
  func.func @transform_10(%arg0: i32) -> (i32, i32) {
    %c0_i32 = arith.constant 0 : i32
    %c0_i32_0 = arith.constant 0 : i32
    %c0_i32_1 = arith.constant 0 : i32
    return %c0_i32, %c0_i32_0 : i32, i32
  }
  func.func @transform_11(%arg0: i32) -> (i32, i32) {
    %c0_i32 = arith.constant 0 : i32
    %c0_i32_0 = arith.constant 0 : i32
    %c0_i32_1 = arith.constant 0 : i32
    return %c0_i32, %c0_i32_0 : i32, i32
  }
  func.func @transform_12(%arg0: i32) -> (i32, i32) {
    %c0_i32 = arith.constant 0 : i32
    %c0_i32_0 = arith.constant 0 : i32
    %c0_i32_1 = arith.constant 0 : i32
    return %c0_i32, %c0_i32_0 : i32, i32
  }
  func.func @transform_13(%arg0: i32) -> (i32, i32) {
    %c0_i32 = arith.constant 0 : i32
    %c0_i32_0 = arith.constant 0 : i32
    %c0_i32_1 = arith.constant 0 : i32
    return %c0_i32, %c0_i32_0 : i32, i32
  }
  func.func @transform_14(%arg0: i32) -> (i32, i32) {
    %c0_i32 = arith.constant 0 : i32
    %c0_i32_0 = arith.constant 0 : i32
    %c0_i32_1 = arith.constant 0 : i32
    return %c0_i32, %c0_i32_0 : i32, i32
  }
  func.func @transform_15(%arg0: i32) -> (i32, i32) {
    %c0_i32 = arith.constant 0 : i32
    %c0_i32_0 = arith.constant 0 : i32
    %c0_i32_1 = arith.constant 0 : i32
    return %c0_i32, %c0_i32_0 : i32, i32
  }
  func.func @transform_16(%arg0: i32) -> (i32, i32) {
    %c0_i32 = arith.constant 0 : i32
    %c0_i32_0 = arith.constant 0 : i32
    %c0_i32_1 = arith.constant 0 : i32
    return %c0_i32, %c0_i32_0 : i32, i32
  }
  func.func @transform_17(%arg0: i32) -> (i32, i32) {
    %c0_i32 = arith.constant 0 : i32
    %c0_i32_0 = arith.constant 0 : i32
    %c0_i32_1 = arith.constant 0 : i32
    return %c0_i32, %c0_i32_0 : i32, i32
  }
  func.func @transform_18(%arg0: i32) -> (i32, i32) {
    %c0_i32 = arith.constant 0 : i32
    %c0_i32_0 = arith.constant 0 : i32
    %c0_i32_1 = arith.constant 0 : i32
    return %c0_i32, %c0_i32_0 : i32, i32
  }
  func.func @transform_19(%arg0: i32) -> (i32, i32) {
    %c0_i32 = arith.constant 0 : i32
    %c0_i32_0 = arith.constant 0 : i32
    %c0_i32_1 = arith.constant 0 : i32
    return %c0_i32, %c0_i32_0 : i32, i32
  }
  func.func @transform_20(%arg0: i32) -> (i32, i32) {
    %c0_i32 = arith.constant 0 : i32
    %c0_i32_0 = arith.constant 0 : i32
    %c0_i32_1 = arith.constant 0 : i32
    return %c0_i32, %c0_i32_0 : i32, i32
  }
  func.func @transform_21(%arg0: i32) -> (i32, i32) {
    %c0_i32 = arith.constant 0 : i32
    %c0_i32_0 = arith.constant 0 : i32
    %c0_i32_1 = arith.constant 0 : i32
    return %c0_i32, %c0_i32_0 : i32, i32
  }
  func.func @transform_22(%arg0: i32) -> (i32, i32) {
    %c0_i32 = arith.constant 0 : i32
    %c0_i32_0 = arith.constant 0 : i32
    %c0_i32_1 = arith.constant 0 : i32
    return %c0_i32, %c0_i32_0 : i32, i32
  }
  func.func @transform_23(%arg0: i32) -> (i32, i32) {
    %c0_i32 = arith.constant 0 : i32
    %c0_i32_0 = arith.constant 0 : i32
    %c0_i32_1 = arith.constant 0 : i32
    return %c0_i32, %c0_i32_0 : i32, i32
  }
  func.func @transform_24(%arg0: i32) -> (i32, i32, i32) {
    %c0_i32 = arith.constant 0 : i32
    %c0_i32_0 = arith.constant 0 : i32
    %c0_i32_1 = arith.constant 0 : i32
    %c0_i32_2 = arith.constant 0 : i32
    return %c0_i32, %c0_i32_0, %c0_i32_1 : i32, i32, i32
  }
}

</mosaic_0001>

<llo_original>
// kernel: tpu_custom_call.1
$region0: #{tpu_custom_call.1}
  #allocation0 [shape = 'u32[]', space=smem, size = 0x4, offset = 0x4, fixed_abs, tag = 'smem constant byte address 0x4 - core index']
  #allocation1 [shape = 'u32[72,128]{1,0:T(1,128)}', space=vmem, size = 0x9000, scoped, tag = 'internal scratch']
  %s0 = inlined_call_operand.hbm [shape: f32[2,16,128], index: 0, kind: input, shape index: {}]
  %s1 = inlined_call_operand.hbm [shape: f32[2,16,128], index: 1, kind: input, shape index: {}]
  %s2 = inlined_call_operand.hbm [shape: f32[2,1,16], index: 2, kind: input, shape index: {}]
  %s3 = inlined_call_operand.hbm [shape: f32[2,1,16], index: 3, kind: input, shape index: {}]
  %s4 = inlined_call_operand.hbm [shape: f32[128,384], index: 4, kind: input, shape index: {}]
  %s5 = inlined_call_operand.vmem [shape: f32[1,384], index: 5, kind: input, shape index: {}]
  %s6 = inlined_call_operand.hbm [shape: f32[128,128], index: 6, kind: input, shape index: {}]
  %s7 = inlined_call_operand.hbm [shape: f32[1,128], index: 7, kind: input, shape index: {}]
  %s8 = inlined_call_operand.hbm [shape: f32[128,128], index: 8, kind: input, shape index: {}]
  %s9 = inlined_call_operand.vmem [shape: f32[1,128], index: 9, kind: input, shape index: {}]
  %s10 = inlined_call_operand.hbm [shape: f32[128,256], index: 10, kind: input, shape index: {}]
  %s11 = inlined_call_operand.vmem [shape: f32[1,256], index: 11, kind: input, shape index: {}]
  %s12 = inlined_call_operand.hbm [shape: f32[128,128], index: 12, kind: input, shape index: {}]
  %s13 = inlined_call_operand.vmem [shape: f32[1,128], index: 13, kind: input, shape index: {}]
  %s14 = inlined_call_operand.vmem [shape: f32[1,128], index: 14, kind: input, shape index: {}]
  %s15 = inlined_call_operand.vmem [shape: f32[1,128], index: 15, kind: input, shape index: {}]
  %s16 = inlined_call_operand.vmem [shape: f32[1,128], index: 16, kind: input, shape index: {}]
  %s17 = inlined_call_operand.vmem [shape: f32[1,128], index: 17, kind: input, shape index: {}]
  %s18 = inlined_call_operand.vmem [shape: f32[1,128], index: 18, kind: input, shape index: {}]
  %s19 = inlined_call_operand.vmem [shape: f32[1,128], index: 19, kind: input, shape index: {}]
  %s20 = inlined_call_operand.hbm [shape: f32[128,256], index: 20, kind: input, shape index: {}]
  %s21 = inlined_call_operand.vmem [shape: f32[1,256], index: 21, kind: input, shape index: {}]
  %s22 = inlined_call_operand.hbm [shape: f32[256,128], index: 22, kind: input, shape index: {}]
  %s23 = inlined_call_operand.vmem [shape: f32[1,128], index: 23, kind: input, shape index: {}]
  %s24 = inlined_call_operand.hbm [shape: f32[2,16,128], index: 24, kind: output, shape index: {}]
  %s25 = sld [smem:[#allocation0]]
  $region154: #{tpu_custom_call.1} parent=0
    _
  %s27 = ssub.s32 1, %s25
  %s28 = scalar_select 0, %s27, %s25
  $region1: #{tpu_custom_call.1} parent=0
    #allocation2 [shape = 'u8[16384]{0}', space=vmem, size = 0x4000, scoped, tag = 'input window, operand 0, single buffered']
    #allocation3 [shape = 's32[1]{0}', space=sflag, size = 0x4, scoped, tag = 'scoped memory for tpu_custom_call.1']
    #allocation4 [shape = 's32[1]{0}', space=sflag, size = 0x4, scoped, tag = 'scoped memory for tpu_custom_call.1']
    #allocation5 [shape = 'u8[16384]{0}', space=vmem, size = 0x4000, scoped, tag = 'input window, operand 1, single buffered']
    #allocation6 [shape = 's32[1]{0}', space=sflag, size = 0x4, scoped, tag = 'scoped memory for tpu_custom_call.1']
    #allocation7 [shape = 'u8[1024]{0}', space=vmem, size = 0x400, scoped, tag = 'input window, operand 2, single buffered']
    #allocation8 [shape = 'u8[1024]{0}', space=vmem, size = 0x400, scoped, tag = 'input window, operand 3, single buffered']
    #allocation9 [shape = 's32[1]{0}', space=sflag, size = 0x4, scoped, tag = 'scoped memory for tpu_custom_call.1']
    #allocation10 [shape = 'u8[196608]{0}', space=vmem, size = 0x30000, scoped, tag = 'input window, operand 4, single buffered']
    #allocation11 [shape = 'u8[65536]{0}', space=vmem, size = 0x10000, scoped, tag = 'input window, operand 6, single buffered']
    #allocation12 [shape = 's32[1]{0}', space=sflag, size = 0x4, scoped, tag = 'scoped memory for tpu_custom_call.1']
    #allocation13 [shape = 'u8[512]{0}', space=vmem, size = 0x400, scoped, tag = 'input window, operand 7, single buffered']
    #allocation14 [shape = 'u8[65536]{0}', space=vmem, size = 0x10000, scoped, tag = 'input window, operand 8, single buffered']
    #allocation15 [shape = 's32[1]{0}', space=sflag, size = 0x4, scoped, tag = 'scoped memory for tpu_custom_call.1']
    #allocation16 [shape = 'u8[131072]{0}', space=vmem, size = 0x20000, scoped, tag = 'input window, operand 10, single buffered']
    #allocation17 [shape = 'u8[65536]{0}', space=vmem, size = 0x10000, scoped, tag = 'input window, operand 12, single buffered']
    #allocation18 [shape = 's32[1]{0}', space=sflag, size = 0x4, scoped, tag = 'scoped memory for tpu_custom_call.1']
    #allocation19 [shape = 'u8[131072]{0}', space=vmem, size = 0x20000, scoped, tag = 'input window, operand 20, single buffered']
    #allocation20 [shape = 'u8[131072]{0}', space=vmem, size = 0x20000, scoped, tag = 'input window, operand 22, single buffered']
    #allocation21 [shape = 's32[1]{0}', space=sflag, size = 0x4, scoped, tag = 'scoped memory for tpu_custom_call.1']
    #allocation22 [shape = 'u8[16384]{0}', space=vmem, size = 0x4000, scoped, tag = 'output window, operand 0, single buffered']
    %29 = vsyncpa [#allocation3], 0
    %30 = vsyncpa [#allocation6], 0
    %31 = vsyncpa [#allocation9], 0
    %32 = vsyncpa [#allocation12], 0
    %33 = vsyncpa [#allocation15], 0
    %34 = vsyncpa [#allocation18], 0
    %35 = vsyncpa [#allocation21], 0
    %36 = vsyncpa [#allocation4], 0
    // Predicated region
    $region2: #{tpu_custom_call.1} parent=1 // pred_check
      _
    $region3: #{tpu_custom_call.1} parent=1 // pred_check_branch
      %38 = sbr.rel (0) target = $region5
    $region4: #{tpu_custom_call.1} parent=1 // pred_region
      %40 = vsyncadd [#allocation3], 0
      %s41 = sshll.u32 %s0, 4
      %s42 = int_to_ptr.hbm [resolvable:$true] %s41
      %s43 = sshll.u32 [#allocation2], 4
      %s44 = int_to_ptr.vmem [resolvable:$true] %s43
      %49 = dma.hbm_to_vmem [thread:$0]  %s42, 512, %s44, [#allocation3], 128, 128, 8
    $region5: #{tpu_custom_call.1} parent=1 // pred_fallthru
      _
    // Predicated region
    $region6: #{tpu_custom_call.1} parent=1 // pred_check
      _
    $region7: #{tpu_custom_call.1} parent=1 // pred_check_branch
      %51 = sbr.rel (0) target = $region9
    $region8: #{tpu_custom_call.1} parent=1 // pred_region
      %53 = vsyncadd [#allocation6], 0
      %s54 = sshll.u32 %s1, 4
      %s55 = int_to_ptr.hbm [resolvable:$true] %s54
      %s56 = sshll.u32 [#allocation5], 4
      %s57 = int_to_ptr.vmem [resolvable:$true] %s56
      %62 = dma.hbm_to_vmem [thread:$0]  %s55, 512, %s57, [#allocation6], 128, 128, 8
    $region9: #{tpu_custom_call.1} parent=1 // pred_fallthru
      _
    // Predicated region
    $region10: #{tpu_custom_call.1} parent=1 // pred_check
      _
    $region11: #{tpu_custom_call.1} parent=1 // pred_check_branch
      %64 = sbr.rel (0) target = $region13
    $region12: #{tpu_custom_call.1} parent=1 // pred_region
      %66 = vsyncadd [#allocation6], 0
      %s67 = sshll.u32 %s2, 4
      %s68 = int_to_ptr.hbm [resolvable:$true] %s67
      %s69 = sshll.u32 [#allocation7], 4
      %s70 = int_to_ptr.vmem [resolvable:$true] %s69
      %75 = dma.hbm_to_vmem [thread:$0]  %s68, 32, %s70, [#allocation6], 16, 16, 1
    $region13: #{tpu_custom_call.1} parent=1 // pred_fallthru
      _
    // Predicated region
    $region14: #{tpu_custom_call.1} parent=1 // pred_check
      _
    $region15: #{tpu_custom_call.1} parent=1 // pred_check_branch
      %77 = sbr.rel (0) target = $region17
    $region16: #{tpu_custom_call.1} parent=1 // pred_region
      %79 = vsyncadd [#allocation9], 0
      %s80 = sshll.u32 %s3, 4
      %s81 = int_to_ptr.hbm [resolvable:$true] %s80
      %s82 = sshll.u32 [#allocation8], 4
      %s83 = int_to_ptr.vmem [resolvable:$true] %s82
      %88 = dma.hbm_to_vmem [thread:$0]  %s81, 32, %s83, [#allocation9], 16, 16, 1
    $region17: #{tpu_custom_call.1} parent=1 // pred_fallthru
      _
    // Predicated region
    $region18: #{tpu_custom_call.1} parent=1 // pred_check
      _
    $region19: #{tpu_custom_call.1} parent=1 // pred_check_branch
      %90 = sbr.rel (0) target = $region21
    $region20: #{tpu_custom_call.1} parent=1 // pred_region
      %92 = vsyncadd [#allocation9], 0
      %s93 = sshll.u32 %s4, 4
      %s94 = int_to_ptr.hbm [resolvable:$true] %s93
      %s95 = sshll.u32 [#allocation10], 4
      %s96 = int_to_ptr.vmem [resolvable:$true] %s95
      %101 = dma.hbm_to_vmem [thread:$0]  %s94, 6144, %s96, [#allocation9], 384, 384, 24
    $region21: #{tpu_custom_call.1} parent=1 // pred_fallthru
      _
    // Predicated region
    $region22: #{tpu_custom_call.1} parent=1 // pred_check
      _
    $region23: #{tpu_custom_call.1} parent=1 // pred_check_branch
      %103 = sbr.rel (0) target = $region25
    $region24: #{tpu_custom_call.1} parent=1 // pred_region
      _
    $region25: #{tpu_custom_call.1} parent=1 // pred_fallthru
      _
    // Predicated region
    $region26: #{tpu_custom_call.1} parent=1 // pred_check
      _
    $region27: #{tpu_custom_call.1} parent=1 // pred_check_branch
      %105 = sbr.rel (0) target = $region29
    $region28: #{tpu_custom_call.1} parent=1 // pred_region
      %107 = vsyncadd [#allocation12], 0
      %s108 = sshll.u32 %s6, 4
      %s109 = int_to_ptr.hbm [resolvable:$true] %s108
      %s110 = sshll.u32 [#allocation11], 4
      %s111 = int_to_ptr.vmem [resolvable:$true] %s110
      %116 = dma.hbm_to_vmem [thread:$0]  %s109, 2048, %s111, [#allocation12], 128, 128, 8
    $region29: #{tpu_custom_call.1} parent=1 // pred_fallthru
      _
    // Predicated region
    $region30: #{tpu_custom_call.1} parent=1 // pred_check
      _
    $region31: #{tpu_custom_call.1} parent=1 // pred_check_branch
      %118 = sbr.rel (0) target = $region33
    $region32: #{tpu_custom_call.1} parent=1 // pred_region
      %120 = vsyncadd [#allocation12], 0
      %s122 = sshll.u32 %s7, 4
      %s123 = int_to_ptr.hbm [resolvable:$true] %s122
      %s124 = sshll.u32 [#allocation13], 4
      %s125 = int_to_ptr.vmem [resolvable:$true] %s124
      %127 = dma.hbm_to_vmem [thread:$0]  %s123, 16, %s125, [#allocation12]
    $region33: #{tpu_custom_call.1} parent=1 // pred_fallthru
      _
    // Predicated region
    $region34: #{tpu_custom_call.1} parent=1 // pred_check
      _
    $region35: #{tpu_custom_call.1} parent=1 // pred_check_branch
      %129 = sbr.rel (0) target = $region37
    $region36: #{tpu_custom_call.1} parent=1 // pred_region
      %131 = vsyncadd [#allocation15], 0
      %s132 = sshll.u32 %s8, 4
      %s133 = int_to_ptr.hbm [resolvable:$true] %s132
      %s134 = sshll.u32 [#allocation14], 4
      %s135 = int_to_ptr.vmem [resolvable:$true] %s134
      %140 = dma.hbm_to_vmem [thread:$0]  %s133, 2048, %s135, [#allocation15], 128, 128, 8
    $region37: #{tpu_custom_call.1} parent=1 // pred_fallthru
      _
    // Predicated region
    $region38: #{tpu_custom_call.1} parent=1 // pred_check
      _
    $region39: #{tpu_custom_call.1} parent=1 // pred_check_branch
      %142 = sbr.rel (0) target = $region41
    $region40: #{tpu_custom_call.1} parent=1 // pred_region
      _
    $region41: #{tpu_custom_call.1} parent=1 // pred_fallthru
      _
    // Predicated region
    $region42: #{tpu_custom_call.1} parent=1 // pred_check
      _
    $region43: #{tpu_custom_call.1} parent=1 // pred_check_branch
      %144 = sbr.rel (0) target = $region45
    $region44: #{tpu_custom_call.1} parent=1 // pred_region
      %146 = vsyncadd [#allocation15], 0
      %s147 = sshll.u32 %s10, 4
      %s148 = int_to_ptr.hbm [resolvable:$true] %s147
      %s149 = sshll.u32 [#allocation16], 4
      %s150 = int_to_ptr.vmem [resolvable:$true] %s149
      %155 = dma.hbm_to_vmem [thread:$0]  %s148, 4096, %s150, [#allocation15], 256, 256, 16
    $region45: #{tpu_custom_call.1} parent=1 // pred_fallthru
      _
    // Predicated region
    $region46: #{tpu_custom_call.1} parent=1 // pred_check
      _
    $region47: #{tpu_custom_call.1} parent=1 // pred_check_branch
      %157 = sbr.rel (0) target = $region49
    $region48: #{tpu_custom_call.1} parent=1 // pred_region
      _
    $region49: #{tpu_custom_call.1} parent=1 // pred_fallthru
      _
    // Predicated region
    $region50: #{tpu_custom_call.1} parent=1 // pred_check
      _
    $region51: #{tpu_custom_call.1} parent=1 // pred_check_branch
      %159 = sbr.rel (0) target = $region53
    $region52: #{tpu_custom_call.1} parent=1 // pred_region
      %161 = vsyncadd [#allocation18], 0
      %s162 = sshll.u32 %s12, 4
      %s163 = int_to_ptr.hbm [resolvable:$true] %s162
      %s164 = sshll.u32 [#allocation17], 4
      %s165 = int_to_ptr.vmem [resolvable:$true] %s164
      %170 = dma.hbm_to_vmem [thread:$0]  %s163, 2048, %s165, [#allocation18], 128, 128, 8
    $region53: #{tpu_custom_call.1} parent=1 // pred_fallthru
      _
    // Predicated region
    $region54: #{tpu_custom_call.1} parent=1 // pred_check
      _
    $region55: #{tpu_custom_call.1} parent=1 // pred_check_branch
      %172 = sbr.rel (0) target = $region57
    $region56: #{tpu_custom_call.1} parent=1 // pred_region
      _
    $region57: #{tpu_custom_call.1} parent=1 // pred_fallthru
      _
    // Predicated region
    $region58: #{tpu_custom_call.1} parent=1 // pred_check
      _
    $region59: #{tpu_custom_call.1} parent=1 // pred_check_branch
      %174 = sbr.rel (0) target = $region61
    $region60: #{tpu_custom_call.1} parent=1 // pred_region
      _
    $region61: #{tpu_custom_call.1} parent=1 // pred_fallthru
      _
    // Predicated region
    $region62: #{tpu_custom_call.1} parent=1 // pred_check
      _
    $region63: #{tpu_custom_call.1} parent=1 // pred_check_branch
      %176 = sbr.rel (0) target = $region65
    $region64: #{tpu_custom_call.1} parent=1 // pred_region
      _
    $region65: #{tpu_custom_call.1} parent=1 // pred_fallthru
      _
    // Predicated region
    $region66: #{tpu_custom_call.1} parent=1 // pred_check
      _
    $region67: #{tpu_custom_call.1} parent=1 // pred_check_branch
      %178 = sbr.rel (0) target = $region69
    $region68: #{tpu_custom_call.1} parent=1 // pred_region
      _
    $region69: #{tpu_custom_call.1} parent=1 // pred_fallthru
      _
    // Predicated region
    $region70: #{tpu_custom_call.1} parent=1 // pred_check
      _
    $region71: #{tpu_custom_call.1} parent=1 // pred_check_branch
      %180 = sbr.rel (0) target = $region73
    $region72: #{tpu_custom_call.1} parent=1 // pred_region
      _
    $region73: #{tpu_custom_call.1} parent=1 // pred_fallthru
      _
    // Predicated region
    $region74: #{tpu_custom_call.1} parent=1 // pred_check
      _
    $region75: #{tpu_custom_call.1} parent=1 // pred_check_branch
      %182 = sbr.rel (0) target = $region77
    $region76: #{tpu_custom_call.1} parent=1 // pred_region
      _
    $region77: #{tpu_custom_call.1} parent=1 // pred_fallthru
      _
    // Predicated region
    $region78: #{tpu_custom_call.1} parent=1 // pred_check
      _
    $region79: #{tpu_custom_call.1} parent=1 // pred_check_branch
      %184 = sbr.rel (0) target = $region81
    $region80: #{tpu_custom_call.1} parent=1 // pred_region
      _
    $region81: #{tpu_custom_call.1} parent=1 // pred_fallthru
      _
    // Predicated region
    $region82: #{tpu_custom_call.1} parent=1 // pred_check
      _
    $region83: #{tpu_custom_call.1} parent=1 // pred_check_branch
      %186 = sbr.rel (0) target = $region85
    $region84: #{tpu_custom_call.1} parent=1 // pred_region
      %188 = vsyncadd [#allocation18], 0
      %s189 = sshll.u32 %s20, 4
      %s190 = int_to_ptr.hbm [resolvable:$true] %s189
      %s191 = sshll.u32 [#allocation19], 4
      %s192 = int_to_ptr.vmem [resolvable:$true] %s191
      %197 = dma.hbm_to_vmem [thread:$0]  %s190, 4096, %s192, [#allocation18], 256, 256, 16
    $region85: #{tpu_custom_call.1} parent=1 // pred_fallthru
      _
    // Predicated region
    $region86: #{tpu_custom_call.1} parent=1 // pred_check
      _
    $region87: #{tpu_custom_call.1} parent=1 // pred_check_branch
      %199 = sbr.rel (0) target = $region89
    $region88: #{tpu_custom_call.1} parent=1 // pred_region
      _
    $region89: #{tpu_custom_call.1} parent=1 // pred_fallthru
      _
    // Predicated region
    $region90: #{tpu_custom_call.1} parent=1 // pred_check
      _
    $region91: #{tpu_custom_call.1} parent=1 // pred_check_branch
      %201 = sbr.rel (0) target = $region93
    $region92: #{tpu_custom_call.1} parent=1 // pred_region
      %203 = vsyncadd [#allocation21], 0
      %s204 = sshll.u32 %s22, 4
      %s205 = int_to_ptr.hbm [resolvable:$true] %s204
      %s206 = sshll.u32 [#allocation20], 4
      %s207 = int_to_ptr.vmem [resolvable:$true] %s206
      %212 = dma.hbm_to_vmem [thread:$0]  %s205, 4096, %s207, [#allocation21], 128, 128, 8
    $region93: #{tpu_custom_call.1} parent=1 // pred_fallthru
      _
    // Predicated region
    $region94: #{tpu_custom_call.1} parent=1 // pred_check
      _
    $region95: #{tpu_custom_call.1} parent=1 // pred_check_branch
      %214 = sbr.rel (0) target = $region97
    $region96: #{tpu_custom_call.1} parent=1 // pred_region
      _
    $region97: #{tpu_custom_call.1} parent=1 // pred_fallthru
      _
    // Predicated region
    $region98: #{tpu_custom_call.1} parent=1 // pred_check
      _
    $region99: #{tpu_custom_call.1} parent=1 // pred_check_branch
      %216 = sbr.rel (0) target = $region101
    $region100: #{tpu_custom_call.1} parent=1 // pred_region
      %218 = dma.done [#allocation3], 512
    $region101: #{tpu_custom_call.1} parent=1 // pred_fallthru
      _
    // Predicated region
    $region102: #{tpu_custom_call.1} parent=1 // pred_check
      _
    $region103: #{tpu_custom_call.1} parent=1 // pred_check_branch
      %220 = sbr.rel (0) target = $region105
    $region104: #{tpu_custom_call.1} parent=1 // pred_region
      %222 = dma.done [#allocation6], 512
    $region105: #{tpu_custom_call.1} parent=1 // pred_fallthru
      _
    // Predicated region
    $region106: #{tpu_custom_call.1} parent=1 // pred_check
      _
    $region107: #{tpu_custom_call.1} parent=1 // pred_check_branch
      %224 = sbr.rel (0) target = $region109
    $region108: #{tpu_custom_call.1} parent=1 // pred_region
      %226 = dma.done [#allocation6], 32
    $region109: #{tpu_custom_call.1} parent=1 // pred_fallthru
      _
    // Predicated region
    $region110: #{tpu_custom_call.1} parent=1 // pred_check
      _
    $region111: #{tpu_custom_call.1} parent=1 // pred_check_branch
      %228 = sbr.rel (0) target = $region113
    $region112: #{tpu_custom_call.1} parent=1 // pred_region
      %230 = dma.done [#allocation9], 32
    $region113: #{tpu_custom_call.1} parent=1 // pred_fallthru
      _
    // Predicated region
    $region114: #{tpu_custom_call.1} parent=1 // pred_check
      _
    $region115: #{tpu_custom_call.1} parent=1 // pred_check_branch
      %232 = sbr.rel (0) target = $region117
    $region116: #{tpu_custom_call.1} parent=1 // pred_region
      %234 = dma.done [#allocation9], 6144
    $region117: #{tpu_custom_call.1} parent=1 // pred_fallthru
      _
    // Predicated region
    $region118: #{tpu_custom_call.1} parent=1 // pred_check
      _
    $region119: #{tpu_custom_call.1} parent=1 // pred_check_branch
      %236 = sbr.rel (0) target = $region121
    $region120: #{tpu_custom_call.1} parent=1 // pred_region
      %238 = dma.done [#allocation12], 2048
    $region121: #{tpu_custom_call.1} parent=1 // pred_fallthru
      _
    // Predicated region
    $region122: #{tpu_custom_call.1} parent=1 // pred_check
      _
    $region123: #{tpu_custom_call.1} parent=1 // pred_check_branch
      %240 = sbr.rel (0) target = $region125
    $region124: #{tpu_custom_call.1} parent=1 // pred_region
      %242 = dma.done [#allocation12], 16
    $region125: #{tpu_custom_call.1} parent=1 // pred_fallthru
      _
    // Predicated region
    $region126: #{tpu_custom_call.1} parent=1 // pred_check
      _
    $region127: #{tpu_custom_call.1} parent=1 // pred_check_branch
      %244 = sbr.rel (0) target = $region129
    $region128: #{tpu_custom_call.1} parent=1 // pred_region
      %246 = dma.done [#allocation15], 2048
    $region129: #{tpu_custom_call.1} parent=1 // pred_fallthru
      _
    // Predicated region
    $region130: #{tpu_custom_call.1} parent=1 // pred_check
      _
    $region131: #{tpu_custom_call.1} parent=1 // pred_check_branch
      %248 = sbr.rel (0) target = $region133
    $region132: #{tpu_custom_call.1} parent=1 // pred_region
      %250 = dma.done [#allocation15], 4096
    $region133: #{tpu_custom_call.1} parent=1 // pred_fallthru
      _
    // Predicated region
    $region134: #{tpu_custom_call.1} parent=1 // pred_check
      _
    $region135: #{tpu_custom_call.1} parent=1 // pred_check_branch
      %252 = sbr.rel (0) target = $region137
    $region136: #{tpu_custom_call.1} parent=1 // pred_region
      %254 = dma.done [#allocation18], 2048
    $region137: #{tpu_custom_call.1} parent=1 // pred_fallthru
      _
    // Predicated region
    $region138: #{tpu_custom_call.1} parent=1 // pred_check
      _
    $region139: #{tpu_custom_call.1} parent=1 // pred_check_branch
      %256 = sbr.rel (0) target = $region141
    $region140: #{tpu_custom_call.1} parent=1 // pred_region
      %258 = dma.done [#allocation18], 4096
    $region141: #{tpu_custom_call.1} parent=1 // pred_fallthru
      _
    // Predicated region
    $region142: #{tpu_custom_call.1} parent=1 // pred_check
      _
    $region143: #{tpu_custom_call.1} parent=1 // pred_check_branch
      %260 = sbr.rel (0) target = $region145
    $region144: #{tpu_custom_call.1} parent=1 // pred_region
      %262 = dma.done [#allocation21], 4096
    $region145: #{tpu_custom_call.1} parent=1 // pred_fallthru
      _
    %v263 = vld [vmem:[#allocation2] sm:$0xff]
    %v264 = vld [vmem:[#allocation2 + $0x8] sm:$0xff]
    %v265 = vld [vmem:[#allocation2 + $0x10] sm:$0xff]
    %v266 = vld [vmem:[#allocation2 + $0x18] sm:$0xff]
    %v267 = vld [vmem:[#allocation5] sm:$0xff]
    %v268 = vld [vmem:[#allocation5 + $0x8] sm:$0xff]
    %v269 = vld [vmem:[#allocation5 + $0x10] sm:$0xff]
    %v270 = vld [vmem:[#allocation5 + $0x18] sm:$0xff]
    %v271 = vlaneseq
    %v272 = vshrl.u32 %v271, 7
    %v273 = vadd.s32 %v272, 8
    %v274 = vlaneseq
    %v275 = vand.u32 %v274, 127
    %vm276 = vcmp.le.s32.totalorder %v275, %v272
    %vm277 = vcmp.le.s32.totalorder %v275, %v273
    %v278 = vsel %vm276, 0.0, -1e+09
    %v279 = vsel %vm277, 0.0, -1e+09
    %v280 = vld [vmem:[#allocation7] sm:$0x1]
    %v281 = vld [vmem:[#allocation7 + $0x1] sm:$0x1]
    %v284 = vperm.slane %v280, 0
    %v285 = vperm.slane %v281, 0
    %v288 = vadd.f32 %v278, %v284
    %v289 = vadd.f32 %v279, %v284
    %v290 = vadd.f32 %v278, %v285
    %v291 = vadd.f32 %v279, %v285
    %v292 = vld [vmem:[#allocation8] sm:$0x1]
    %v293 = vld [vmem:[#allocation8 + $0x1] sm:$0x1]
    %v294 = vld [vmem:[#allocation10] sm:$0xff]
    %v295 = vld [vmem:[#allocation10 + $0x8] sm:$0xff]
    %v296 = vld [vmem:[#allocation10 + $0x10] sm:$0xff]
    %v297 = vld [vmem:[#allocation10 + $0x18] sm:$0xff]
    %v298 = vld [vmem:[#allocation10 + $0x20] sm:$0xff]
    %v299 = vld [vmem:[#allocation10 + $0x28] sm:$0xff]
    %v300 = vld [vmem:[#allocation10 + $0x30] sm:$0xff]
    %v301 = vld [vmem:[#allocation10 + $0x38] sm:$0xff]
    %v302 = vld [vmem:[#allocation10 + $0x40] sm:$0xff]
    %v303 = vld [vmem:[#allocation10 + $0x48] sm:$0xff]
    %v304 = vld [vmem:[#allocation10 + $0x50] sm:$0xff]
    %v305 = vld [vmem:[#allocation10 + $0x58] sm:$0xff]
    %v306 = vld [vmem:[#allocation10 + $0x60] sm:$0xff]
    %v307 = vld [vmem:[#allocation10 + $0x68] sm:$0xff]
    %v308 = vld [vmem:[#allocation10 + $0x70] sm:$0xff]
    %v309 = vld [vmem:[#allocation10 + $0x78] sm:$0xff]
    %v310 = vld [vmem:[#allocation10 + $0x80] sm:$0xff]
    %v311 = vld [vmem:[#allocation10 + $0x88] sm:$0xff]
    %v312 = vld [vmem:[#allocation10 + $0x90] sm:$0xff]
    %v313 = vld [vmem:[#allocation10 + $0x98] sm:$0xff]
    %v314 = vld [vmem:[#allocation10 + $0xa0] sm:$0xff]
    %v315 = vld [vmem:[#allocation10 + $0xa8] sm:$0xff]
    %v316 = vld [vmem:[#allocation10 + $0xb0] sm:$0xff]
    %v317 = vld [vmem:[#allocation10 + $0xb8] sm:$0xff]
    %v318 = vld [vmem:[#allocation10 + $0xc0] sm:$0xff]
    %v319 = vld [vmem:[#allocation10 + $0xc8] sm:$0xff]
    %v320 = vld [vmem:[#allocation10 + $0xd0] sm:$0xff]
    %v321 = vld [vmem:[#allocation10 + $0xd8] sm:$0xff]
    %v322 = vld [vmem:[#allocation10 + $0xe0] sm:$0xff]
    %v323 = vld [vmem:[#allocation10 + $0xe8] sm:$0xff]
    %v324 = vld [vmem:[#allocation10 + $0xf0] sm:$0xff]
    %v325 = vld [vmem:[#allocation10 + $0xf8] sm:$0xff]
    %v326 = vld [vmem:[#allocation10 + $0x100] sm:$0xff]
    %v327 = vld [vmem:[#allocation10 + $0x108] sm:$0xff]
    %v328 = vld [vmem:[#allocation10 + $0x110] sm:$0xff]
    %v329 = vld [vmem:[#allocation10 + $0x118] sm:$0xff]
    %v330 = vld [vmem:[#allocation10 + $0x120] sm:$0xff]
    %v331 = vld [vmem:[#allocation10 + $0x128] sm:$0xff]
    %v332 = vld [vmem:[#allocation10 + $0x130] sm:$0xff]
    %v333 = vld [vmem:[#allocation10 + $0x138] sm:$0xff]
    %v334 = vld [vmem:[#allocation10 + $0x140] sm:$0xff]
    %v335 = vld [vmem:[#allocation10 + $0x148] sm:$0xff]
    %v336 = vld [vmem:[#allocation10 + $0x150] sm:$0xff]
    %v337 = vld [vmem:[#allocation10 + $0x158] sm:$0xff]
    %v338 = vld [vmem:[#allocation10 + $0x160] sm:$0xff]
    %v339 = vld [vmem:[#allocation10 + $0x168] sm:$0xff]
    %v340 = vld [vmem:[#allocation10 + $0x170] sm:$0xff]
    %v341 = vld [vmem:[#allocation10 + $0x178] sm:$0xff]
    %v342 = vld [vmem:[%s5] sm:$0x7]
    %v344 = vperm.slane %v342, 0
    %v345 = vperm.slane %v342, 1
    %v346 = vperm.slane %v342, 2
    %350 = vmatpush.msra.mxu0 %v339
    %351 = vmatpush.msra.mxu0 %v336
    %352 = vmatpush.msra.mxu0 %v333
    %353 = vmatpush.msra.mxu0 %v330
    %354 = vmatpush.msra.mxu0 %v327
    %355 = vmatpush.msra.mxu0 %v324
    %356 = vmatpush.msra.mxu0 %v321
    %357 = vmatpush.msra.mxu0 %v318
    %358 = vmatpush.msra.mxu0 %v315
    %359 = vmatpush.msra.mxu0 %v312
    %360 = vmatpush.msra.mxu0 %v309
    %361 = vmatpush.msra.mxu0 %v306
    %362 = vmatpush.msra.mxu0 %v303
    %363 = vmatpush.msra.mxu0 %v300
    %364 = vmatpush.msra.mxu0 %v297
    %365 = vmatpush.msra.mxu0 %v294
    %366 = vmatmul.f32.gmra.mxu0 %v263
    %v367 = vpop.f32.mrf.mxu0
    %v368 = vadd.f32 %v344, %v367
    %369 = vmatmul.f32.gmra.mxu0 %v264
    %v370 = vpop.f32.mrf.mxu0
    %v371 = vadd.f32 %v344, %v370
    %372 = vmatmul.f32.gmra.mxu0 %v265
    %v373 = vpop.f32.mrf.mxu0
    %v374 = vadd.f32 %v344, %v373
    %375 = vmatmul.f32.gmra.mxu0 %v266
    %v376 = vpop.f32.mrf.mxu0
    %v377 = vadd.f32 %v344, %v376
    %378 = vdwg.mxu0
    %379 = vmatpush.msra.mxu0 %v340
    %380 = vmatpush.msra.mxu0 %v337
    %381 = vmatpush.msra.mxu0 %v334
    %382 = vmatpush.msra.mxu0 %v331
    %383 = vmatpush.msra.mxu0 %v328
    %384 = vmatpush.msra.mxu0 %v325
    %385 = vmatpush.msra.mxu0 %v322
    %386 = vmatpush.msra.mxu0 %v319
    %387 = vmatpush.msra.mxu0 %v316
    %388 = vmatpush.msra.mxu0 %v313
    %389 = vmatpush.msra.mxu0 %v310
    %390 = vmatpush.msra.mxu0 %v307
    %391 = vmatpush.msra.mxu0 %v304
    %392 = vmatpush.msra.mxu0 %v301
    %393 = vmatpush.msra.mxu0 %v298
    %394 = vmatpush.msra.mxu0 %v295
    %395 = vmatmul.f32.gmra.mxu0 %v263
    %v396 = vpop.f32.mrf.mxu0
    %v397 = vadd.f32 %v345, %v396
    %398 = vmatmul.f32.gmra.mxu0 %v264
    %v399 = vpop.f32.mrf.mxu0
    %v400 = vadd.f32 %v345, %v399
    %401 = vmatmul.f32.gmra.mxu0 %v265
    %v402 = vpop.f32.mrf.mxu0
    %v403 = vadd.f32 %v345, %v402
    %404 = vmatmul.f32.gmra.mxu0 %v266
    %v405 = vpop.f32.mrf.mxu0
    %v406 = vadd.f32 %v345, %v405
    %407 = vdwg.mxu0
    %408 = vmatpush.msra.mxu0 %v341
    %409 = vmatpush.msra.mxu0 %v338
    %410 = vmatpush.msra.mxu0 %v335
    %411 = vmatpush.msra.mxu0 %v332
    %412 = vmatpush.msra.mxu0 %v329
    %413 = vmatpush.msra.mxu0 %v326
    %414 = vmatpush.msra.mxu0 %v323
    %415 = vmatpush.msra.mxu0 %v320
    %416 = vmatpush.msra.mxu0 %v317
    %417 = vmatpush.msra.mxu0 %v314
    %418 = vmatpush.msra.mxu0 %v311
    %419 = vmatpush.msra.mxu0 %v308
    %420 = vmatpush.msra.mxu0 %v305
    %421 = vmatpush.msra.mxu0 %v302
    %422 = vmatpush.msra.mxu0 %v299
    %423 = vmatpush.msra.mxu0 %v296
    %424 = vmatmul.f32.gmra.mxu0 %v263
    %v425 = vpop.f32.mrf.mxu0
    %v426 = vadd.f32 %v346, %v425
    %427 = vmatmul.f32.gmra.mxu0 %v264
    %v428 = vpop.f32.mrf.mxu0
    %v429 = vadd.f32 %v346, %v428
    %430 = vmatmul.f32.gmra.mxu0 %v265
    %v431 = vpop.f32.mrf.mxu0
    %v432 = vadd.f32 %v346, %v431
    %433 = vmatmul.f32.gmra.mxu0 %v266
    %v434 = vpop.f32.mrf.mxu0
    %v435 = vadd.f32 %v346, %v434
    %436 = vdwg.mxu0
    %v437 = vld [vmem:[#allocation11] sm:$0xff]
    %v438 = vld [vmem:[#allocation11 + $0x8] sm:$0xff]
    %v439 = vld [vmem:[#allocation11 + $0x10] sm:$0xff]
    %v440 = vld [vmem:[#allocation11 + $0x18] sm:$0xff]
    %v441 = vld [vmem:[#allocation11 + $0x20] sm:$0xff]
    %v442 = vld [vmem:[#allocation11 + $0x28] sm:$0xff]
    %v443 = vld [vmem:[#allocation11 + $0x30] sm:$0xff]
    %v444 = vld [vmem:[#allocation11 + $0x38] sm:$0xff]
    %v445 = vld [vmem:[#allocation11 + $0x40] sm:$0xff]
    %v446 = vld [vmem:[#allocation11 + $0x48] sm:$0xff]
    %v447 = vld [vmem:[#allocation11 + $0x50] sm:$0xff]
    %v448 = vld [vmem:[#allocation11 + $0x58] sm:$0xff]
    %v449 = vld [vmem:[#allocation11 + $0x60] sm:$0xff]
    %v450 = vld [vmem:[#allocation11 + $0x68] sm:$0xff]
    %v451 = vld [vmem:[#allocation11 + $0x70] sm:$0xff]
    %v452 = vld [vmem:[#allocation11 + $0x78] sm:$0xff]
    %v453 = vld [vmem:[#allocation13] sm:$0x1]
    %458 = vrot.lane.b32.xlu0 %v368, 96
    %v459 = vpop.permute.xlu0 %458
    %460 = vrot.lane.b32.xlu0 %v371, 96
    %v461 = vpop.permute.xlu0 %460
    %462 = vrot.lane.b32.xlu0 %v374, 96
    %v463 = vpop.permute.xlu0 %462
    %464 = vrot.lane.b32.xlu0 %v377, 96
    %v465 = vpop.permute.xlu0 %464
    %470 = vrot.lane.b32.xlu0 %v368, 64
    %v471 = vpop.permute.xlu0 %470
    %472 = vrot.lane.b32.xlu0 %v371, 64
    %v473 = vpop.permute.xlu0 %472
    %474 = vrot.lane.b32.xlu0 %v374, 64
    %v475 = vpop.permute.xlu0 %474
    %476 = vrot.lane.b32.xlu0 %v377, 64
    %v477 = vpop.permute.xlu0 %476
    %482 = vrot.lane.b32.xlu0 %v368, 32
    %v483 = vpop.permute.xlu0 %482
    %484 = vrot.lane.b32.xlu0 %v371, 32
    %v485 = vpop.permute.xlu0 %484
    %486 = vrot.lane.b32.xlu0 %v374, 32
    %v487 = vpop.permute.xlu0 %486
    %488 = vrot.lane.b32.xlu0 %v377, 32
    %v489 = vpop.permute.xlu0 %488
    %v494 = vrot.slane %v471, 4
    %vm495 = vcmask 1047556
    %v496 = vsel %vm495, %v494, %v368
    %v497 = vrot.slane %v368, 4
    %v498 = vsel %vm495, %v471, %v497
    %v500 = vunpack.c.l.s4 1983009808
    %v501 = vunpack.c.0.s8 %v500
    %v502 = vperm.slane %v496, %v501
    %v504 = vunpack.c.l.s4 1983009808
    %v505 = vunpack.c.0.s8 %v504
    %v506 = vperm.slane %v498, %v505
    %v507 = vrot.slane %v483, 4
    %v508 = vsel %vm495, %v507, %v459
    %v509 = vrot.slane %v459, 4
    %v510 = vsel %vm495, %v483, %v509
    %v512 = vunpack.c.l.s4 1983009808
    %v513 = vunpack.c.0.s8 %v512
    %v514 = vperm.slane %v508, %v513
    %v516 = vunpack.c.l.s4 1983009808
    %v517 = vunpack.c.0.s8 %v516
    %v518 = vperm.slane %v510, %v517
    %v519 = vrot.slane %v514, 4
    %v520 = vsel %vm495, %v519, %v502
    %v521 = vrot.slane %v502, 4
    %v522 = vsel %vm495, %v514, %v521
    %v524 = vunpack.c.l.s4 1934713408
    %v525 = vunpack.c.0.s8 %v524
    %v526 = vperm.slane %v520, %v525
    %v528 = vunpack.c.l.s4 1934713408
    %v529 = vunpack.c.0.s8 %v528
    %v530 = vperm.slane %v522, %v529
    %v531 = vrot.slane %v518, 4
    %v532 = vsel %vm495, %v531, %v506
    %v533 = vrot.slane %v506, 4
    %v534 = vsel %vm495, %v518, %v533
    %v536 = vunpack.c.l.s4 1934713408
    %v537 = vunpack.c.0.s8 %v536
    %v538 = vperm.slane %v532, %v537
    %v540 = vunpack.c.l.s4 1934713408
    %v541 = vunpack.c.0.s8 %v540
    %v542 = vperm.slane %v534, %v541
    %v543 = vrot.slane %v526, 4
    %v544 = vsel %vm495, 0.0, %v543
    %v545 = vrot.slane %v530, 4
    %v546 = vsel %vm495, 0.0, %v545
    %v547 = vrot.slane %v538, 4
    %v548 = vsel %vm495, 0.0, %v547
    %v549 = vrot.slane %v542, 4
    %v550 = vsel %vm495, 0.0, %v549
    %v551 = vrot.slane %v473, 4
    %v552 = vsel %vm495, %v551, %v371
    %v553 = vrot.slane %v371, 4
    %v554 = vsel %vm495, %v473, %v553
    %v556 = vunpack.c.l.s4 1983009808
    %v557 = vunpack.c.0.s8 %v556
    %v558 = vperm.slane %v552, %v557
    %v560 = vunpack.c.l.s4 1983009808
    %v561 = vunpack.c.0.s8 %v560
    %v562 = vperm.slane %v554, %v561
    %v563 = vrot.slane %v485, 4
    %v564 = vsel %vm495, %v563, %v461
    %v565 = vrot.slane %v461, 4
    %v566 = vsel %vm495, %v485, %v565
    %v568 = vunpack.c.l.s4 1983009808
    %v569 = vunpack.c.0.s8 %v568
    %v570 = vperm.slane %v564, %v569
    %v572 = vunpack.c.l.s4 1983009808
    %v573 = vunpack.c.0.s8 %v572
    %v574 = vperm.slane %v566, %v573
    %v575 = vrot.slane %v570, 4
    %v576 = vsel %vm495, %v575, %v558
    %v577 = vrot.slane %v558, 4
    %v578 = vsel %vm495, %v570, %v577
    %v580 = vunpack.c.l.s4 1934713408
    %v581 = vunpack.c.0.s8 %v580
    %v582 = vperm.slane %v576, %v581
    %v584 = vunpack.c.l.s4 1934713408
    %v585 = vunpack.c.0.s8 %v584
    %v586 = vperm.slane %v578, %v585
    %v587 = vrot.slane %v574, 4
    %v588 = vsel %vm495, %v587, %v562
    %v589 = vrot.slane %v562, 4
    %v590 = vsel %vm495, %v574, %v589
    %v592 = vunpack.c.l.s4 1934713408
    %v593 = vunpack.c.0.s8 %v592
    %v594 = vperm.slane %v588, %v593
    %v596 = vunpack.c.l.s4 1934713408
    %v597 = vunpack.c.0.s8 %v596
    %v598 = vperm.slane %v590, %v597
    %v599 = vrot.slane %v582, 4
    %v600 = vsel %vm495, 0.0, %v599
    %v601 = vrot.slane %v586, 4
    %v602 = vsel %vm495, 0.0, %v601
    %v603 = vrot.slane %v594, 4
    %v604 = vsel %vm495, 0.0, %v603
    %v605 = vrot.slane %v598, 4
    %v606 = vsel %vm495, 0.0, %v605
    %v607 = vrot.slane %v475, 4
    %v608 = vsel %vm495, %v607, %v374
    %v609 = vrot.slane %v374, 4
    %v610 = vsel %vm495, %v475, %v609
    %v612 = vunpack.c.l.s4 1983009808
    %v613 = vunpack.c.0.s8 %v612
    %v614 = vperm.slane %v608, %v613
    %v616 = vunpack.c.l.s4 1983009808
    %v617 = vunpack.c.0.s8 %v616
    %v618 = vperm.slane %v610, %v617
    %v619 = vrot.slane %v487, 4
    %v620 = vsel %vm495, %v619, %v463
    %v621 = vrot.slane %v463, 4
    %v622 = vsel %vm495, %v487, %v621
    %v624 = vunpack.c.l.s4 1983009808
    %v625 = vunpack.c.0.s8 %v624
    %v626 = vperm.slane %v620, %v625
    %v628 = vunpack.c.l.s4 1983009808
    %v629 = vunpack.c.0.s8 %v628
    %v630 = vperm.slane %v622, %v629
    %v631 = vrot.slane %v626, 4
    %v632 = vsel %vm495, %v631, %v614
    %v633 = vrot.slane %v614, 4
    %v634 = vsel %vm495, %v626, %v633
    %v636 = vunpack.c.l.s4 1934713408
    %v637 = vunpack.c.0.s8 %v636
    %v638 = vperm.slane %v632, %v637
    %v640 = vunpack.c.l.s4 1934713408
    %v641 = vunpack.c.0.s8 %v640
    %v642 = vperm.slane %v634, %v641
    %v643 = vrot.slane %v630, 4
    %v644 = vsel %vm495, %v643, %v618
    %v645 = vrot.slane %v618, 4
    %v646 = vsel %vm495, %v630, %v645
    %v648 = vunpack.c.l.s4 1934713408
    %v649 = vunpack.c.0.s8 %v648
    %v650 = vperm.slane %v644, %v649
    %v652 = vunpack.c.l.s4 1934713408
    %v653 = vunpack.c.0.s8 %v652
    %v654 = vperm.slane %v646, %v653
    %v655 = vrot.slane %v638, 4
    %v656 = vsel %vm495, 0.0, %v655
    %v657 = vrot.slane %v642, 4
    %v658 = vsel %vm495, 0.0, %v657
    %v659 = vrot.slane %v650, 4
    %v660 = vsel %vm495, 0.0, %v659
    %v661 = vrot.slane %v654, 4
    %v662 = vsel %vm495, 0.0, %v661
    %v663 = vrot.slane %v477, 4
    %v664 = vsel %vm495, %v663, %v377
    %v665 = vrot.slane %v377, 4
    %v666 = vsel %vm495, %v477, %v665
    %v668 = vunpack.c.l.s4 1983009808
    %v669 = vunpack.c.0.s8 %v668
    %v670 = vperm.slane %v664, %v669
    %v672 = vunpack.c.l.s4 1983009808
    %v673 = vunpack.c.0.s8 %v672
    %v674 = vperm.slane %v666, %v673
    %v675 = vrot.slane %v489, 4
    %v676 = vsel %vm495, %v675, %v465
    %v677 = vrot.slane %v465, 4
    %v678 = vsel %vm495, %v489, %v677
    %v680 = vunpack.c.l.s4 1983009808
    %v681 = vunpack.c.0.s8 %v680
    %v682 = vperm.slane %v676, %v681
    %v684 = vunpack.c.l.s4 1983009808
    %v685 = vunpack.c.0.s8 %v684
    %v686 = vperm.slane %v678, %v685
    %v687 = vrot.slane %v682, 4
    %v688 = vsel %vm495, %v687, %v670
    %v689 = vrot.slane %v670, 4
    %v690 = vsel %vm495, %v682, %v689
    %v692 = vunpack.c.l.s4 1934713408
    %v693 = vunpack.c.0.s8 %v692
    %v694 = vperm.slane %v688, %v693
    %v696 = vunpack.c.l.s4 1934713408
    %v697 = vunpack.c.0.s8 %v696
    %v698 = vperm.slane %v690, %v697
    %v699 = vrot.slane %v686, 4
    %v700 = vsel %vm495, %v699, %v674
    %v701 = vrot.slane %v674, 4
    %v702 = vsel %vm495, %v686, %v701
    %v704 = vunpack.c.l.s4 1934713408
    %v705 = vunpack.c.0.s8 %v704
    %v706 = vperm.slane %v700, %v705
    %v708 = vunpack.c.l.s4 1934713408
    %v709 = vunpack.c.0.s8 %v708
    %v710 = vperm.slane %v702, %v709
    %v711 = vrot.slane %v694, 4
    %v712 = vsel %vm495, 0.0, %v711
    %v713 = vrot.slane %v698, 4
    %v714 = vsel %vm495, 0.0, %v713
    %v715 = vrot.slane %v706, 4
    %v716 = vsel %vm495, 0.0, %v715
    %v717 = vrot.slane %v710, 4
    %v718 = vsel %vm495, 0.0, %v717
    %v719 = vsel %vm495, %v545, %v526
    %v721 = vunpack.c.l.s4 1983009808
    %v722 = vunpack.c.0.s8 %v721
    %v723 = vperm.slane %v719, %v722
    %v724 = vrot.slane %v546, 4
    %v725 = vsel %vm495, %v724, %v544
    %v727 = vunpack.c.l.s4 1983009808
    %v728 = vunpack.c.0.s8 %v727
    %v729 = vperm.slane %v725, %v728
    %v730 = vsel %vm495, %v549, %v538
    %v732 = vunpack.c.l.s4 1983009808
    %v733 = vunpack.c.0.s8 %v732
    %v734 = vperm.slane %v730, %v733
    %v735 = vrot.slane %v550, 4
    %v736 = vsel %vm495, %v735, %v548
    %v738 = vunpack.c.l.s4 1983009808
    %v739 = vunpack.c.0.s8 %v738
    %v740 = vperm.slane %v736, %v739
    %v741 = vrot.slane %v729, 4
    %v742 = vsel %vm495, %v741, %v723
    %v743 = vrot.slane %v723, 4
    %v744 = vsel %vm495, %v729, %v743
    %v746 = vunpack.c.l.s4 1934713408
    %v747 = vunpack.c.0.s8 %v746
    %v748 = vperm.slane %v742, %v747
    %v750 = vunpack.c.l.s4 1934713408
    %v751 = vunpack.c.0.s8 %v750
    %v752 = vperm.slane %v744, %v751
    %v753 = vrot.slane %v740, 4
    %v754 = vsel %vm495, %v753, %v734
    %v755 = vrot.slane %v734, 4
    %v756 = vsel %vm495, %v740, %v755
    %v758 = vunpack.c.l.s4 1934713408
    %v759 = vunpack.c.0.s8 %v758
    %v760 = vperm.slane %v754, %v759
    %v762 = vunpack.c.l.s4 1934713408
    %v763 = vunpack.c.0.s8 %v762
    %v764 = vperm.slane %v756, %v763
    %v765 = vrot.slane %v760, 4
    %v766 = vsel %vm495, %v765, %v748
    %v767 = vrot.slane %v748, 4
    %v768 = vsel %vm495, %v760, %v767
    %v769 = vrot.slane %v764, 4
    %v770 = vsel %vm495, %v769, %v752
    %v771 = vrot.slane %v752, 4
    %v772 = vsel %vm495, %v764, %v771
    %v773 = vsel %vm495, %v601, %v582
    %v775 = vunpack.c.l.s4 1983009808
    %v776 = vunpack.c.0.s8 %v775
    %v777 = vperm.slane %v773, %v776
    %v778 = vrot.slane %v602, 4
    %v779 = vsel %vm495, %v778, %v600
    %v781 = vunpack.c.l.s4 1983009808
    %v782 = vunpack.c.0.s8 %v781
    %v783 = vperm.slane %v779, %v782
    %v784 = vsel %vm495, %v605, %v594
    %v786 = vunpack.c.l.s4 1983009808
    %v787 = vunpack.c.0.s8 %v786
    %v788 = vperm.slane %v784, %v787
    %v789 = vrot.slane %v606, 4
    %v790 = vsel %vm495, %v789, %v604
    %v792 = vunpack.c.l.s4 1983009808
    %v793 = vunpack.c.0.s8 %v792
    %v794 = vperm.slane %v790, %v793
    %v795 = vrot.slane %v783, 4
    %v796 = vsel %vm495, %v795, %v777
    %v797 = vrot.slane %v777, 4
    %v798 = vsel %vm495, %v783, %v797
    %v800 = vunpack.c.l.s4 1934713408
    %v801 = vunpack.c.0.s8 %v800
    %v802 = vperm.slane %v796, %v801
    %v804 = vunpack.c.l.s4 1934713408
    %v805 = vunpack.c.0.s8 %v804
    %v806 = vperm.slane %v798, %v805
    %v807 = vrot.slane %v794, 4
    %v808 = vsel %vm495, %v807, %v788
    %v809 = vrot.slane %v788, 4
    %v810 = vsel %vm495, %v794, %v809
    %v812 = vunpack.c.l.s4 1934713408
    %v813 = vunpack.c.0.s8 %v812
    %v814 = vperm.slane %v808, %v813
    %v816 = vunpack.c.l.s4 1934713408
    %v817 = vunpack.c.0.s8 %v816
    %v818 = vperm.slane %v810, %v817
    %v819 = vrot.slane %v814, 4
    %v820 = vsel %vm495, %v819, %v802
    %v821 = vrot.slane %v802, 4
    %v822 = vsel %vm495, %v814, %v821
    %v823 = vrot.slane %v818, 4
    %v824 = vsel %vm495, %v823, %v806
    %v825 = vrot.slane %v806, 4
    %v826 = vsel %vm495, %v818, %v825
    %v827 = vsel %vm495, %v657, %v638
    %v829 = vunpack.c.l.s4 1983009808
    %v830 = vunpack.c.0.s8 %v829
    %v831 = vperm.slane %v827, %v830
    %v832 = vrot.slane %v658, 4
    %v833 = vsel %vm495, %v832, %v656
    %v835 = vunpack.c.l.s4 1983009808
    %v836 = vunpack.c.0.s8 %v835
    %v837 = vperm.slane %v833, %v836
    %v838 = vsel %vm495, %v661, %v650
    %v840 = vunpack.c.l.s4 1983009808
    %v841 = vunpack.c.0.s8 %v840
    %v842 = vperm.slane %v838, %v841
    %v843 = vrot.slane %v662, 4
    %v844 = vsel %vm495, %v843, %v660
    %v846 = vunpack.c.l.s4 1983009808
    %v847 = vunpack.c.0.s8 %v846
    %v848 = vperm.slane %v844, %v847
    %v849 = vrot.slane %v837, 4
    %v850 = vsel %vm495, %v849, %v831
    %v851 = vrot.slane %v831, 4
    %v852 = vsel %vm495, %v837, %v851
    %v854 = vunpack.c.l.s4 1934713408
    %v855 = vunpack.c.0.s8 %v854
    %v856 = vperm.slane %v850, %v855
    %v858 = vunpack.c.l.s4 1934713408
    %v859 = vunpack.c.0.s8 %v858
    %v860 = vperm.slane %v852, %v859
    %v861 = vrot.slane %v848, 4
    %v862 = vsel %vm495, %v861, %v842
    %v863 = vrot.slane %v842, 4
    %v864 = vsel %vm495, %v848, %v863
    %v866 = vunpack.c.l.s4 1934713408
    %v867 = vunpack.c.0.s8 %v866
    %v868 = vperm.slane %v862, %v867
    %v870 = vunpack.c.l.s4 1934713408
    %v871 = vunpack.c.0.s8 %v870
    %v872 = vperm.slane %v864, %v871
    %v873 = vrot.slane %v868, 4
    %v874 = vsel %vm495, %v873, %v856
    %v875 = vrot.slane %v856, 4
    %v876 = vsel %vm495, %v868, %v875
    %v877 = vrot.slane %v872, 4
    %v878 = vsel %vm495, %v877, %v860
    %v879 = vrot.slane %v860, 4
    %v880 = vsel %vm495, %v872, %v879
    %v881 = vsel %vm495, %v713, %v694
    %v883 = vunpack.c.l.s4 1983009808
    %v884 = vunpack.c.0.s8 %v883
    %v885 = vperm.slane %v881, %v884
    %v886 = vrot.slane %v714, 4
    %v887 = vsel %vm495, %v886, %v712
    %v889 = vunpack.c.l.s4 1983009808
    %v890 = vunpack.c.0.s8 %v889
    %v891 = vperm.slane %v887, %v890
    %v892 = vsel %vm495, %v717, %v706
    %v894 = vunpack.c.l.s4 1983009808
    %v895 = vunpack.c.0.s8 %v894
    %v896 = vperm.slane %v892, %v895
    %v897 = vrot.slane %v718, 4
    %v898 = vsel %vm495, %v897, %v716
    %v900 = vunpack.c.l.s4 1983009808
    %v901 = vunpack.c.0.s8 %v900
    %v902 = vperm.slane %v898, %v901
    %v903 = vrot.slane %v891, 4
    %v904 = vsel %vm495, %v903, %v885
    %v905 = vrot.slane %v885, 4
    %v906 = vsel %vm495, %v891, %v905
    %v908 = vunpack.c.l.s4 1934713408
    %v909 = vunpack.c.0.s8 %v908
    %v910 = vperm.slane %v904, %v909
    %v912 = vunpack.c.l.s4 1934713408
    %v913 = vunpack.c.0.s8 %v912
    %v914 = vperm.slane %v906, %v913
    %v915 = vrot.slane %v902, 4
    %v916 = vsel %vm495, %v915, %v896
    %v917 = vrot.slane %v896, 4
    %v918 = vsel %vm495, %v902, %v917
    %v920 = vunpack.c.l.s4 1934713408
    %v921 = vunpack.c.0.s8 %v920
    %v922 = vperm.slane %v916, %v921
    %v924 = vunpack.c.l.s4 1934713408
    %v925 = vunpack.c.0.s8 %v924
    %v926 = vperm.slane %v918, %v925
    %v927 = vrot.slane %v922, 4
    %v928 = vsel %vm495, %v927, %v910
    %v929 = vrot.slane %v910, 4
    %v930 = vsel %vm495, %v922, %v929
    %v931 = vrot.slane %v926, 4
    %v932 = vsel %vm495, %v931, %v914
    %v933 = vrot.slane %v914, 4
    %v934 = vsel %vm495, %v926, %v933
    %939 = vrot.lane.b32.xlu0 %v397, 96
    %v940 = vpop.permute.xlu0 %939
    %941 = vrot.lane.b32.xlu0 %v400, 96
    %v942 = vpop.permute.xlu0 %941
    %943 = vrot.lane.b32.xlu0 %v403, 96
    %v944 = vpop.permute.xlu0 %943
    %945 = vrot.lane.b32.xlu0 %v406, 96
    %v946 = vpop.permute.xlu0 %945
    %951 = vrot.lane.b32.xlu0 %v397, 64
    %v952 = vpop.permute.xlu0 %951
    %953 = vrot.lane.b32.xlu0 %v400, 64
    %v954 = vpop.permute.xlu0 %953
    %955 = vrot.lane.b32.xlu0 %v403, 64
    %v956 = vpop.permute.xlu0 %955
    %957 = vrot.lane.b32.xlu0 %v406, 64
    %v958 = vpop.permute.xlu0 %957
    %963 = vrot.lane.b32.xlu0 %v397, 32
    %v964 = vpop.permute.xlu0 %963
    %965 = vrot.lane.b32.xlu0 %v400, 32
    %v966 = vpop.permute.xlu0 %965
    %967 = vrot.lane.b32.xlu0 %v403, 32
    %v968 = vpop.permute.xlu0 %967
    %969 = vrot.lane.b32.xlu0 %v406, 32
    %v970 = vpop.permute.xlu0 %969
    %v975 = vrot.slane %v952, 4
    %v976 = vsel %vm495, %v975, %v397
    %v977 = vrot.slane %v397, 4
    %v978 = vsel %vm495, %v952, %v977
    %v980 = vunpack.c.l.s4 1983009808
    %v981 = vunpack.c.0.s8 %v980
    %v982 = vperm.slane %v976, %v981
    %v984 = vunpack.c.l.s4 1983009808
    %v985 = vunpack.c.0.s8 %v984
    %v986 = vperm.slane %v978, %v985
    %v987 = vrot.slane %v964, 4
    %v988 = vsel %vm495, %v987, %v940
    %v989 = vrot.slane %v940, 4
    %v990 = vsel %vm495, %v964, %v989
    %v992 = vunpack.c.l.s4 1983009808
    %v993 = vunpack.c.0.s8 %v992
    %v994 = vperm.slane %v988, %v993
    %v996 = vunpack.c.l.s4 1983009808
    %v997 = vunpack.c.0.s8 %v996
    %v998 = vperm.slane %v990, %v997
    %v999 = vrot.slane %v994, 4
    %v1000 = vsel %vm495, %v999, %v982
    %v1001 = vrot.slane %v982, 4
    %v1002 = vsel %vm495, %v994, %v1001
    %v1004 = vunpack.c.l.s4 1934713408
    %v1005 = vunpack.c.0.s8 %v1004
    %v1006 = vperm.slane %v1000, %v1005
    %v1008 = vunpack.c.l.s4 1934713408
    %v1009 = vunpack.c.0.s8 %v1008
    %v1010 = vperm.slane %v1002, %v1009
    %v1011 = vrot.slane %v998, 4
    %v1012 = vsel %vm495, %v1011, %v986
    %v1013 = vrot.slane %v986, 4
    %v1014 = vsel %vm495, %v998, %v1013
    %v1016 = vunpack.c.l.s4 1934713408
    %v1017 = vunpack.c.0.s8 %v1016
    %v1018 = vperm.slane %v1012, %v1017
    %v1020 = vunpack.c.l.s4 1934713408
    %v1021 = vunpack.c.0.s8 %v1020
    %v1022 = vperm.slane %v1014, %v1021
    %v1023 = vrot.slane %v1006, 4
    %v1024 = vsel %vm495, 0.0, %v1023
    %v1025 = vrot.slane %v1010, 4
    %v1026 = vsel %vm495, 0.0, %v1025
    %v1027 = vrot.slane %v1018, 4
    %v1028 = vsel %vm495, 0.0, %v1027
    %v1029 = vrot.slane %v1022, 4
    %v1030 = vsel %vm495, 0.0, %v1029
    %v1031 = vrot.slane %v954, 4
    %v1032 = vsel %vm495, %v1031, %v400
    %v1033 = vrot.slane %v400, 4
    %v1034 = vsel %vm495, %v954, %v1033
    %v1036 = vunpack.c.l.s4 1983009808
    %v1037 = vunpack.c.0.s8 %v1036
    %v1038 = vperm.slane %v1032, %v1037
    %v1040 = vunpack.c.l.s4 1983009808
    %v1041 = vunpack.c.0.s8 %v1040
    %v1042 = vperm.slane %v1034, %v1041
    %v1043 = vrot.slane %v966, 4
    %v1044 = vsel %vm495, %v1043, %v942
    %v1045 = vrot.slane %v942, 4
    %v1046 = vsel %vm495, %v966, %v1045
    %v1048 = vunpack.c.l.s4 1983009808
    %v1049 = vunpack.c.0.s8 %v1048
    %v1050 = vperm.slane %v1044, %v1049
    %v1052 = vunpack.c.l.s4 1983009808
    %v1053 = vunpack.c.0.s8 %v1052
    %v1054 = vperm.slane %v1046, %v1053
    %v1055 = vrot.slane %v1050, 4
    %v1056 = vsel %vm495, %v1055, %v1038
    %v1057 = vrot.slane %v1038, 4
    %v1058 = vsel %vm495, %v1050, %v1057
    %v1060 = vunpack.c.l.s4 1934713408
    %v1061 = vunpack.c.0.s8 %v1060
    %v1062 = vperm.slane %v1056, %v1061
    %v1064 = vunpack.c.l.s4 1934713408
    %v1065 = vunpack.c.0.s8 %v1064
    %v1066 = vperm.slane %v1058, %v1065
    %v1067 = vrot.slane %v1054, 4
    %v1068 = vsel %vm495, %v1067, %v1042
    %v1069 = vrot.slane %v1042, 4
    %v1070 = vsel %vm495, %v1054, %v1069
    %v1072 = vunpack.c.l.s4 1934713408
    %v1073 = vunpack.c.0.s8 %v1072
    %v1074 = vperm.slane %v1068, %v1073
    %v1076 = vunpack.c.l.s4 1934713408
    %v1077 = vunpack.c.0.s8 %v1076
    %v1078 = vperm.slane %v1070, %v1077
    %v1079 = vrot.slane %v1062, 4
    %v1080 = vsel %vm495, 0.0, %v1079
    %v1081 = vrot.slane %v1066, 4
    %v1082 = vsel %vm495, 0.0, %v1081
    %v1083 = vrot.slane %v1074, 4
    %v1084 = vsel %vm495, 0.0, %v1083
    %v1085 = vrot.slane %v1078, 4
    %v1086 = vsel %vm495, 0.0, %v1085
    %v1087 = vrot.slane %v956, 4
    %v1088 = vsel %vm495, %v1087, %v403
    %v1089 = vrot.slane %v403, 4
    %v1090 = vsel %vm495, %v956, %v1089
    %v1092 = vunpack.c.l.s4 1983009808
    %v1093 = vunpack.c.0.s8 %v1092
    %v1094 = vperm.slane %v1088, %v1093
    %v1096 = vunpack.c.l.s4 1983009808
    %v1097 = vunpack.c.0.s8 %v1096
    %v1098 = vperm.slane %v1090, %v1097
    %v1099 = vrot.slane %v968, 4
    %v1100 = vsel %vm495, %v1099, %v944
    %v1101 = vrot.slane %v944, 4
    %v1102 = vsel %vm495, %v968, %v1101
    %v1104 = vunpack.c.l.s4 1983009808
    %v1105 = vunpack.c.0.s8 %v1104
    %v1106 = vperm.slane %v1100, %v1105
    %v1108 = vunpack.c.l.s4 1983009808
    %v1109 = vunpack.c.0.s8 %v1108
    %v1110 = vperm.slane %v1102, %v1109
    %v1111 = vrot.slane %v1106, 4
    %v1112 = vsel %vm495, %v1111, %v1094
    %v1113 = vrot.slane %v1094, 4
    %v1114 = vsel %vm495, %v1106, %v1113
    %v1116 = vunpack.c.l.s4 1934713408
    %v1117 = vunpack.c.0.s8 %v1116
    %v1118 = vperm.slane %v1112, %v1117
    %v1120 = vunpack.c.l.s4 1934713408
    %v1121 = vunpack.c.0.s8 %v1120
    %v1122 = vperm.slane %v1114, %v1121
    %v1123 = vrot.slane %v1110, 4
    %v1124 = vsel %vm495, %v1123, %v1098
    %v1125 = vrot.slane %v1098, 4
    %v1126 = vsel %vm495, %v1110, %v1125
    %v1128 = vunpack.c.l.s4 1934713408
    %v1129 = vunpack.c.0.s8 %v1128
    %v1130 = vperm.slane %v1124, %v1129
    %v1132 = vunpack.c.l.s4 1934713408
    %v1133 = vunpack.c.0.s8 %v1132
    %v1134 = vperm.slane %v1126, %v1133
    %v1135 = vrot.slane %v1118, 4
    %v1136 = vsel %vm495, 0.0, %v1135
    %v1137 = vrot.slane %v1122, 4
    %v1138 = vsel %vm495, 0.0, %v1137
    %v1139 = vrot.slane %v1130, 4
    %v1140 = vsel %vm495, 0.0, %v1139
    %v1141 = vrot.slane %v1134, 4
    %v1142 = vsel %vm495, 0.0, %v1141
    %v1143 = vrot.slane %v958, 4
    %v1144 = vsel %vm495, %v1143, %v406
    %v1145 = vrot.slane %v406, 4
    %v1146 = vsel %vm495, %v958, %v1145
    %v1148 = vunpack.c.l.s4 1983009808
    %v1149 = vunpack.c.0.s8 %v1148
    %v1150 = vperm.slane %v1144, %v1149
    %v1152 = vunpack.c.l.s4 1983009808
    %v1153 = vunpack.c.0.s8 %v1152
    %v1154 = vperm.slane %v1146, %v1153
    %v1155 = vrot.slane %v970, 4
    %v1156 = vsel %vm495, %v1155, %v946
    %v1157 = vrot.slane %v946, 4
    %v1158 = vsel %vm495, %v970, %v1157
    %v1160 = vunpack.c.l.s4 1983009808
    %v1161 = vunpack.c.0.s8 %v1160
    %v1162 = vperm.slane %v1156, %v1161
    %v1164 = vunpack.c.l.s4 1983009808
    %v1165 = vunpack.c.0.s8 %v1164
    %v1166 = vperm.slane %v1158, %v1165
    %v1167 = vrot.slane %v1162, 4
    %v1168 = vsel %vm495, %v1167, %v1150
    %v1169 = vrot.slane %v1150, 4
    %v1170 = vsel %vm495, %v1162, %v1169
    %v1172 = vunpack.c.l.s4 1934713408
    %v1173 = vunpack.c.0.s8 %v1172
    %v1174 = vperm.slane %v1168, %v1173
    %v1176 = vunpack.c.l.s4 1934713408
    %v1177 = vunpack.c.0.s8 %v1176
    %v1178 = vperm.slane %v1170, %v1177
    %v1179 = vrot.slane %v1166, 4
    %v1180 = vsel %vm495, %v1179, %v1154
    %v1181 = vrot.slane %v1154, 4
    %v1182 = vsel %vm495, %v1166, %v1181
    %v1184 = vunpack.c.l.s4 1934713408
    %v1185 = vunpack.c.0.s8 %v1184
    %v1186 = vperm.slane %v1180, %v1185
    %v1188 = vunpack.c.l.s4 1934713408
    %v1189 = vunpack.c.0.s8 %v1188
    %v1190 = vperm.slane %v1182, %v1189
    %v1191 = vrot.slane %v1174, 4
    %v1192 = vsel %vm495, 0.0, %v1191
    %v1193 = vrot.slane %v1178, 4
    %v1194 = vsel %vm495, 0.0, %v1193
    %v1195 = vrot.slane %v1186, 4
    %v1196 = vsel %vm495, 0.0, %v1195
    %v1197 = vrot.slane %v1190, 4
    %v1198 = vsel %vm495, 0.0, %v1197
    %v1199 = vsel %vm495, %v1025, %v1006
    %v1201 = vunpack.c.l.s4 1983009808
    %v1202 = vunpack.c.0.s8 %v1201
    %v1203 = vperm.slane %v1199, %v1202
    %v1204 = vrot.slane %v1026, 4
    %v1205 = vsel %vm495, %v1204, %v1024
    %v1207 = vunpack.c.l.s4 1983009808
    %v1208 = vunpack.c.0.s8 %v1207
    %v1209 = vperm.slane %v1205, %v1208
    %v1210 = vsel %vm495, %v1029, %v1018
    %v1212 = vunpack.c.l.s4 1983009808
    %v1213 = vunpack.c.0.s8 %v1212
    %v1214 = vperm.slane %v1210, %v1213
    %v1215 = vrot.slane %v1030, 4
    %v1216 = vsel %vm495, %v1215, %v1028
    %v1218 = vunpack.c.l.s4 1983009808
    %v1219 = vunpack.c.0.s8 %v1218
    %v1220 = vperm.slane %v1216, %v1219
    %v1221 = vrot.slane %v1209, 4
    %v1222 = vsel %vm495, %v1221, %v1203
    %v1223 = vrot.slane %v1203, 4
    %v1224 = vsel %vm495, %v1209, %v1223
    %v1226 = vunpack.c.l.s4 1934713408
    %v1227 = vunpack.c.0.s8 %v1226
    %v1228 = vperm.slane %v1222, %v1227
    %v1230 = vunpack.c.l.s4 1934713408
    %v1231 = vunpack.c.0.s8 %v1230
    %v1232 = vperm.slane %v1224, %v1231
    %v1233 = vrot.slane %v1220, 4
    %v1234 = vsel %vm495, %v1233, %v1214
    %v1235 = vrot.slane %v1214, 4
    %v1236 = vsel %vm495, %v1220, %v1235
    %v1238 = vunpack.c.l.s4 1934713408
    %v1239 = vunpack.c.0.s8 %v1238
    %v1240 = vperm.slane %v1234, %v1239
    %v1242 = vunpack.c.l.s4 1934713408
    %v1243 = vunpack.c.0.s8 %v1242
    %v1244 = vperm.slane %v1236, %v1243
    %v1245 = vrot.slane %v1240, 4
    %v1246 = vsel %vm495, %v1245, %v1228
    %v1247 = vrot.slane %v1228, 4
    %v1248 = vsel %vm495, %v1240, %v1247
    %v1249 = vrot.slane %v1244, 4
    %v1250 = vsel %vm495, %v1249, %v1232
    %v1251 = vrot.slane %v1232, 4
    %v1252 = vsel %vm495, %v1244, %v1251
    %v1253 = vsel %vm495, %v1081, %v1062
    %v1255 = vunpack.c.l.s4 1983009808
    %v1256 = vunpack.c.0.s8 %v1255
    %v1257 = vperm.slane %v1253, %v1256
    %v1258 = vrot.slane %v1082, 4
    %v1259 = vsel %vm495, %v1258, %v1080
    %v1261 = vunpack.c.l.s4 1983009808
    %v1262 = vunpack.c.0.s8 %v1261
    %v1263 = vperm.slane %v1259, %v1262
    %v1264 = vsel %vm495, %v1085, %v1074
    %v1266 = vunpack.c.l.s4 1983009808
    %v1267 = vunpack.c.0.s8 %v1266
    %v1268 = vperm.slane %v1264, %v1267
    %v1269 = vrot.slane %v1086, 4
    %v1270 = vsel %vm495, %v1269, %v1084
    %v1272 = vunpack.c.l.s4 1983009808
    %v1273 = vunpack.c.0.s8 %v1272
    %v1274 = vperm.slane %v1270, %v1273
    %v1275 = vrot.slane %v1263, 4
    %v1276 = vsel %vm495, %v1275, %v1257
    %v1277 = vrot.slane %v1257, 4
    %v1278 = vsel %vm495, %v1263, %v1277
    %v1280 = vunpack.c.l.s4 1934713408
    %v1281 = vunpack.c.0.s8 %v1280
    %v1282 = vperm.slane %v1276, %v1281
    %v1284 = vunpack.c.l.s4 1934713408
    %v1285 = vunpack.c.0.s8 %v1284
    %v1286 = vperm.slane %v1278, %v1285
    %v1287 = vrot.slane %v1274, 4
    %v1288 = vsel %vm495, %v1287, %v1268
    %v1289 = vrot.slane %v1268, 4
    %v1290 = vsel %vm495, %v1274, %v1289
    %v1292 = vunpack.c.l.s4 1934713408
    %v1293 = vunpack.c.0.s8 %v1292
    %v1294 = vperm.slane %v1288, %v1293
    %v1296 = vunpack.c.l.s4 1934713408
    %v1297 = vunpack.c.0.s8 %v1296
    %v1298 = vperm.slane %v1290, %v1297
    %v1299 = vrot.slane %v1294, 4
    %v1300 = vsel %vm495, %v1299, %v1282
    %v1301 = vrot.slane %v1282, 4
    %v1302 = vsel %vm495, %v1294, %v1301
    %v1303 = vrot.slane %v1298, 4
    %v1304 = vsel %vm495, %v1303, %v1286
    %v1305 = vrot.slane %v1286, 4
    %v1306 = vsel %vm495, %v1298, %v1305
    %v1307 = vsel %vm495, %v1137, %v1118
    %v1309 = vunpack.c.l.s4 1983009808
    %v1310 = vunpack.c.0.s8 %v1309
    %v1311 = vperm.slane %v1307, %v1310
    %v1312 = vrot.slane %v1138, 4
    %v1313 = vsel %vm495, %v1312, %v1136
    %v1315 = vunpack.c.l.s4 1983009808
    %v1316 = vunpack.c.0.s8 %v1315
    %v1317 = vperm.slane %v1313, %v1316
    %v1318 = vsel %vm495, %v1141, %v1130
    %v1320 = vunpack.c.l.s4 1983009808
    %v1321 = vunpack.c.0.s8 %v1320
    %v1322 = vperm.slane %v1318, %v1321
    %v1323 = vrot.slane %v1142, 4
    %v1324 = vsel %vm495, %v1323, %v1140
    %v1326 = vunpack.c.l.s4 1983009808
    %v1327 = vunpack.c.0.s8 %v1326
    %v1328 = vperm.slane %v1324, %v1327
    %v1329 = vrot.slane %v1317, 4
    %v1330 = vsel %vm495, %v1329, %v1311
    %v1331 = vrot.slane %v1311, 4
    %v1332 = vsel %vm495, %v1317, %v1331
    %v1334 = vunpack.c.l.s4 1934713408
    %v1335 = vunpack.c.0.s8 %v1334
    %v1336 = vperm.slane %v1330, %v1335
    %v1338 = vunpack.c.l.s4 1934713408
    %v1339 = vunpack.c.0.s8 %v1338
    %v1340 = vperm.slane %v1332, %v1339
    %v1341 = vrot.slane %v1328, 4
    %v1342 = vsel %vm495, %v1341, %v1322
    %v1343 = vrot.slane %v1322, 4
    %v1344 = vsel %vm495, %v1328, %v1343
    %v1346 = vunpack.c.l.s4 1934713408
    %v1347 = vunpack.c.0.s8 %v1346
    %v1348 = vperm.slane %v1342, %v1347
    %v1350 = vunpack.c.l.s4 1934713408
    %v1351 = vunpack.c.0.s8 %v1350
    %v1352 = vperm.slane %v1344, %v1351
    %v1353 = vrot.slane %v1348, 4
    %v1354 = vsel %vm495, %v1353, %v1336
    %v1355 = vrot.slane %v1336, 4
    %v1356 = vsel %vm495, %v1348, %v1355
    %v1357 = vrot.slane %v1352, 4
    %v1358 = vsel %vm495, %v1357, %v1340
    %v1359 = vrot.slane %v1340, 4
    %v1360 = vsel %vm495, %v1352, %v1359
    %v1361 = vsel %vm495, %v1193, %v1174
    %v1363 = vunpack.c.l.s4 1983009808
    %v1364 = vunpack.c.0.s8 %v1363
    %v1365 = vperm.slane %v1361, %v1364
    %v1366 = vrot.slane %v1194, 4
    %v1367 = vsel %vm495, %v1366, %v1192
    %v1369 = vunpack.c.l.s4 1983009808
    %v1370 = vunpack.c.0.s8 %v1369
    %v1371 = vperm.slane %v1367, %v1370
    %v1372 = vsel %vm495, %v1197, %v1186
    %v1374 = vunpack.c.l.s4 1983009808
    %v1375 = vunpack.c.0.s8 %v1374
    %v1376 = vperm.slane %v1372, %v1375
    %v1377 = vrot.slane %v1198, 4
    %v1378 = vsel %vm495, %v1377, %v1196
    %v1380 = vunpack.c.l.s4 1983009808
    %v1381 = vunpack.c.0.s8 %v1380
    %v1382 = vperm.slane %v1378, %v1381
    %v1383 = vrot.slane %v1371, 4
    %v1384 = vsel %vm495, %v1383, %v1365
    %v1385 = vrot.slane %v1365, 4
    %v1386 = vsel %vm495, %v1371, %v1385
    %v1388 = vunpack.c.l.s4 1934713408
    %v1389 = vunpack.c.0.s8 %v1388
    %v1390 = vperm.slane %v1384, %v1389
    %v1392 = vunpack.c.l.s4 1934713408
    %v1393 = vunpack.c.0.s8 %v1392
    %v1394 = vperm.slane %v1386, %v1393
    %v1395 = vrot.slane %v1382, 4
    %v1396 = vsel %vm495, %v1395, %v1376
    %v1397 = vrot.slane %v1376, 4
    %v1398 = vsel %vm495, %v1382, %v1397
    %v1400 = vunpack.c.l.s4 1934713408
    %v1401 = vunpack.c.0.s8 %v1400
    %v1402 = vperm.slane %v1396, %v1401
    %v1404 = vunpack.c.l.s4 1934713408
    %v1405 = vunpack.c.0.s8 %v1404
    %v1406 = vperm.slane %v1398, %v1405
    %v1407 = vrot.slane %v1402, 4
    %v1408 = vsel %vm495, %v1407, %v1390
    %v1409 = vrot.slane %v1390, 4
    %v1410 = vsel %vm495, %v1402, %v1409
    %v1411 = vrot.slane %v1406, 4
    %v1412 = vsel %vm495, %v1411, %v1394
    %v1413 = vrot.slane %v1394, 4
    %v1414 = vsel %vm495, %v1406, %v1413
    %1419 = vrot.lane.b32.xlu0 %v426, 96
    %v1420 = vpop.permute.xlu0 %1419
    %1421 = vrot.lane.b32.xlu0 %v429, 96
    %v1422 = vpop.permute.xlu0 %1421
    %1423 = vrot.lane.b32.xlu0 %v432, 96
    %v1424 = vpop.permute.xlu0 %1423
    %1425 = vrot.lane.b32.xlu0 %v435, 96
    %v1426 = vpop.permute.xlu0 %1425
    %1431 = vrot.lane.b32.xlu0 %v426, 64
    %v1432 = vpop.permute.xlu0 %1431
    %1433 = vrot.lane.b32.xlu0 %v429, 64
    %v1434 = vpop.permute.xlu0 %1433
    %1435 = vrot.lane.b32.xlu0 %v432, 64
    %v1436 = vpop.permute.xlu0 %1435
    %1437 = vrot.lane.b32.xlu0 %v435, 64
    %v1438 = vpop.permute.xlu0 %1437
    %1443 = vrot.lane.b32.xlu0 %v426, 32
    %v1444 = vpop.permute.xlu0 %1443
    %1445 = vrot.lane.b32.xlu0 %v429, 32
    %v1446 = vpop.permute.xlu0 %1445
    %1447 = vrot.lane.b32.xlu0 %v432, 32
    %v1448 = vpop.permute.xlu0 %1447
    %1449 = vrot.lane.b32.xlu0 %v435, 32
    %v1450 = vpop.permute.xlu0 %1449
    %v1455 = vrot.slane %v1432, 4
    %v1456 = vsel %vm495, %v1455, %v426
    %v1457 = vrot.slane %v426, 4
    %v1458 = vsel %vm495, %v1432, %v1457
    %v1460 = vunpack.c.l.s4 1983009808
    %v1461 = vunpack.c.0.s8 %v1460
    %v1462 = vperm.slane %v1456, %v1461
    %v1464 = vunpack.c.l.s4 1983009808
    %v1465 = vunpack.c.0.s8 %v1464
    %v1466 = vperm.slane %v1458, %v1465
    %v1467 = vrot.slane %v1444, 4
    %v1468 = vsel %vm495, %v1467, %v1420
    %v1469 = vrot.slane %v1420, 4
    %v1470 = vsel %vm495, %v1444, %v1469
    %v1472 = vunpack.c.l.s4 1983009808
    %v1473 = vunpack.c.0.s8 %v1472
    %v1474 = vperm.slane %v1468, %v1473
    %v1476 = vunpack.c.l.s4 1983009808
    %v1477 = vunpack.c.0.s8 %v1476
    %v1478 = vperm.slane %v1470, %v1477
    %v1479 = vrot.slane %v1474, 4
    %v1480 = vsel %vm495, %v1479, %v1462
    %v1481 = vrot.slane %v1462, 4
    %v1482 = vsel %vm495, %v1474, %v1481
    %v1484 = vunpack.c.l.s4 1934713408
    %v1485 = vunpack.c.0.s8 %v1484
    %v1486 = vperm.slane %v1480, %v1485
    %v1488 = vunpack.c.l.s4 1934713408
    %v1489 = vunpack.c.0.s8 %v1488
    %v1490 = vperm.slane %v1482, %v1489
    %v1491 = vrot.slane %v1478, 4
    %v1492 = vsel %vm495, %v1491, %v1466
    %v1493 = vrot.slane %v1466, 4
    %v1494 = vsel %vm495, %v1478, %v1493
    %v1496 = vunpack.c.l.s4 1934713408
    %v1497 = vunpack.c.0.s8 %v1496
    %v1498 = vperm.slane %v1492, %v1497
    %v1500 = vunpack.c.l.s4 1934713408
    %v1501 = vunpack.c.0.s8 %v1500
    %v1502 = vperm.slane %v1494, %v1501
    %v1503 = vrot.slane %v1486, 4
    %v1504 = vsel %vm495, 0.0, %v1503
    %v1505 = vrot.slane %v1490, 4
    %v1506 = vsel %vm495, 0.0, %v1505
    %v1507 = vrot.slane %v1498, 4
    %v1508 = vsel %vm495, 0.0, %v1507
    %v1509 = vrot.slane %v1502, 4
    %v1510 = vsel %vm495, 0.0, %v1509
    %v1511 = vrot.slane %v1434, 4
    %v1512 = vsel %vm495, %v1511, %v429
    %v1513 = vrot.slane %v429, 4
    %v1514 = vsel %vm495, %v1434, %v1513
    %v1516 = vunpack.c.l.s4 1983009808
    %v1517 = vunpack.c.0.s8 %v1516
    %v1518 = vperm.slane %v1512, %v1517
    %v1520 = vunpack.c.l.s4 1983009808
    %v1521 = vunpack.c.0.s8 %v1520
    %v1522 = vperm.slane %v1514, %v1521
    %v1523 = vrot.slane %v1446, 4
    %v1524 = vsel %vm495, %v1523, %v1422
    %v1525 = vrot.slane %v1422, 4
    %v1526 = vsel %vm495, %v1446, %v1525
    %v1528 = vunpack.c.l.s4 1983009808
    %v1529 = vunpack.c.0.s8 %v1528
    %v1530 = vperm.slane %v1524, %v1529
    %v1532 = vunpack.c.l.s4 1983009808
    %v1533 = vunpack.c.0.s8 %v1532
    %v1534 = vperm.slane %v1526, %v1533
    %v1535 = vrot.slane %v1530, 4
    %v1536 = vsel %vm495, %v1535, %v1518
    %v1537 = vrot.slane %v1518, 4
    %v1538 = vsel %vm495, %v1530, %v1537
    %v1540 = vunpack.c.l.s4 1934713408
    %v1541 = vunpack.c.0.s8 %v1540
    %v1542 = vperm.slane %v1536, %v1541
    %v1544 = vunpack.c.l.s4 1934713408
    %v1545 = vunpack.c.0.s8 %v1544
    %v1546 = vperm.slane %v1538, %v1545
    %v1547 = vrot.slane %v1534, 4
    %v1548 = vsel %vm495, %v1547, %v1522
    %v1549 = vrot.slane %v1522, 4
    %v1550 = vsel %vm495, %v1534, %v1549
    %v1552 = vunpack.c.l.s4 1934713408
    %v1553 = vunpack.c.0.s8 %v1552
    %v1554 = vperm.slane %v1548, %v1553
    %v1556 = vunpack.c.l.s4 1934713408
    %v1557 = vunpack.c.0.s8 %v1556
    %v1558 = vperm.slane %v1550, %v1557
    %v1559 = vrot.slane %v1542, 4
    %v1560 = vsel %vm495, 0.0, %v1559
    %v1561 = vrot.slane %v1546, 4
    %v1562 = vsel %vm495, 0.0, %v1561
    %v1563 = vrot.slane %v1554, 4
    %v1564 = vsel %vm495, 0.0, %v1563
    %v1565 = vrot.slane %v1558, 4
    %v1566 = vsel %vm495, 0.0, %v1565
    %v1567 = vrot.slane %v1436, 4
    %v1568 = vsel %vm495, %v1567, %v432
    %v1569 = vrot.slane %v432, 4
    %v1570 = vsel %vm495, %v1436, %v1569
    %v1572 = vunpack.c.l.s4 1983009808
    %v1573 = vunpack.c.0.s8 %v1572
    %v1574 = vperm.slane %v1568, %v1573
    %v1576 = vunpack.c.l.s4 1983009808
    %v1577 = vunpack.c.0.s8 %v1576
    %v1578 = vperm.slane %v1570, %v1577
    %v1579 = vrot.slane %v1448, 4
    %v1580 = vsel %vm495, %v1579, %v1424
    %v1581 = vrot.slane %v1424, 4
    %v1582 = vsel %vm495, %v1448, %v1581
    %v1584 = vunpack.c.l.s4 1983009808
    %v1585 = vunpack.c.0.s8 %v1584
    %v1586 = vperm.slane %v1580, %v1585
    %v1588 = vunpack.c.l.s4 1983009808
    %v1589 = vunpack.c.0.s8 %v1588
    %v1590 = vperm.slane %v1582, %v1589
    %v1591 = vrot.slane %v1586, 4
    %v1592 = vsel %vm495, %v1591, %v1574
    %v1593 = vrot.slane %v1574, 4
    %v1594 = vsel %vm495, %v1586, %v1593
    %v1596 = vunpack.c.l.s4 1934713408
    %v1597 = vunpack.c.0.s8 %v1596
    %v1598 = vperm.slane %v1592, %v1597
    %v1600 = vunpack.c.l.s4 1934713408
    %v1601 = vunpack.c.0.s8 %v1600
    %v1602 = vperm.slane %v1594, %v1601
    %v1603 = vrot.slane %v1590, 4
    %v1604 = vsel %vm495, %v1603, %v1578
    %v1605 = vrot.slane %v1578, 4
    %v1606 = vsel %vm495, %v1590, %v1605
    %v1608 = vunpack.c.l.s4 1934713408
    %v1609 = vunpack.c.0.s8 %v1608
    %v1610 = vperm.slane %v1604, %v1609
    %v1612 = vunpack.c.l.s4 1934713408
    %v1613 = vunpack.c.0.s8 %v1612
    %v1614 = vperm.slane %v1606, %v1613
    %v1615 = vrot.slane %v1598, 4
    %v1616 = vsel %vm495, 0.0, %v1615
    %v1617 = vrot.slane %v1602, 4
    %v1618 = vsel %vm495, 0.0, %v1617
    %v1619 = vrot.slane %v1610, 4
    %v1620 = vsel %vm495, 0.0, %v1619
    %v1621 = vrot.slane %v1614, 4
    %v1622 = vsel %vm495, 0.0, %v1621
    %v1623 = vrot.slane %v1438, 4
    %v1624 = vsel %vm495, %v1623, %v435
    %v1625 = vrot.slane %v435, 4
    %v1626 = vsel %vm495, %v1438, %v1625
    %v1628 = vunpack.c.l.s4 1983009808
    %v1629 = vunpack.c.0.s8 %v1628
    %v1630 = vperm.slane %v1624, %v1629
    %v1632 = vunpack.c.l.s4 1983009808
    %v1633 = vunpack.c.0.s8 %v1632
    %v1634 = vperm.slane %v1626, %v1633
    %v1635 = vrot.slane %v1450, 4
    %v1636 = vsel %vm495, %v1635, %v1426
    %v1637 = vrot.slane %v1426, 4
    %v1638 = vsel %vm495, %v1450, %v1637
    %v1640 = vunpack.c.l.s4 1983009808
    %v1641 = vunpack.c.0.s8 %v1640
    %v1642 = vperm.slane %v1636, %v1641
    %v1644 = vunpack.c.l.s4 1983009808
    %v1645 = vunpack.c.0.s8 %v1644
    %v1646 = vperm.slane %v1638, %v1645
    %v1647 = vrot.slane %v1642, 4
    %v1648 = vsel %vm495, %v1647, %v1630
    %v1649 = vrot.slane %v1630, 4
    %v1650 = vsel %vm495, %v1642, %v1649
    %v1652 = vunpack.c.l.s4 1934713408
    %v1653 = vunpack.c.0.s8 %v1652
    %v1654 = vperm.slane %v1648, %v1653
    %v1656 = vunpack.c.l.s4 1934713408
    %v1657 = vunpack.c.0.s8 %v1656
    %v1658 = vperm.slane %v1650, %v1657
    %v1659 = vrot.slane %v1646, 4
    %v1660 = vsel %vm495, %v1659, %v1634
    %v1661 = vrot.slane %v1634, 4
    %v1662 = vsel %vm495, %v1646, %v1661
    %v1664 = vunpack.c.l.s4 1934713408
    %v1665 = vunpack.c.0.s8 %v1664
    %v1666 = vperm.slane %v1660, %v1665
    %v1668 = vunpack.c.l.s4 1934713408
    %v1669 = vunpack.c.0.s8 %v1668
    %v1670 = vperm.slane %v1662, %v1669
    %v1671 = vrot.slane %v1654, 4
    %v1672 = vsel %vm495, 0.0, %v1671
    %v1673 = vrot.slane %v1658, 4
    %v1674 = vsel %vm495, 0.0, %v1673
    %v1675 = vrot.slane %v1666, 4
    %v1676 = vsel %vm495, 0.0, %v1675
    %v1677 = vrot.slane %v1670, 4
    %v1678 = vsel %vm495, 0.0, %v1677
    %v1679 = vsel %vm495, %v1505, %v1486
    %v1681 = vunpack.c.l.s4 1983009808
    %v1682 = vunpack.c.0.s8 %v1681
    %v1683 = vperm.slane %v1679, %v1682
    %v1684 = vrot.slane %v1506, 4
    %v1685 = vsel %vm495, %v1684, %v1504
    %v1687 = vunpack.c.l.s4 1983009808
    %v1688 = vunpack.c.0.s8 %v1687
    %v1689 = vperm.slane %v1685, %v1688
    %v1690 = vsel %vm495, %v1509, %v1498
    %v1692 = vunpack.c.l.s4 1983009808
    %v1693 = vunpack.c.0.s8 %v1692
    %v1694 = vperm.slane %v1690, %v1693
    %v1695 = vrot.slane %v1510, 4
    %v1696 = vsel %vm495, %v1695, %v1508
    %v1698 = vunpack.c.l.s4 1983009808
    %v1699 = vunpack.c.0.s8 %v1698
    %v1700 = vperm.slane %v1696, %v1699
    %v1701 = vrot.slane %v1689, 4
    %v1702 = vsel %vm495, %v1701, %v1683
    %v1703 = vrot.slane %v1683, 4
    %v1704 = vsel %vm495, %v1689, %v1703
    %v1706 = vunpack.c.l.s4 1934713408
    %v1707 = vunpack.c.0.s8 %v1706
    %v1708 = vperm.slane %v1702, %v1707
    %v1710 = vunpack.c.l.s4 1934713408
    %v1711 = vunpack.c.0.s8 %v1710
    %v1712 = vperm.slane %v1704, %v1711
    %v1713 = vrot.slane %v1700, 4
    %v1714 = vsel %vm495, %v1713, %v1694
    %v1715 = vrot.slane %v1694, 4
    %v1716 = vsel %vm495, %v1700, %v1715
    %v1718 = vunpack.c.l.s4 1934713408
    %v1719 = vunpack.c.0.s8 %v1718
    %v1720 = vperm.slane %v1714, %v1719
    %v1722 = vunpack.c.l.s4 1934713408
    %v1723 = vunpack.c.0.s8 %v1722
    %v1724 = vperm.slane %v1716, %v1723
    %v1725 = vrot.slane %v1720, 4
    %v1726 = vsel %vm495, %v1725, %v1708
    %v1727 = vrot.slane %v1708, 4
    %v1728 = vsel %vm495, %v1720, %v1727
    %v1729 = vrot.slane %v1724, 4
    %v1730 = vsel %vm495, %v1729, %v1712
    %v1731 = vrot.slane %v1712, 4
    %v1732 = vsel %vm495, %v1724, %v1731
    %v1733 = vsel %vm495, %v1561, %v1542
    %v1735 = vunpack.c.l.s4 1983009808
    %v1736 = vunpack.c.0.s8 %v1735
    %v1737 = vperm.slane %v1733, %v1736
    %v1738 = vrot.slane %v1562, 4
    %v1739 = vsel %vm495, %v1738, %v1560
    %v1741 = vunpack.c.l.s4 1983009808
    %v1742 = vunpack.c.0.s8 %v1741
    %v1743 = vperm.slane %v1739, %v1742
    %v1744 = vsel %vm495, %v1565, %v1554
    %v1746 = vunpack.c.l.s4 1983009808
    %v1747 = vunpack.c.0.s8 %v1746
    %v1748 = vperm.slane %v1744, %v1747
    %v1749 = vrot.slane %v1566, 4
    %v1750 = vsel %vm495, %v1749, %v1564
    %v1752 = vunpack.c.l.s4 1983009808
    %v1753 = vunpack.c.0.s8 %v1752
    %v1754 = vperm.slane %v1750, %v1753
    %v1755 = vrot.slane %v1743, 4
    %v1756 = vsel %vm495, %v1755, %v1737
    %v1757 = vrot.slane %v1737, 4
    %v1758 = vsel %vm495, %v1743, %v1757
    %v1760 = vunpack.c.l.s4 1934713408
    %v1761 = vunpack.c.0.s8 %v1760
    %v1762 = vperm.slane %v1756, %v1761
    %v1764 = vunpack.c.l.s4 1934713408
    %v1765 = vunpack.c.0.s8 %v1764
    %v1766 = vperm.slane %v1758, %v1765
    %v1767 = vrot.slane %v1754, 4
    %v1768 = vsel %vm495, %v1767, %v1748
    %v1769 = vrot.slane %v1748, 4
    %v1770 = vsel %vm495, %v1754, %v1769
    %v1772 = vunpack.c.l.s4 1934713408
    %v1773 = vunpack.c.0.s8 %v1772
    %v1774 = vperm.slane %v1768, %v1773
    %v1776 = vunpack.c.l.s4 1934713408
    %v1777 = vunpack.c.0.s8 %v1776
    %v1778 = vperm.slane %v1770, %v1777
    %v1779 = vrot.slane %v1774, 4
    %v1780 = vsel %vm495, %v1779, %v1762
    %v1781 = vrot.slane %v1762, 4
    %v1782 = vsel %vm495, %v1774, %v1781
    %v1783 = vrot.slane %v1778, 4
    %v1784 = vsel %vm495, %v1783, %v1766
    %v1785 = vrot.slane %v1766, 4
    %v1786 = vsel %vm495, %v1778, %v1785
    %v1787 = vsel %vm495, %v1617, %v1598
    %v1789 = vunpack.c.l.s4 1983009808
    %v1790 = vunpack.c.0.s8 %v1789
    %v1791 = vperm.slane %v1787, %v1790
    %v1792 = vrot.slane %v1618, 4
    %v1793 = vsel %vm495, %v1792, %v1616
    %v1795 = vunpack.c.l.s4 1983009808
    %v1796 = vunpack.c.0.s8 %v1795
    %v1797 = vperm.slane %v1793, %v1796
    %v1798 = vsel %vm495, %v1621, %v1610
    %v1800 = vunpack.c.l.s4 1983009808
    %v1801 = vunpack.c.0.s8 %v1800
    %v1802 = vperm.slane %v1798, %v1801
    %v1803 = vrot.slane %v1622, 4
    %v1804 = vsel %vm495, %v1803, %v1620
    %v1806 = vunpack.c.l.s4 1983009808
    %v1807 = vunpack.c.0.s8 %v1806
    %v1808 = vperm.slane %v1804, %v1807
    %v1809 = vrot.slane %v1797, 4
    %v1810 = vsel %vm495, %v1809, %v1791
    %v1811 = vrot.slane %v1791, 4
    %v1812 = vsel %vm495, %v1797, %v1811
    %v1814 = vunpack.c.l.s4 1934713408
    %v1815 = vunpack.c.0.s8 %v1814
    %v1816 = vperm.slane %v1810, %v1815
    %v1818 = vunpack.c.l.s4 1934713408
    %v1819 = vunpack.c.0.s8 %v1818
    %v1820 = vperm.slane %v1812, %v1819
    %v1821 = vrot.slane %v1808, 4
    %v1822 = vsel %vm495, %v1821, %v1802
    %v1823 = vrot.slane %v1802, 4
    %v1824 = vsel %vm495, %v1808, %v1823
    %v1826 = vunpack.c.l.s4 1934713408
    %v1827 = vunpack.c.0.s8 %v1826
    %v1828 = vperm.slane %v1822, %v1827
    %v1830 = vunpack.c.l.s4 1934713408
    %v1831 = vunpack.c.0.s8 %v1830
    %v1832 = vperm.slane %v1824, %v1831
    %v1833 = vrot.slane %v1828, 4
    %v1834 = vsel %vm495, %v1833, %v1816
    %v1835 = vrot.slane %v1816, 4
    %v1836 = vsel %vm495, %v1828, %v1835
    %v1837 = vrot.slane %v1832, 4
    %v1838 = vsel %vm495, %v1837, %v1820
    %v1839 = vrot.slane %v1820, 4
    %v1840 = vsel %vm495, %v1832, %v1839
    %v1841 = vsel %vm495, %v1673, %v1654
    %v1843 = vunpack.c.l.s4 1983009808
    %v1844 = vunpack.c.0.s8 %v1843
    %v1845 = vperm.slane %v1841, %v1844
    %v1846 = vrot.slane %v1674, 4
    %v1847 = vsel %vm495, %v1846, %v1672
    %v1849 = vunpack.c.l.s4 1983009808
    %v1850 = vunpack.c.0.s8 %v1849
    %v1851 = vperm.slane %v1847, %v1850
    %v1852 = vsel %vm495, %v1677, %v1666
    %v1854 = vunpack.c.l.s4 1983009808
    %v1855 = vunpack.c.0.s8 %v1854
    %v1856 = vperm.slane %v1852, %v1855
    %v1857 = vrot.slane %v1678, 4
    %v1858 = vsel %vm495, %v1857, %v1676
    %v1860 = vunpack.c.l.s4 1983009808
    %v1861 = vunpack.c.0.s8 %v1860
    %v1862 = vperm.slane %v1858, %v1861
    %v1863 = vrot.slane %v1851, 4
    %v1864 = vsel %vm495, %v1863, %v1845
    %v1865 = vrot.slane %v1845, 4
    %v1866 = vsel %vm495, %v1851, %v1865
    %v1868 = vunpack.c.l.s4 1934713408
    %v1869 = vunpack.c.0.s8 %v1868
    %v1870 = vperm.slane %v1864, %v1869
    %v1872 = vunpack.c.l.s4 1934713408
    %v1873 = vunpack.c.0.s8 %v1872
    %v1874 = vperm.slane %v1866, %v1873
    %v1875 = vrot.slane %v1862, 4
    %v1876 = vsel %vm495, %v1875, %v1856
    %v1877 = vrot.slane %v1856, 4
    %v1878 = vsel %vm495, %v1862, %v1877
    %v1880 = vunpack.c.l.s4 1934713408
    %v1881 = vunpack.c.0.s8 %v1880
    %v1882 = vperm.slane %v1876, %v1881
    %v1884 = vunpack.c.l.s4 1934713408
    %v1885 = vunpack.c.0.s8 %v1884
    %v1886 = vperm.slane %v1878, %v1885
    %v1887 = vrot.slane %v1882, 4
    %v1888 = vsel %vm495, %v1887, %v1870
    %v1889 = vrot.slane %v1870, 4
    %v1890 = vsel %vm495, %v1882, %v1889
    %v1891 = vrot.slane %v1886, 4
    %v1892 = vsel %vm495, %v1891, %v1874
    %v1893 = vrot.slane %v1874, 4
    %v1894 = vsel %vm495, %v1886, %v1893
    %vm1895 = vcmask 261120
    %v1897 = vsel %vm1895, %v766, 0
    %v1900 = vsel %vm1895, %v820, 0
    %v1903 = vsel %vm1895, %v1246, 0
    %v1906 = vsel %vm1895, %v1300, 0
    %1908 = vmatpush.xpose.msra.mxu0 0.0
    %1909 = vmatpush.xpose.msra.mxu0 0.0
    %1910 = vmatpush.xpose.msra.mxu0 0.0
    %1911 = vmatpush.xpose.msra.mxu0 0.0
    %1912 = vmatpush.xpose.msra.mxu0 0.0
    %1913 = vmatpush.xpose.msra.mxu0 0.0
    %1914 = vmatpush.xpose.msra.mxu0 0.0
    %1915 = vmatpush.xpose.msra.mxu0 0.0
    %1916 = vmatpush.xpose.msra.mxu0 0.0
    %1917 = vmatpush.xpose.msra.mxu0 0.0
    %1918 = vmatpush.xpose.msra.mxu0 0.0
    %1919 = vmatpush.xpose.msra.mxu0 0.0
    %1920 = vmatpush.xpose.msra.mxu0 0.0
    %1921 = vmatpush.xpose.msra.mxu0 0.0
    %1922 = vmatpush.xpose.msra.mxu0 %v1906
    %1923 = vmatpush.xpose.msra.mxu0 %v1903
    %1924 = vmatmul.f32.gmra.mxu0 %v1897
    %v1925 = vpop.f32.mrf.mxu0
    %v1926 = vadd.f32 0.0, %v1925
    %1927 = vmatmul.f32.gmra.mxu0 %v1900
    %v1928 = vpop.f32.mrf.mxu0
    %v1929 = vadd.f32 0.0, %v1928
    %1930 = vdwg.mxu0
    %v1932 = vsel %vm1895, %v768, 0
    %v1935 = vsel %vm1895, %v822, 0
    %v1938 = vsel %vm1895, %v1248, 0
    %v1941 = vsel %vm1895, %v1302, 0
    %1943 = vmatpush.xpose.msra.mxu0 0.0
    %1944 = vmatpush.xpose.msra.mxu0 0.0
    %1945 = vmatpush.xpose.msra.mxu0 0.0
    %1946 = vmatpush.xpose.msra.mxu0 0.0
    %1947 = vmatpush.xpose.msra.mxu0 0.0
    %1948 = vmatpush.xpose.msra.mxu0 0.0
    %1949 = vmatpush.xpose.msra.mxu0 0.0
    %1950 = vmatpush.xpose.msra.mxu0 0.0
    %1951 = vmatpush.xpose.msra.mxu0 0.0
    %1952 = vmatpush.xpose.msra.mxu0 0.0
    %1953 = vmatpush.xpose.msra.mxu0 0.0
    %1954 = vmatpush.xpose.msra.mxu0 0.0
    %1955 = vmatpush.xpose.msra.mxu0 0.0
    %1956 = vmatpush.xpose.msra.mxu0 0.0
    %1957 = vmatpush.xpose.msra.mxu0 %v1941
    %1958 = vmatpush.xpose.msra.mxu0 %v1938
    %1959 = vmatmul.f32.gmra.mxu0 %v1932
    %v1960 = vpop.f32.mrf.mxu0
    %v1961 = vadd.f32 0.0, %v1960
    %1962 = vmatmul.f32.gmra.mxu0 %v1935
    %v1963 = vpop.f32.mrf.mxu0
    %v1964 = vadd.f32 0.0, %v1963
    %1965 = vdwg.mxu0
    %v1967 = vsel %vm1895, %v770, 0
    %v1970 = vsel %vm1895, %v824, 0
    %v1973 = vsel %vm1895, %v1250, 0
    %v1976 = vsel %vm1895, %v1304, 0
    %1978 = vmatpush.xpose.msra.mxu0 0.0
    %1979 = vmatpush.xpose.msra.mxu0 0.0
    %1980 = vmatpush.xpose.msra.mxu0 0.0
    %1981 = vmatpush.xpose.msra.mxu0 0.0
    %1982 = vmatpush.xpose.msra.mxu0 0.0
    %1983 = vmatpush.xpose.msra.mxu0 0.0
    %1984 = vmatpush.xpose.msra.mxu0 0.0
    %1985 = vmatpush.xpose.msra.mxu0 0.0
    %1986 = vmatpush.xpose.msra.mxu0 0.0
    %1987 = vmatpush.xpose.msra.mxu0 0.0
    %1988 = vmatpush.xpose.msra.mxu0 0.0
    %1989 = vmatpush.xpose.msra.mxu0 0.0
    %1990 = vmatpush.xpose.msra.mxu0 0.0
    %1991 = vmatpush.xpose.msra.mxu0 0.0
    %1992 = vmatpush.xpose.msra.mxu0 %v1976
    %1993 = vmatpush.xpose.msra.mxu0 %v1973
    %1994 = vmatmul.f32.gmra.mxu0 %v1967
    %v1995 = vpop.f32.mrf.mxu0
    %v1996 = vadd.f32 0.0, %v1995
    %1997 = vmatmul.f32.gmra.mxu0 %v1970
    %v1998 = vpop.f32.mrf.mxu0
    %v1999 = vadd.f32 0.0, %v1998
    %2000 = vdwg.mxu0
    %v2002 = vsel %vm1895, %v772, 0
    %v2005 = vsel %vm1895, %v826, 0
    %v2008 = vsel %vm1895, %v1252, 0
    %v2011 = vsel %vm1895, %v1306, 0
    %2013 = vmatpush.xpose.msra.mxu0 0.0
    %2014 = vmatpush.xpose.msra.mxu0 0.0
    %2015 = vmatpush.xpose.msra.mxu0 0.0
    %2016 = vmatpush.xpose.msra.mxu0 0.0
    %2017 = vmatpush.xpose.msra.mxu0 0.0
    %2018 = vmatpush.xpose.msra.mxu0 0.0
    %2019 = vmatpush.xpose.msra.mxu0 0.0
    %2020 = vmatpush.xpose.msra.mxu0 0.0
    %2021 = vmatpush.xpose.msra.mxu0 0.0
    %2022 = vmatpush.xpose.msra.mxu0 0.0
    %2023 = vmatpush.xpose.msra.mxu0 0.0
    %2024 = vmatpush.xpose.msra.mxu0 0.0
    %2025 = vmatpush.xpose.msra.mxu0 0.0
    %2026 = vmatpush.xpose.msra.mxu0 0.0
    %2027 = vmatpush.xpose.msra.mxu0 %v2011
    %2028 = vmatpush.xpose.msra.mxu0 %v2008
    %2029 = vmatmul.f32.gmra.mxu0 %v2002
    %v2030 = vpop.f32.mrf.mxu0
    %v2031 = vadd.f32 0.0, %v2030
    %2032 = vmatmul.f32.gmra.mxu0 %v2005
    %v2033 = vpop.f32.mrf.mxu0
    %v2034 = vadd.f32 0.0, %v2033
    %2035 = vdwg.mxu0
    %v2037 = vsel %vm1895, %v874, 0
    %v2040 = vsel %vm1895, %v928, 0
    %v2043 = vsel %vm1895, %v1354, 0
    %v2046 = vsel %vm1895, %v1408, 0
    %2048 = vmatpush.xpose.msra.mxu0 0.0
    %2049 = vmatpush.xpose.msra.mxu0 0.0
    %2050 = vmatpush.xpose.msra.mxu0 0.0
    %2051 = vmatpush.xpose.msra.mxu0 0.0
    %2052 = vmatpush.xpose.msra.mxu0 0.0
    %2053 = vmatpush.xpose.msra.mxu0 0.0
    %2054 = vmatpush.xpose.msra.mxu0 0.0
    %2055 = vmatpush.xpose.msra.mxu0 0.0
    %2056 = vmatpush.xpose.msra.mxu0 0.0
    %2057 = vmatpush.xpose.msra.mxu0 0.0
    %2058 = vmatpush.xpose.msra.mxu0 0.0
    %2059 = vmatpush.xpose.msra.mxu0 0.0
    %2060 = vmatpush.xpose.msra.mxu0 0.0
    %2061 = vmatpush.xpose.msra.mxu0 0.0
    %2062 = vmatpush.xpose.msra.mxu0 %v2046
    %2063 = vmatpush.xpose.msra.mxu0 %v2043
    %2064 = vmatmul.f32.gmra.mxu0 %v2037
    %v2065 = vpop.f32.mrf.mxu0
    %v2066 = vadd.f32 0.0, %v2065
    %2067 = vmatmul.f32.gmra.mxu0 %v2040
    %v2068 = vpop.f32.mrf.mxu0
    %v2069 = vadd.f32 0.0, %v2068
    %2070 = vdwg.mxu0
    %v2072 = vsel %vm1895, %v876, 0
    %v2075 = vsel %vm1895, %v930, 0
    %v2078 = vsel %vm1895, %v1356, 0
    %v2081 = vsel %vm1895, %v1410, 0
    %2083 = vmatpush.xpose.msra.mxu0 0.0
    %2084 = vmatpush.xpose.msra.mxu0 0.0
    %2085 = vmatpush.xpose.msra.mxu0 0.0
    %2086 = vmatpush.xpose.msra.mxu0 0.0
    %2087 = vmatpush.xpose.msra.mxu0 0.0
    %2088 = vmatpush.xpose.msra.mxu0 0.0
    %2089 = vmatpush.xpose.msra.mxu0 0.0
    %2090 = vmatpush.xpose.msra.mxu0 0.0
    %2091 = vmatpush.xpose.msra.mxu0 0.0
    %2092 = vmatpush.xpose.msra.mxu0 0.0
    %2093 = vmatpush.xpose.msra.mxu0 0.0
    %2094 = vmatpush.xpose.msra.mxu0 0.0
    %2095 = vmatpush.xpose.msra.mxu0 0.0
    %2096 = vmatpush.xpose.msra.mxu0 0.0
    %2097 = vmatpush.xpose.msra.mxu0 %v2081
    %2098 = vmatpush.xpose.msra.mxu0 %v2078
    %2099 = vmatmul.f32.gmra.mxu0 %v2072
    %v2100 = vpop.f32.mrf.mxu0
    %v2101 = vadd.f32 0.0, %v2100
    %2102 = vmatmul.f32.gmra.mxu0 %v2075
    %v2103 = vpop.f32.mrf.mxu0
    %v2104 = vadd.f32 0.0, %v2103
    %2105 = vdwg.mxu0
    %v2107 = vsel %vm1895, %v878, 0
    %v2110 = vsel %vm1895, %v932, 0
    %v2113 = vsel %vm1895, %v1358, 0
    %v2116 = vsel %vm1895, %v1412, 0
    %2118 = vmatpush.xpose.msra.mxu0 0.0
    %2119 = vmatpush.xpose.msra.mxu0 0.0
    %2120 = vmatpush.xpose.msra.mxu0 0.0
    %2121 = vmatpush.xpose.msra.mxu0 0.0
    %2122 = vmatpush.xpose.msra.mxu0 0.0
    %2123 = vmatpush.xpose.msra.mxu0 0.0
    %2124 = vmatpush.xpose.msra.mxu0 0.0
    %2125 = vmatpush.xpose.msra.mxu0 0.0
    %2126 = vmatpush.xpose.msra.mxu0 0.0
    %2127 = vmatpush.xpose.msra.mxu0 0.0
    %2128 = vmatpush.xpose.msra.mxu0 0.0
    %2129 = vmatpush.xpose.msra.mxu0 0.0
    %2130 = vmatpush.xpose.msra.mxu0 0.0
    %2131 = vmatpush.xpose.msra.mxu0 0.0
    %2132 = vmatpush.xpose.msra.mxu0 %v2116
    %2133 = vmatpush.xpose.msra.mxu0 %v2113
    %2134 = vmatmul.f32.gmra.mxu0 %v2107
    %v2135 = vpop.f32.mrf.mxu0
    %v2136 = vadd.f32 0.0, %v2135
    %2137 = vmatmul.f32.gmra.mxu0 %v2110
    %v2138 = vpop.f32.mrf.mxu0
    %v2139 = vadd.f32 0.0, %v2138
    %2140 = vdwg.mxu0
    %v2142 = vsel %vm1895, %v880, 0
    %v2145 = vsel %vm1895, %v934, 0
    %v2148 = vsel %vm1895, %v1360, 0
    %v2151 = vsel %vm1895, %v1414, 0
    %2153 = vmatpush.xpose.msra.mxu0 0.0
    %2154 = vmatpush.xpose.msra.mxu0 0.0
    %2155 = vmatpush.xpose.msra.mxu0 0.0
    %2156 = vmatpush.xpose.msra.mxu0 0.0
    %2157 = vmatpush.xpose.msra.mxu0 0.0
    %2158 = vmatpush.xpose.msra.mxu0 0.0
    %2159 = vmatpush.xpose.msra.mxu0 0.0
    %2160 = vmatpush.xpose.msra.mxu0 0.0
    %2161 = vmatpush.xpose.msra.mxu0 0.0
    %2162 = vmatpush.xpose.msra.mxu0 0.0
    %2163 = vmatpush.xpose.msra.mxu0 0.0
    %2164 = vmatpush.xpose.msra.mxu0 0.0
    %2165 = vmatpush.xpose.msra.mxu0 0.0
    %2166 = vmatpush.xpose.msra.mxu0 0.0
    %2167 = vmatpush.xpose.msra.mxu0 %v2151
    %2168 = vmatpush.xpose.msra.mxu0 %v2148
    %2169 = vmatmul.f32.gmra.mxu0 %v2142
    %v2170 = vpop.f32.mrf.mxu0
    %v2171 = vadd.f32 0.0, %v2170
    %2172 = vmatmul.f32.gmra.mxu0 %v2145
    %v2173 = vpop.f32.mrf.mxu0
    %v2174 = vadd.f32 0.0, %v2173
    %2175 = vdwg.mxu0
    %v2176 = vadd.f32 %v1926, %v288
    %v2177 = vadd.f32 %v1929, %v289
    %v2178 = vadd.f32 %v1961, %v288
    %v2179 = vadd.f32 %v1964, %v289
    %v2180 = vadd.f32 %v1996, %v288
    %v2181 = vadd.f32 %v1999, %v289
    %v2182 = vadd.f32 %v2031, %v288
    %v2183 = vadd.f32 %v2034, %v289
    %v2184 = vadd.f32 %v2066, %v290
    %v2185 = vadd.f32 %v2069, %v291
    %v2186 = vadd.f32 %v2101, %v290
    %v2187 = vadd.f32 %v2104, %v291
    %v2188 = vadd.f32 %v2136, %v290
    %v2189 = vadd.f32 %v2139, %v291
    %v2190 = vadd.f32 %v2171, %v290
    %v2191 = vadd.f32 %v2174, %v291
    %vm2192 = vcmask 130048
    %v2193 = vsel %vm2192, %v2176, -inf
    %2194 = vmax.xlane.f32.xlu0 %v2193
    %v2195 = vpop.xlane.xlu0 %2194
    %v2196 = vsel %vm2192, %v2177, -inf
    %2197 = vmax.xlane.f32.xlu0 %v2196
    %v2198 = vpop.xlane.xlu0 %2197
    %v2199 = vsel %vm2192, %v2178, -inf
    %2200 = vmax.xlane.f32.xlu0 %v2199
    %v2201 = vpop.xlane.xlu0 %2200
    %v2202 = vsel %vm2192, %v2179, -inf
    %2203 = vmax.xlane.f32.xlu0 %v2202
    %v2204 = vpop.xlane.xlu0 %2203
    %v2205 = vsel %vm2192, %v2180, -inf
    %2206 = vmax.xlane.f32.xlu0 %v2205
    %v2207 = vpop.xlane.xlu0 %2206
    %v2208 = vsel %vm2192, %v2181, -inf
    %2209 = vmax.xlane.f32.xlu0 %v2208
    %v2210 = vpop.xlane.xlu0 %2209
    %v2211 = vsel %vm2192, %v2182, -inf
    %2212 = vmax.xlane.f32.xlu0 %v2211
    %v2213 = vpop.xlane.xlu0 %2212
    %v2214 = vsel %vm2192, %v2183, -inf
    %2215 = vmax.xlane.f32.xlu0 %v2214
    %v2216 = vpop.xlane.xlu0 %2215
    %v2217 = vsel %vm2192, %v2184, -inf
    %2218 = vmax.xlane.f32.xlu0 %v2217
    %v2219 = vpop.xlane.xlu0 %2218
    %v2220 = vsel %vm2192, %v2185, -inf
    %2221 = vmax.xlane.f32.xlu0 %v2220
    %v2222 = vpop.xlane.xlu0 %2221
    %v2223 = vsel %vm2192, %v2186, -inf
    %2224 = vmax.xlane.f32.xlu0 %v2223
    %v2225 = vpop.xlane.xlu0 %2224
    %v2226 = vsel %vm2192, %v2187, -inf
    %2227 = vmax.xlane.f32.xlu0 %v2226
    %v2228 = vpop.xlane.xlu0 %2227
    %v2229 = vsel %vm2192, %v2188, -inf
    %2230 = vmax.xlane.f32.xlu0 %v2229
    %v2231 = vpop.xlane.xlu0 %2230
    %v2232 = vsel %vm2192, %v2189, -inf
    %2233 = vmax.xlane.f32.xlu0 %v2232
    %v2234 = vpop.xlane.xlu0 %2233
    %v2235 = vsel %vm2192, %v2190, -inf
    %2236 = vmax.xlane.f32.xlu0 %v2235
    %v2237 = vpop.xlane.xlu0 %2236
    %v2238 = vsel %vm2192, %v2191, -inf
    %2239 = vmax.xlane.f32.xlu0 %v2238
    %v2240 = vpop.xlane.xlu0 %2239
    %v2241 = vsub.f32 %v2176, %v2195
    %v2242 = vsub.f32 %v2177, %v2198
    %v2243 = vsub.f32 %v2178, %v2201
    %v2244 = vsub.f32 %v2179, %v2204
    %v2245 = vsub.f32 %v2180, %v2207
    %v2246 = vsub.f32 %v2181, %v2210
    %v2247 = vsub.f32 %v2182, %v2213
    %v2248 = vsub.f32 %v2183, %v2216
    %v2249 = vsub.f32 %v2184, %v2219
    %v2250 = vsub.f32 %v2185, %v2222
    %v2251 = vsub.f32 %v2186, %v2225
    %v2252 = vsub.f32 %v2187, %v2228
    %v2253 = vsub.f32 %v2188, %v2231
    %v2254 = vsub.f32 %v2189, %v2234
    %v2255 = vsub.f32 %v2190, %v2237
    %v2256 = vsub.f32 %v2191, %v2240
    %v2257 = vmul.f32 %v2241, 1.442695
    %v2258 = vpow.pop %v2257
    %v2259 = vmul.f32 %v2242, 1.442695
    %v2260 = vpow.pop %v2259
    %v2261 = vmul.f32 %v2243, 1.442695
    %v2262 = vpow.pop %v2261
    %v2263 = vmul.f32 %v2244, 1.442695
    %v2264 = vpow.pop %v2263
    %v2265 = vmul.f32 %v2245, 1.442695
    %v2266 = vpow.pop %v2265
    %v2267 = vmul.f32 %v2246, 1.442695
    %v2268 = vpow.pop %v2267
    %v2269 = vmul.f32 %v2247, 1.442695
    %v2270 = vpow.pop %v2269
    %v2271 = vmul.f32 %v2248, 1.442695
    %v2272 = vpow.pop %v2271
    %v2273 = vmul.f32 %v2249, 1.442695
    %v2274 = vpow.pop %v2273
    %v2275 = vmul.f32 %v2250, 1.442695
    %v2276 = vpow.pop %v2275
    %v2277 = vmul.f32 %v2251, 1.442695
    %v2278 = vpow.pop %v2277
    %v2279 = vmul.f32 %v2252, 1.442695
    %v2280 = vpow.pop %v2279
    %v2281 = vmul.f32 %v2253, 1.442695
    %v2282 = vpow.pop %v2281
    %v2283 = vmul.f32 %v2254, 1.442695
    %v2284 = vpow.pop %v2283
    %v2285 = vmul.f32 %v2255, 1.442695
    %v2286 = vpow.pop %v2285
    %v2287 = vmul.f32 %v2256, 1.442695
    %v2288 = vpow.pop %v2287
    %v2289 = vsel %vm2192, %v2258, 0.0
    %2290 = vadd.xlane.f32.xlu0 %v2289
    %v2291 = vpop.xlane.xlu0 %2290
    %v2292 = vsel %vm2192, %v2260, 0.0
    %2293 = vadd.xlane.f32.xlu0 %v2292
    %v2294 = vpop.xlane.xlu0 %2293
    %v2295 = vsel %vm2192, %v2262, 0.0
    %2296 = vadd.xlane.f32.xlu0 %v2295
    %v2297 = vpop.xlane.xlu0 %2296
    %v2298 = vsel %vm2192, %v2264, 0.0
    %2299 = vadd.xlane.f32.xlu0 %v2298
    %v2300 = vpop.xlane.xlu0 %2299
    %v2301 = vsel %vm2192, %v2266, 0.0
    %2302 = vadd.xlane.f32.xlu0 %v2301
    %v2303 = vpop.xlane.xlu0 %2302
    %v2304 = vsel %vm2192, %v2268, 0.0
    %2305 = vadd.xlane.f32.xlu0 %v2304
    %v2306 = vpop.xlane.xlu0 %2305
    %v2307 = vsel %vm2192, %v2270, 0.0
    %2308 = vadd.xlane.f32.xlu0 %v2307
    %v2309 = vpop.xlane.xlu0 %2308
    %v2310 = vsel %vm2192, %v2272, 0.0
    %2311 = vadd.xlane.f32.xlu0 %v2310
    %v2312 = vpop.xlane.xlu0 %2311
    %v2313 = vsel %vm2192, %v2274, 0.0
    %2314 = vadd.xlane.f32.xlu0 %v2313
    %v2315 = vpop.xlane.xlu0 %2314
    %v2316 = vsel %vm2192, %v2276, 0.0
    %2317 = vadd.xlane.f32.xlu0 %v2316
    %v2318 = vpop.xlane.xlu0 %2317
    %v2319 = vsel %vm2192, %v2278, 0.0
    %2320 = vadd.xlane.f32.xlu0 %v2319
    %v2321 = vpop.xlane.xlu0 %2320
    %v2322 = vsel %vm2192, %v2280, 0.0
    %2323 = vadd.xlane.f32.xlu0 %v2322
    %v2324 = vpop.xlane.xlu0 %2323
    %v2325 = vsel %vm2192, %v2282, 0.0
    %2326 = vadd.xlane.f32.xlu0 %v2325
    %v2327 = vpop.xlane.xlu0 %2326
    %v2328 = vsel %vm2192, %v2284, 0.0
    %2329 = vadd.xlane.f32.xlu0 %v2328
    %v2330 = vpop.xlane.xlu0 %2329
    %v2331 = vsel %vm2192, %v2286, 0.0
    %2332 = vadd.xlane.f32.xlu0 %v2331
    %v2333 = vpop.xlane.xlu0 %2332
    %v2334 = vsel %vm2192, %v2288, 0.0
    %2335 = vadd.xlane.f32.xlu0 %v2334
    %v2336 = vpop.xlane.xlu0 %2335
    %v2337 = vrcp.pop %v2291
    %v2338 = vrcp.pop %v2294
    %v2339 = vrcp.pop %v2297
    %v2340 = vrcp.pop %v2300
    %v2341 = vrcp.pop %v2303
    %v2342 = vrcp.pop %v2306
    %v2343 = vrcp.pop %v2309
    %v2344 = vrcp.pop %v2312
    %v2345 = vrcp.pop %v2315
    %v2346 = vrcp.pop %v2318
    %v2347 = vrcp.pop %v2321
    %v2348 = vrcp.pop %v2324
    %v2349 = vrcp.pop %v2327
    %v2350 = vrcp.pop %v2330
    %v2351 = vrcp.pop %v2333
    %v2352 = vrcp.pop %v2336
    %v2353 = vmul.f32 %v2258, %v2337
    %v2354 = vmul.f32 %v2260, %v2338
    %v2355 = vmul.f32 %v2262, %v2339
    %v2356 = vmul.f32 %v2264, %v2340
    %v2357 = vmul.f32 %v2266, %v2341
    %v2358 = vmul.f32 %v2268, %v2342
    %v2359 = vmul.f32 %v2270, %v2343
    %v2360 = vmul.f32 %v2272, %v2344
    %v2361 = vmul.f32 %v2274, %v2345
    %v2362 = vmul.f32 %v2276, %v2346
    %v2363 = vmul.f32 %v2278, %v2347
    %v2364 = vmul.f32 %v2280, %v2348
    %v2365 = vmul.f32 %v2282, %v2349
    %v2366 = vmul.f32 %v2284, %v2350
    %v2367 = vmul.f32 %v2286, %v2351
    %v2368 = vmul.f32 %v2288, %v2352
    %v2370 = vsel %vm2192, %v2353, 0
    %v2373 = vsel %vm2192, %v2354, 0
    %2375 = vmatpush.msra.mxu0 0.0
    %2376 = vmatpush.msra.mxu0 0.0
    %2377 = vmatpush.msra.mxu0 0.0
    %2378 = vmatpush.msra.mxu0 0.0
    %2379 = vmatpush.msra.mxu0 0.0
    %2380 = vmatpush.msra.mxu0 0.0
    %2381 = vmatpush.msra.mxu0 0.0
    %2382 = vmatpush.msra.mxu0 0.0
    %2383 = vmatpush.msra.mxu0 0.0
    %2384 = vmatpush.msra.mxu0 0.0
    %2385 = vmatpush.msra.mxu0 0.0
    %2386 = vmatpush.msra.mxu0 0.0
    %2387 = vmatpush.msra.mxu0 0.0
    %2388 = vmatpush.msra.mxu0 0.0
    %2389 = vmatpush.msra.mxu0 %v1780
    %2390 = vmatpush.msra.mxu0 %v1726
    %2391 = vmatmul.f32.gmra.mxu0 %v2370
    %v2392 = vpop.f32.mrf.mxu0
    %v2393 = vadd.f32 0.0, %v2392
    %2394 = vmatmul.f32.gmra.mxu0 %v2373
    %v2395 = vpop.f32.mrf.mxu0
    %v2396 = vadd.f32 0.0, %v2395
    %2397 = vdwg.mxu0
    %v2399 = vsel %vm2192, %v2355, 0
    %v2402 = vsel %vm2192, %v2356, 0
    %2404 = vmatpush.msra.mxu0 0.0
    %2405 = vmatpush.msra.mxu0 0.0
    %2406 = vmatpush.msra.mxu0 0.0
    %2407 = vmatpush.msra.mxu0 0.0
    %2408 = vmatpush.msra.mxu0 0.0
    %2409 = vmatpush.msra.mxu0 0.0
    %2410 = vmatpush.msra.mxu0 0.0
    %2411 = vmatpush.msra.mxu0 0.0
    %2412 = vmatpush.msra.mxu0 0.0
    %2413 = vmatpush.msra.mxu0 0.0
    %2414 = vmatpush.msra.mxu0 0.0
    %2415 = vmatpush.msra.mxu0 0.0
    %2416 = vmatpush.msra.mxu0 0.0
    %2417 = vmatpush.msra.mxu0 0.0
    %2418 = vmatpush.msra.mxu0 %v1782
    %2419 = vmatpush.msra.mxu0 %v1728
    %2420 = vmatmul.f32.gmra.mxu0 %v2399
    %v2421 = vpop.f32.mrf.mxu0
    %v2422 = vadd.f32 0.0, %v2421
    %2423 = vmatmul.f32.gmra.mxu0 %v2402
    %v2424 = vpop.f32.mrf.mxu0
    %v2425 = vadd.f32 0.0, %v2424
    %2426 = vdwg.mxu0
    %v2428 = vsel %vm2192, %v2357, 0
    %v2431 = vsel %vm2192, %v2358, 0
    %2433 = vmatpush.msra.mxu0 0.0
    %2434 = vmatpush.msra.mxu0 0.0
    %2435 = vmatpush.msra.mxu0 0.0
    %2436 = vmatpush.msra.mxu0 0.0
    %2437 = vmatpush.msra.mxu0 0.0
    %2438 = vmatpush.msra.mxu0 0.0
    %2439 = vmatpush.msra.mxu0 0.0
    %2440 = vmatpush.msra.mxu0 0.0
    %2441 = vmatpush.msra.mxu0 0.0
    %2442 = vmatpush.msra.mxu0 0.0
    %2443 = vmatpush.msra.mxu0 0.0
    %2444 = vmatpush.msra.mxu0 0.0
    %2445 = vmatpush.msra.mxu0 0.0
    %2446 = vmatpush.msra.mxu0 0.0
    %2447 = vmatpush.msra.mxu0 %v1784
    %2448 = vmatpush.msra.mxu0 %v1730
    %2449 = vmatmul.f32.gmra.mxu0 %v2428
    %v2450 = vpop.f32.mrf.mxu0
    %v2451 = vadd.f32 0.0, %v2450
    %2452 = vmatmul.f32.gmra.mxu0 %v2431
    %v2453 = vpop.f32.mrf.mxu0
    %v2454 = vadd.f32 0.0, %v2453
    %2455 = vdwg.mxu0
    %v2457 = vsel %vm2192, %v2359, 0
    %v2460 = vsel %vm2192, %v2360, 0
    %2462 = vmatpush.msra.mxu0 0.0
    %2463 = vmatpush.msra.mxu0 0.0
    %2464 = vmatpush.msra.mxu0 0.0
    %2465 = vmatpush.msra.mxu0 0.0
    %2466 = vmatpush.msra.mxu0 0.0
    %2467 = vmatpush.msra.mxu0 0.0
    %2468 = vmatpush.msra.mxu0 0.0
    %2469 = vmatpush.msra.mxu0 0.0
    %2470 = vmatpush.msra.mxu0 0.0
    %2471 = vmatpush.msra.mxu0 0.0
    %2472 = vmatpush.msra.mxu0 0.0
    %2473 = vmatpush.msra.mxu0 0.0
    %2474 = vmatpush.msra.mxu0 0.0
    %2475 = vmatpush.msra.mxu0 0.0
    %2476 = vmatpush.msra.mxu0 %v1786
    %2477 = vmatpush.msra.mxu0 %v1732
    %2478 = vmatmul.f32.gmra.mxu0 %v2457
    %v2479 = vpop.f32.mrf.mxu0
    %v2480 = vadd.f32 0.0, %v2479
    %2481 = vmatmul.f32.gmra.mxu0 %v2460
    %v2482 = vpop.f32.mrf.mxu0
    %v2483 = vadd.f32 0.0, %v2482
    %2484 = vdwg.mxu0
    %v2486 = vsel %vm2192, %v2361, 0
    %v2489 = vsel %vm2192, %v2362, 0
    %2491 = vmatpush.msra.mxu0 0.0
    %2492 = vmatpush.msra.mxu0 0.0
    %2493 = vmatpush.msra.mxu0 0.0
    %2494 = vmatpush.msra.mxu0 0.0
    %2495 = vmatpush.msra.mxu0 0.0
    %2496 = vmatpush.msra.mxu0 0.0
    %2497 = vmatpush.msra.mxu0 0.0
    %2498 = vmatpush.msra.mxu0 0.0
    %2499 = vmatpush.msra.mxu0 0.0
    %2500 = vmatpush.msra.mxu0 0.0
    %2501 = vmatpush.msra.mxu0 0.0
    %2502 = vmatpush.msra.mxu0 0.0
    %2503 = vmatpush.msra.mxu0 0.0
    %2504 = vmatpush.msra.mxu0 0.0
    %2505 = vmatpush.msra.mxu0 %v1888
    %2506 = vmatpush.msra.mxu0 %v1834
    %2507 = vmatmul.f32.gmra.mxu0 %v2486
    %v2508 = vpop.f32.mrf.mxu0
    %v2509 = vadd.f32 0.0, %v2508
    %2510 = vmatmul.f32.gmra.mxu0 %v2489
    %v2511 = vpop.f32.mrf.mxu0
    %v2512 = vadd.f32 0.0, %v2511
    %2513 = vdwg.mxu0
    %v2515 = vsel %vm2192, %v2363, 0
    %v2518 = vsel %vm2192, %v2364, 0
    %2520 = vmatpush.msra.mxu0 0.0
    %2521 = vmatpush.msra.mxu0 0.0
    %2522 = vmatpush.msra.mxu0 0.0
    %2523 = vmatpush.msra.mxu0 0.0
    %2524 = vmatpush.msra.mxu0 0.0
    %2525 = vmatpush.msra.mxu0 0.0
    %2526 = vmatpush.msra.mxu0 0.0
    %2527 = vmatpush.msra.mxu0 0.0
    %2528 = vmatpush.msra.mxu0 0.0
    %2529 = vmatpush.msra.mxu0 0.0
    %2530 = vmatpush.msra.mxu0 0.0
    %2531 = vmatpush.msra.mxu0 0.0
    %2532 = vmatpush.msra.mxu0 0.0
    %2533 = vmatpush.msra.mxu0 0.0
    %2534 = vmatpush.msra.mxu0 %v1890
    %2535 = vmatpush.msra.mxu0 %v1836
    %2536 = vmatmul.f32.gmra.mxu0 %v2515
    %v2537 = vpop.f32.mrf.mxu0
    %v2538 = vadd.f32 0.0, %v2537
    %2539 = vmatmul.f32.gmra.mxu0 %v2518
    %v2540 = vpop.f32.mrf.mxu0
    %v2541 = vadd.f32 0.0, %v2540
    %2542 = vdwg.mxu0
    %v2544 = vsel %vm2192, %v2365, 0
    %v2547 = vsel %vm2192, %v2366, 0
    %2549 = vmatpush.msra.mxu0 0.0
    %2550 = vmatpush.msra.mxu0 0.0
    %2551 = vmatpush.msra.mxu0 0.0
    %2552 = vmatpush.msra.mxu0 0.0
    %2553 = vmatpush.msra.mxu0 0.0
    %2554 = vmatpush.msra.mxu0 0.0
    %2555 = vmatpush.msra.mxu0 0.0
    %2556 = vmatpush.msra.mxu0 0.0
    %2557 = vmatpush.msra.mxu0 0.0
    %2558 = vmatpush.msra.mxu0 0.0
    %2559 = vmatpush.msra.mxu0 0.0
    %2560 = vmatpush.msra.mxu0 0.0
    %2561 = vmatpush.msra.mxu0 0.0
    %2562 = vmatpush.msra.mxu0 0.0
    %2563 = vmatpush.msra.mxu0 %v1892
    %2564 = vmatpush.msra.mxu0 %v1838
    %2565 = vmatmul.f32.gmra.mxu0 %v2544
    %v2566 = vpop.f32.mrf.mxu0
    %v2567 = vadd.f32 0.0, %v2566
    %2568 = vmatmul.f32.gmra.mxu0 %v2547
    %v2569 = vpop.f32.mrf.mxu0
    %v2570 = vadd.f32 0.0, %v2569
    %2571 = vdwg.mxu0
    %v2573 = vsel %vm2192, %v2367, 0
    %v2576 = vsel %vm2192, %v2368, 0
    %2578 = vmatpush.msra.mxu0 0.0
    %2579 = vmatpush.msra.mxu0 0.0
    %2580 = vmatpush.msra.mxu0 0.0
    %2581 = vmatpush.msra.mxu0 0.0
    %2582 = vmatpush.msra.mxu0 0.0
    %2583 = vmatpush.msra.mxu0 0.0
    %2584 = vmatpush.msra.mxu0 0.0
    %2585 = vmatpush.msra.mxu0 0.0
    %2586 = vmatpush.msra.mxu0 0.0
    %2587 = vmatpush.msra.mxu0 0.0
    %2588 = vmatpush.msra.mxu0 0.0
    %2589 = vmatpush.msra.mxu0 0.0
    %2590 = vmatpush.msra.mxu0 0.0
    %2591 = vmatpush.msra.mxu0 0.0
    %2592 = vmatpush.msra.mxu0 %v1894
    %2593 = vmatpush.msra.mxu0 %v1840
    %2594 = vmatmul.f32.gmra.mxu0 %v2573
    %v2595 = vpop.f32.mrf.mxu0
    %v2596 = vadd.f32 0.0, %v2595
    %2597 = vmatmul.f32.gmra.mxu0 %v2576
    %v2598 = vpop.f32.mrf.mxu0
    %v2599 = vadd.f32 0.0, %v2598
    %2600 = vdwg.mxu0
    %v2601 = vrot.slane %v2451, 4
    %v2602 = vsel %vm495, %v2601, %v2393
    %v2603 = vrot.slane %v2393, 4
    %v2604 = vsel %vm495, %v2451, %v2603
    %v2606 = vunpack.c.l.s4 1983009808
    %v2607 = vunpack.c.0.s8 %v2606
    %v2608 = vperm.slane %v2602, %v2607
    %v2610 = vunpack.c.l.s4 1983009808
    %v2611 = vunpack.c.0.s8 %v2610
    %v2612 = vperm.slane %v2604, %v2611
    %v2613 = vrot.slane %v2480, 4
    %v2614 = vsel %vm495, %v2613, %v2422
    %v2615 = vrot.slane %v2422, 4
    %v2616 = vsel %vm495, %v2480, %v2615
    %v2618 = vunpack.c.l.s4 1983009808
    %v2619 = vunpack.c.0.s8 %v2618
    %v2620 = vperm.slane %v2614, %v2619
    %v2622 = vunpack.c.l.s4 1983009808
    %v2623 = vunpack.c.0.s8 %v2622
    %v2624 = vperm.slane %v2616, %v2623
    %v2625 = vrot.slane %v2620, 4
    %v2626 = vsel %vm495, %v2625, %v2608
    %v2627 = vrot.slane %v2608, 4
    %v2628 = vsel %vm495, %v2620, %v2627
    %v2630 = vunpack.c.l.s4 1934713408
    %v2631 = vunpack.c.0.s8 %v2630
    %v2632 = vperm.slane %v2626, %v2631
    %v2634 = vunpack.c.l.s4 1934713408
    %v2635 = vunpack.c.0.s8 %v2634
    %v2636 = vperm.slane %v2628, %v2635
    %v2637 = vrot.slane %v2624, 4
    %v2638 = vsel %vm495, %v2637, %v2612
    %v2639 = vrot.slane %v2612, 4
    %v2640 = vsel %vm495, %v2624, %v2639
    %v2642 = vunpack.c.l.s4 1934713408
    %v2643 = vunpack.c.0.s8 %v2642
    %v2644 = vperm.slane %v2638, %v2643
    %v2646 = vunpack.c.l.s4 1934713408
    %v2647 = vunpack.c.0.s8 %v2646
    %v2648 = vperm.slane %v2640, %v2647
    %v2649 = vrot.slane %v2632, 4
    %v2650 = vsel %vm495, 0.0, %v2649
    %v2651 = vrot.slane %v2636, 4
    %v2652 = vsel %vm495, 0.0, %v2651
    %v2653 = vrot.slane %v2644, 4
    %v2654 = vsel %vm495, 0.0, %v2653
    %v2655 = vrot.slane %v2648, 4
    %v2656 = vsel %vm495, 0.0, %v2655
    %v2657 = vrot.slane %v2454, 4
    %v2658 = vsel %vm495, %v2657, %v2396
    %v2659 = vrot.slane %v2396, 4
    %v2660 = vsel %vm495, %v2454, %v2659
    %v2662 = vunpack.c.l.s4 1983009808
    %v2663 = vunpack.c.0.s8 %v2662
    %v2664 = vperm.slane %v2658, %v2663
    %v2666 = vunpack.c.l.s4 1983009808
    %v2667 = vunpack.c.0.s8 %v2666
    %v2668 = vperm.slane %v2660, %v2667
    %v2669 = vrot.slane %v2483, 4
    %v2670 = vsel %vm495, %v2669, %v2425
    %v2671 = vrot.slane %v2425, 4
    %v2672 = vsel %vm495, %v2483, %v2671
    %v2674 = vunpack.c.l.s4 1983009808
    %v2675 = vunpack.c.0.s8 %v2674
    %v2676 = vperm.slane %v2670, %v2675
    %v2678 = vunpack.c.l.s4 1983009808
    %v2679 = vunpack.c.0.s8 %v2678
    %v2680 = vperm.slane %v2672, %v2679
    %v2681 = vrot.slane %v2676, 4
    %v2682 = vsel %vm495, %v2681, %v2664
    %v2683 = vrot.slane %v2664, 4
    %v2684 = vsel %vm495, %v2676, %v2683
    %v2686 = vunpack.c.l.s4 1934713408
    %v2687 = vunpack.c.0.s8 %v2686
    %v2688 = vperm.slane %v2682, %v2687
    %v2690 = vunpack.c.l.s4 1934713408
    %v2691 = vunpack.c.0.s8 %v2690
    %v2692 = vperm.slane %v2684, %v2691
    %v2693 = vrot.slane %v2680, 4
    %v2694 = vsel %vm495, %v2693, %v2668
    %v2695 = vrot.slane %v2668, 4
    %v2696 = vsel %vm495, %v2680, %v2695
    %v2698 = vunpack.c.l.s4 1934713408
    %v2699 = vunpack.c.0.s8 %v2698
    %v2700 = vperm.slane %v2694, %v2699
    %v2702 = vunpack.c.l.s4 1934713408
    %v2703 = vunpack.c.0.s8 %v2702
    %v2704 = vperm.slane %v2696, %v2703
    %v2705 = vrot.slane %v2688, 4
    %v2706 = vsel %vm495, 0.0, %v2705
    %v2707 = vrot.slane %v2692, 4
    %v2708 = vsel %vm495, 0.0, %v2707
    %v2709 = vrot.slane %v2700, 4
    %v2710 = vsel %vm495, 0.0, %v2709
    %v2711 = vrot.slane %v2704, 4
    %v2712 = vsel %vm495, 0.0, %v2711
    %v2713 = vrot.slane %v2567, 4
    %v2714 = vsel %vm495, %v2713, %v2509
    %v2715 = vrot.slane %v2509, 4
    %v2716 = vsel %vm495, %v2567, %v2715
    %v2718 = vunpack.c.l.s4 1983009808
    %v2719 = vunpack.c.0.s8 %v2718
    %v2720 = vperm.slane %v2714, %v2719
    %v2722 = vunpack.c.l.s4 1983009808
    %v2723 = vunpack.c.0.s8 %v2722
    %v2724 = vperm.slane %v2716, %v2723
    %v2725 = vrot.slane %v2596, 4
    %v2726 = vsel %vm495, %v2725, %v2538
    %v2727 = vrot.slane %v2538, 4
    %v2728 = vsel %vm495, %v2596, %v2727
    %v2730 = vunpack.c.l.s4 1983009808
    %v2731 = vunpack.c.0.s8 %v2730
    %v2732 = vperm.slane %v2726, %v2731
    %v2734 = vunpack.c.l.s4 1983009808
    %v2735 = vunpack.c.0.s8 %v2734
    %v2736 = vperm.slane %v2728, %v2735
    %v2737 = vrot.slane %v2732, 4
    %v2738 = vsel %vm495, %v2737, %v2720
    %v2739 = vrot.slane %v2720, 4
    %v2740 = vsel %vm495, %v2732, %v2739
    %v2742 = vunpack.c.l.s4 1934713408
    %v2743 = vunpack.c.0.s8 %v2742
    %v2744 = vperm.slane %v2738, %v2743
    %v2746 = vunpack.c.l.s4 1934713408
    %v2747 = vunpack.c.0.s8 %v2746
    %v2748 = vperm.slane %v2740, %v2747
    %v2749 = vrot.slane %v2736, 4
    %v2750 = vsel %vm495, %v2749, %v2724
    %v2751 = vrot.slane %v2724, 4
    %v2752 = vsel %vm495, %v2736, %v2751
    %v2754 = vunpack.c.l.s4 1934713408
    %v2755 = vunpack.c.0.s8 %v2754
    %v2756 = vperm.slane %v2750, %v2755
    %v2758 = vunpack.c.l.s4 1934713408
    %v2759 = vunpack.c.0.s8 %v2758
    %v2760 = vperm.slane %v2752, %v2759
    %v2761 = vrot.slane %v2744, 4
    %v2762 = vsel %vm495, 0.0, %v2761
    %v2763 = vrot.slane %v2748, 4
    %v2764 = vsel %vm495, 0.0, %v2763
    %v2765 = vrot.slane %v2756, 4
    %v2766 = vsel %vm495, 0.0, %v2765
    %v2767 = vrot.slane %v2760, 4
    %v2768 = vsel %vm495, 0.0, %v2767
    %v2769 = vrot.slane %v2570, 4
    %v2770 = vsel %vm495, %v2769, %v2512
    %v2771 = vrot.slane %v2512, 4
    %v2772 = vsel %vm495, %v2570, %v2771
    %v2774 = vunpack.c.l.s4 1983009808
    %v2775 = vunpack.c.0.s8 %v2774
    %v2776 = vperm.slane %v2770, %v2775
    %v2778 = vunpack.c.l.s4 1983009808
    %v2779 = vunpack.c.0.s8 %v2778
    %v2780 = vperm.slane %v2772, %v2779
    %v2781 = vrot.slane %v2599, 4
    %v2782 = vsel %vm495, %v2781, %v2541
    %v2783 = vrot.slane %v2541, 4
    %v2784 = vsel %vm495, %v2599, %v2783
    %v2786 = vunpack.c.l.s4 1983009808
    %v2787 = vunpack.c.0.s8 %v2786
    %v2788 = vperm.slane %v2782, %v2787
    %v2790 = vunpack.c.l.s4 1983009808
    %v2791 = vunpack.c.0.s8 %v2790
    %v2792 = vperm.slane %v2784, %v2791
    %v2793 = vrot.slane %v2788, 4
    %v2794 = vsel %vm495, %v2793, %v2776
    %v2795 = vrot.slane %v2776, 4
    %v2796 = vsel %vm495, %v2788, %v2795
    %v2798 = vunpack.c.l.s4 1934713408
    %v2799 = vunpack.c.0.s8 %v2798
    %v2800 = vperm.slane %v2794, %v2799
    %v2802 = vunpack.c.l.s4 1934713408
    %v2803 = vunpack.c.0.s8 %v2802
    %v2804 = vperm.slane %v2796, %v2803
    %v2805 = vrot.slane %v2792, 4
    %v2806 = vsel %vm495, %v2805, %v2780
    %v2807 = vrot.slane %v2780, 4
    %v2808 = vsel %vm495, %v2792, %v2807
    %v2810 = vunpack.c.l.s4 1934713408
    %v2811 = vunpack.c.0.s8 %v2810
    %v2812 = vperm.slane %v2806, %v2811
    %v2814 = vunpack.c.l.s4 1934713408
    %v2815 = vunpack.c.0.s8 %v2814
    %v2816 = vperm.slane %v2808, %v2815
    %v2817 = vrot.slane %v2800, 4
    %v2818 = vsel %vm495, 0.0, %v2817
    %v2819 = vrot.slane %v2804, 4
    %v2820 = vsel %vm495, 0.0, %v2819
    %v2821 = vrot.slane %v2812, 4
    %v2822 = vsel %vm495, 0.0, %v2821
    %v2823 = vrot.slane %v2816, 4
    %v2824 = vsel %vm495, 0.0, %v2823
    %v2825 = vsel %vm495, %v2651, %v2632
    %v2827 = vunpack.c.l.s4 1983009808
    %v2828 = vunpack.c.0.s8 %v2827
    %v2829 = vperm.slane %v2825, %v2828
    %v2830 = vrot.slane %v2652, 4
    %v2831 = vsel %vm495, %v2830, %v2650
    %v2833 = vunpack.c.l.s4 1983009808
    %v2834 = vunpack.c.0.s8 %v2833
    %v2835 = vperm.slane %v2831, %v2834
    %v2836 = vsel %vm495, %v2655, %v2644
    %v2838 = vunpack.c.l.s4 1983009808
    %v2839 = vunpack.c.0.s8 %v2838
    %v2840 = vperm.slane %v2836, %v2839
    %v2841 = vrot.slane %v2656, 4
    %v2842 = vsel %vm495, %v2841, %v2654
    %v2844 = vunpack.c.l.s4 1983009808
    %v2845 = vunpack.c.0.s8 %v2844
    %v2846 = vperm.slane %v2842, %v2845
    %v2847 = vrot.slane %v2835, 4
    %v2848 = vsel %vm495, %v2847, %v2829
    %v2849 = vrot.slane %v2829, 4
    %v2850 = vsel %vm495, %v2835, %v2849
    %v2852 = vunpack.c.l.s4 1934713408
    %v2853 = vunpack.c.0.s8 %v2852
    %v2854 = vperm.slane %v2848, %v2853
    %v2856 = vunpack.c.l.s4 1934713408
    %v2857 = vunpack.c.0.s8 %v2856
    %v2858 = vperm.slane %v2850, %v2857
    %v2859 = vrot.slane %v2846, 4
    %v2860 = vsel %vm495, %v2859, %v2840
    %v2861 = vrot.slane %v2840, 4
    %v2862 = vsel %vm495, %v2846, %v2861
    %v2864 = vunpack.c.l.s4 1934713408
    %v2865 = vunpack.c.0.s8 %v2864
    %v2866 = vperm.slane %v2860, %v2865
    %v2868 = vunpack.c.l.s4 1934713408
    %v2869 = vunpack.c.0.s8 %v2868
    %v2870 = vperm.slane %v2862, %v2869
    %v2871 = vrot.slane %v2866, 4
    %v2872 = vsel %vm495, %v2871, %v2854
    %v2873 = vrot.slane %v2854, 4
    %v2874 = vsel %vm495, %v2866, %v2873
    %v2875 = vrot.slane %v2870, 4
    %v2876 = vsel %vm495, %v2875, %v2858
    %v2877 = vrot.slane %v2858, 4
    %v2878 = vsel %vm495, %v2870, %v2877
    %v2879 = vsel %vm495, %v2707, %v2688
    %v2881 = vunpack.c.l.s4 1983009808
    %v2882 = vunpack.c.0.s8 %v2881
    %v2883 = vperm.slane %v2879, %v2882
    %v2884 = vrot.slane %v2708, 4
    %v2885 = vsel %vm495, %v2884, %v2706
    %v2887 = vunpack.c.l.s4 1983009808
    %v2888 = vunpack.c.0.s8 %v2887
    %v2889 = vperm.slane %v2885, %v2888
    %v2890 = vsel %vm495, %v2711, %v2700
    %v2892 = vunpack.c.l.s4 1983009808
    %v2893 = vunpack.c.0.s8 %v2892
    %v2894 = vperm.slane %v2890, %v2893
    %v2895 = vrot.slane %v2712, 4
    %v2896 = vsel %vm495, %v2895, %v2710
    %v2898 = vunpack.c.l.s4 1983009808
    %v2899 = vunpack.c.0.s8 %v2898
    %v2900 = vperm.slane %v2896, %v2899
    %v2901 = vrot.slane %v2889, 4
    %v2902 = vsel %vm495, %v2901, %v2883
    %v2903 = vrot.slane %v2883, 4
    %v2904 = vsel %vm495, %v2889, %v2903
    %v2906 = vunpack.c.l.s4 1934713408
    %v2907 = vunpack.c.0.s8 %v2906
    %v2908 = vperm.slane %v2902, %v2907
    %v2910 = vunpack.c.l.s4 1934713408
    %v2911 = vunpack.c.0.s8 %v2910
    %v2912 = vperm.slane %v2904, %v2911
    %v2913 = vrot.slane %v2900, 4
    %v2914 = vsel %vm495, %v2913, %v2894
    %v2915 = vrot.slane %v2894, 4
    %v2916 = vsel %vm495, %v2900, %v2915
    %v2918 = vunpack.c.l.s4 1934713408
    %v2919 = vunpack.c.0.s8 %v2918
    %v2920 = vperm.slane %v2914, %v2919
    %v2922 = vunpack.c.l.s4 1934713408
    %v2923 = vunpack.c.0.s8 %v2922
    %v2924 = vperm.slane %v2916, %v2923
    %v2925 = vrot.slane %v2920, 4
    %v2926 = vsel %vm495, %v2925, %v2908
    %v2927 = vrot.slane %v2908, 4
    %v2928 = vsel %vm495, %v2920, %v2927
    %v2929 = vrot.slane %v2924, 4
    %v2930 = vsel %vm495, %v2929, %v2912
    %v2931 = vrot.slane %v2912, 4
    %v2932 = vsel %vm495, %v2924, %v2931
    %v2933 = vsel %vm495, %v2763, %v2744
    %v2935 = vunpack.c.l.s4 1983009808
    %v2936 = vunpack.c.0.s8 %v2935
    %v2937 = vperm.slane %v2933, %v2936
    %v2938 = vrot.slane %v2764, 4
    %v2939 = vsel %vm495, %v2938, %v2762
    %v2941 = vunpack.c.l.s4 1983009808
    %v2942 = vunpack.c.0.s8 %v2941
    %v2943 = vperm.slane %v2939, %v2942
    %v2944 = vsel %vm495, %v2767, %v2756
    %v2946 = vunpack.c.l.s4 1983009808
    %v2947 = vunpack.c.0.s8 %v2946
    %v2948 = vperm.slane %v2944, %v2947
    %v2949 = vrot.slane %v2768, 4
    %v2950 = vsel %vm495, %v2949, %v2766
    %v2952 = vunpack.c.l.s4 1983009808
    %v2953 = vunpack.c.0.s8 %v2952
    %v2954 = vperm.slane %v2950, %v2953
    %v2955 = vrot.slane %v2943, 4
    %v2956 = vsel %vm495, %v2955, %v2937
    %v2957 = vrot.slane %v2937, 4
    %v2958 = vsel %vm495, %v2943, %v2957
    %v2960 = vunpack.c.l.s4 1934713408
    %v2961 = vunpack.c.0.s8 %v2960
    %v2962 = vperm.slane %v2956, %v2961
    %v2964 = vunpack.c.l.s4 1934713408
    %v2965 = vunpack.c.0.s8 %v2964
    %v2966 = vperm.slane %v2958, %v2965
    %v2967 = vrot.slane %v2954, 4
    %v2968 = vsel %vm495, %v2967, %v2948
    %v2969 = vrot.slane %v2948, 4
    %v2970 = vsel %vm495, %v2954, %v2969
    %v2972 = vunpack.c.l.s4 1934713408
    %v2973 = vunpack.c.0.s8 %v2972
    %v2974 = vperm.slane %v2968, %v2973
    %v2976 = vunpack.c.l.s4 1934713408
    %v2977 = vunpack.c.0.s8 %v2976
    %v2978 = vperm.slane %v2970, %v2977
    %v2979 = vrot.slane %v2974, 4
    %v2980 = vsel %vm495, %v2979, %v2962
    %v2981 = vrot.slane %v2962, 4
    %v2982 = vsel %vm495, %v2974, %v2981
    %v2983 = vrot.slane %v2978, 4
    %v2984 = vsel %vm495, %v2983, %v2966
    %v2985 = vrot.slane %v2966, 4
    %v2986 = vsel %vm495, %v2978, %v2985
    %v2987 = vsel %vm495, %v2819, %v2800
    %v2989 = vunpack.c.l.s4 1983009808
    %v2990 = vunpack.c.0.s8 %v2989
    %v2991 = vperm.slane %v2987, %v2990
    %v2992 = vrot.slane %v2820, 4
    %v2993 = vsel %vm495, %v2992, %v2818
    %v2995 = vunpack.c.l.s4 1983009808
    %v2996 = vunpack.c.0.s8 %v2995
    %v2997 = vperm.slane %v2993, %v2996
    %v2998 = vsel %vm495, %v2823, %v2812
    %v3000 = vunpack.c.l.s4 1983009808
    %v3001 = vunpack.c.0.s8 %v3000
    %v3002 = vperm.slane %v2998, %v3001
    %v3003 = vrot.slane %v2824, 4
    %v3004 = vsel %vm495, %v3003, %v2822
    %v3006 = vunpack.c.l.s4 1983009808
    %v3007 = vunpack.c.0.s8 %v3006
    %v3008 = vperm.slane %v3004, %v3007
    %v3009 = vrot.slane %v2997, 4
    %v3010 = vsel %vm495, %v3009, %v2991
    %v3011 = vrot.slane %v2991, 4
    %v3012 = vsel %vm495, %v2997, %v3011
    %v3014 = vunpack.c.l.s4 1934713408
    %v3015 = vunpack.c.0.s8 %v3014
    %v3016 = vperm.slane %v3010, %v3015
    %v3018 = vunpack.c.l.s4 1934713408
    %v3019 = vunpack.c.0.s8 %v3018
    %v3020 = vperm.slane %v3012, %v3019
    %v3021 = vrot.slane %v3008, 4
    %v3022 = vsel %vm495, %v3021, %v3002
    %v3023 = vrot.slane %v3002, 4
    %v3024 = vsel %vm495, %v3008, %v3023
    %v3026 = vunpack.c.l.s4 1934713408
    %v3027 = vunpack.c.0.s8 %v3026
    %v3028 = vperm.slane %v3022, %v3027
    %v3030 = vunpack.c.l.s4 1934713408
    %v3031 = vunpack.c.0.s8 %v3030
    %v3032 = vperm.slane %v3024, %v3031
    %v3033 = vrot.slane %v3028, 4
    %v3034 = vsel %vm495, %v3033, %v3016
    %v3035 = vrot.slane %v3016, 4
    %v3036 = vsel %vm495, %v3028, %v3035
    %v3037 = vrot.slane %v3032, 4
    %v3038 = vsel %vm495, %v3037, %v3020
    %v3039 = vrot.slane %v3020, 4
    %v3040 = vsel %vm495, %v3032, %v3039
    %3045 = vrot.lane.b32.xlu0 %v2874, 32
    %v3046 = vpop.permute.xlu0 %3045
    %3047 = vrot.lane.b32.xlu0 %v2928, 32
    %v3048 = vpop.permute.xlu0 %3047
    %3049 = vrot.lane.b32.xlu0 %v2982, 32
    %v3050 = vpop.permute.xlu0 %3049
    %3051 = vrot.lane.b32.xlu0 %v3036, 32
    %v3052 = vpop.permute.xlu0 %3051
    %3061 = vrot.lane.b32.xlu0 %v2876, 64
    %v3062 = vpop.permute.xlu0 %3061
    %3063 = vrot.lane.b32.xlu0 %v2930, 64
    %v3064 = vpop.permute.xlu0 %3063
    %3065 = vrot.lane.b32.xlu0 %v2984, 64
    %v3066 = vpop.permute.xlu0 %3065
    %3067 = vrot.lane.b32.xlu0 %v3038, 64
    %v3068 = vpop.permute.xlu0 %3067
    %3077 = vrot.lane.b32.xlu0 %v2878, 96
    %v3078 = vpop.permute.xlu0 %3077
    %3079 = vrot.lane.b32.xlu0 %v2932, 96
    %v3080 = vpop.permute.xlu0 %3079
    %3081 = vrot.lane.b32.xlu0 %v2986, 96
    %v3082 = vpop.permute.xlu0 %3081
    %3083 = vrot.lane.b32.xlu0 %v3040, 96
    %v3084 = vpop.permute.xlu0 %3083
    %v3089 = vsel %vm1895, %v2872, %v3046
    %v3090 = vsel %vm1895, %v2926, %v3048
    %v3091 = vsel %vm1895, %v2980, %v3050
    %v3092 = vsel %vm1895, %v3034, %v3052
    %vm3093 = vcmask 523264
    %v3094 = vsel %vm3093, %v3089, %v3062
    %v3095 = vsel %vm3093, %v3090, %v3064
    %v3096 = vsel %vm3093, %v3091, %v3066
    %v3097 = vsel %vm3093, %v3092, %v3068
    %vm3098 = vcmask 785408
    %v3099 = vsel %vm3098, %v3094, %v3078
    %v3100 = vsel %vm3098, %v3095, %v3080
    %v3101 = vsel %vm3098, %v3096, %v3082
    %v3102 = vsel %vm3098, %v3097, %v3084
    %v3104 = vperm.slane %v453, 0
    %3106 = vmatpush.msra.mxu0 %v452
    %3107 = vmatpush.msra.mxu0 %v451
    %3108 = vmatpush.msra.mxu0 %v450
    %3109 = vmatpush.msra.mxu0 %v449
    %3110 = vmatpush.msra.mxu0 %v448
    %3111 = vmatpush.msra.mxu0 %v447
    %3112 = vmatpush.msra.mxu0 %v446
    %3113 = vmatpush.msra.mxu0 %v445
    %3114 = vmatpush.msra.mxu0 %v444
    %3115 = vmatpush.msra.mxu0 %v443
    %3116 = vmatpush.msra.mxu0 %v442
    %3117 = vmatpush.msra.mxu0 %v441
    %3118 = vmatpush.msra.mxu0 %v440
    %3119 = vmatpush.msra.mxu0 %v439
    %3120 = vmatpush.msra.mxu0 %v438
    %3121 = vmatpush.msra.mxu0 %v437
    %3122 = vmatmul.f32.gmra.mxu0 %v3099
    %v3123 = vpop.f32.mrf.mxu0
    %v3124 = vadd.f32 %v3104, %v3123
    %3125 = vmatmul.f32.gmra.mxu0 %v3100
    %v3126 = vpop.f32.mrf.mxu0
    %v3127 = vadd.f32 %v3104, %v3126
    %3128 = vmatmul.f32.gmra.mxu0 %v3101
    %v3129 = vpop.f32.mrf.mxu0
    %v3130 = vadd.f32 %v3104, %v3129
    %3131 = vmatmul.f32.gmra.mxu0 %v3102
    %v3132 = vpop.f32.mrf.mxu0
    %v3133 = vadd.f32 %v3104, %v3132
    %3134 = vdwg.mxu0
    %v3135 = vadd.f32 %v263, %v3124
    %v3136 = vadd.f32 %v264, %v3127
    %v3137 = vadd.f32 %v265, %v3130
    %v3138 = vadd.f32 %v266, %v3133
    %v3139 = vld [vmem:[%s14] sm:$0x1]
    %v3140 = vld [vmem:[%s15] sm:$0x1]
    %3141 = vadd.xlane.f32.xlu0 %v3135
    %v3142 = vpop.xlane.xlu0 %3141
    %3143 = vadd.xlane.f32.xlu0 %v3136
    %v3144 = vpop.xlane.xlu0 %3143
    %3145 = vadd.xlane.f32.xlu0 %v3137
    %v3146 = vpop.xlane.xlu0 %3145
    %3147 = vadd.xlane.f32.xlu0 %v3138
    %v3148 = vpop.xlane.xlu0 %3147
    %v3149 = vrcp.pop 128.0
    %v3150 = vmul.f32 128.0, %v3149
    %v3151 = vsub.f32 1.0, %v3150
    %v3152 = vmul.f32 %v3149, %v3151
    %v3153 = vadd.f32 %v3149, %v3152
    %vm3154 = vweird.f32 %v3149
    %v3155 = vsel %vm3154, %v3149, %v3153
    %v3156 = vmul.f32 %v3142, %v3155
    %v3157 = vmul.f32 %v3144, %v3155
    %v3158 = vmul.f32 %v3146, %v3155
    %v3159 = vmul.f32 %v3148, %v3155
    %v3160 = vsub.f32 %v3135, %v3156
    %v3161 = vsub.f32 %v3136, %v3157
    %v3162 = vsub.f32 %v3137, %v3158
    %v3163 = vsub.f32 %v3138, %v3159
    %v3164 = vmul.f32 %v3160, %v3160
    %v3165 = vmul.f32 %v3161, %v3161
    %v3166 = vmul.f32 %v3162, %v3162
    %v3167 = vmul.f32 %v3163, %v3163
    %3168 = vadd.xlane.f32.xlu0 %v3164
    %v3169 = vpop.xlane.xlu0 %3168
    %3170 = vadd.xlane.f32.xlu0 %v3165
    %v3171 = vpop.xlane.xlu0 %3170
    %3172 = vadd.xlane.f32.xlu0 %v3166
    %v3173 = vpop.xlane.xlu0 %3172
    %3174 = vadd.xlane.f32.xlu0 %v3167
    %v3175 = vpop.xlane.xlu0 %3174
    %v3176 = vmul.f32 %v3169, %v3155
    %v3177 = vmul.f32 %v3171, %v3155
    %v3178 = vmul.f32 %v3173, %v3155
    %v3179 = vmul.f32 %v3175, %v3155
    %v3180 = vadd.f32 %v3176, 1e-05
    %v3181 = vadd.f32 %v3177, 1e-05
    %v3182 = vadd.f32 %v3178, 1e-05
    %v3183 = vadd.f32 %v3179, 1e-05
    %v3184 = vrsqrt.pop %v3180
    %v3185 = vmul.f32 %v3184, %v3180
    %v3186 = vmul.f32 %v3185, %v3184
    %v3187 = vmul.f32 0.5, %v3186
    %v3188 = vsub.f32 1.5, %v3187
    %v3189 = vmul.f32 %v3184, %v3188
    %vm3190 = vweird.f32 %v3180
    %vm3191 = vweird.f32 %v3184
    %vm3192 = vmor %vm3190, %vm3191
    %v3193 = vsel %vm3192, %v3184, %v3189
    %v3194 = vrsqrt.pop %v3181
    %v3195 = vmul.f32 %v3194, %v3181
    %v3196 = vmul.f32 %v3195, %v3194
    %v3197 = vmul.f32 0.5, %v3196
    %v3198 = vsub.f32 1.5, %v3197
    %v3199 = vmul.f32 %v3194, %v3198
    %vm3200 = vweird.f32 %v3181
    %vm3201 = vweird.f32 %v3194
    %vm3202 = vmor %vm3200, %vm3201
    %v3203 = vsel %vm3202, %v3194, %v3199
    %v3204 = vrsqrt.pop %v3182
    %v3205 = vmul.f32 %v3204, %v3182
    %v3206 = vmul.f32 %v3205, %v3204
    %v3207 = vmul.f32 0.5, %v3206
    %v3208 = vsub.f32 1.5, %v3207
    %v3209 = vmul.f32 %v3204, %v3208
    %vm3210 = vweird.f32 %v3182
    %vm3211 = vweird.f32 %v3204
    %vm3212 = vmor %vm3210, %vm3211
    %v3213 = vsel %vm3212, %v3204, %v3209
    %v3214 = vrsqrt.pop %v3183
    %v3215 = vmul.f32 %v3214, %v3183
    %v3216 = vmul.f32 %v3215, %v3214
    %v3217 = vmul.f32 0.5, %v3216
    %v3218 = vsub.f32 1.5, %v3217
    %v3219 = vmul.f32 %v3214, %v3218
    %vm3220 = vweird.f32 %v3183
    %vm3221 = vweird.f32 %v3214
    %vm3222 = vmor %vm3220, %vm3221
    %v3223 = vsel %vm3222, %v3214, %v3219
    %v3224 = vmul.f32 %v3160, %v3193
    %v3225 = vmul.f32 %v3161, %v3203
    %v3226 = vmul.f32 %v3162, %v3213
    %v3227 = vmul.f32 %v3163, %v3223
    %v3229 = vperm.slane %v3139, 0
    %v3231 = vmul.f32 %v3224, %v3229
    %v3232 = vmul.f32 %v3225, %v3229
    %v3233 = vmul.f32 %v3226, %v3229
    %v3234 = vmul.f32 %v3227, %v3229
    %v3236 = vperm.slane %v3140, 0
    %v3238 = vadd.f32 %v3231, %v3236
    %v3239 = vadd.f32 %v3232, %v3236
    %v3240 = vadd.f32 %v3233, %v3236
    %v3241 = vadd.f32 %v3234, %v3236
    %v3242 = vld [vmem:[#allocation14] sm:$0xff]
    %v3243 = vld [vmem:[#allocation14 + $0x8] sm:$0xff]
    %v3244 = vld [vmem:[#allocation14 + $0x10] sm:$0xff]
    %v3245 = vld [vmem:[#allocation14 + $0x18] sm:$0xff]
    %v3246 = vld [vmem:[#allocation14 + $0x20] sm:$0xff]
    %v3247 = vld [vmem:[#allocation14 + $0x28] sm:$0xff]
    %v3248 = vld [vmem:[#allocation14 + $0x30] sm:$0xff]
    %v3249 = vld [vmem:[#allocation14 + $0x38] sm:$0xff]
    %v3250 = vld [vmem:[#allocation14 + $0x40] sm:$0xff]
    %v3251 = vld [vmem:[#allocation14 + $0x48] sm:$0xff]
    %v3252 = vld [vmem:[#allocation14 + $0x50] sm:$0xff]
    %v3253 = vld [vmem:[#allocation14 + $0x58] sm:$0xff]
    %v3254 = vld [vmem:[#allocation14 + $0x60] sm:$0xff]
    %v3255 = vld [vmem:[#allocation14 + $0x68] sm:$0xff]
    %v3256 = vld [vmem:[#allocation14 + $0x70] sm:$0xff]
    %v3257 = vld [vmem:[#allocation14 + $0x78] sm:$0xff]
    %v3258 = vld [vmem:[%s9] sm:$0x1]
    %v3260 = vperm.slane %v3258, 0
    %3262 = vmatpush.msra.mxu0 %v3257
    %3263 = vmatpush.msra.mxu0 %v3256
    %3264 = vmatpush.msra.mxu0 %v3255
    %3265 = vmatpush.msra.mxu0 %v3254
    %3266 = vmatpush.msra.mxu0 %v3253
    %3267 = vmatpush.msra.mxu0 %v3252
    %3268 = vmatpush.msra.mxu0 %v3251
    %3269 = vmatpush.msra.mxu0 %v3250
    %3270 = vmatpush.msra.mxu0 %v3249
    %3271 = vmatpush.msra.mxu0 %v3248
    %3272 = vmatpush.msra.mxu0 %v3247
    %3273 = vmatpush.msra.mxu0 %v3246
    %3274 = vmatpush.msra.mxu0 %v3245
    %3275 = vmatpush.msra.mxu0 %v3244
    %3276 = vmatpush.msra.mxu0 %v3243
    %3277 = vmatpush.msra.mxu0 %v3242
    %3278 = vmatmul.f32.gmra.mxu0 %v3238
    %v3279 = vpop.f32.mrf.mxu0
    %v3280 = vadd.f32 %v3260, %v3279
    %3281 = vmatmul.f32.gmra.mxu0 %v3239
    %v3282 = vpop.f32.mrf.mxu0
    %v3283 = vadd.f32 %v3260, %v3282
    %3284 = vmatmul.f32.gmra.mxu0 %v3240
    %v3285 = vpop.f32.mrf.mxu0
    %v3286 = vadd.f32 %v3260, %v3285
    %3287 = vmatmul.f32.gmra.mxu0 %v3241
    %v3288 = vpop.f32.mrf.mxu0
    %v3289 = vadd.f32 %v3260, %v3288
    %3290 = vdwg.mxu0
    %v3291 = vld [vmem:[#allocation16] sm:$0xff]
    %v3292 = vld [vmem:[#allocation16 + $0x8] sm:$0xff]
    %v3293 = vld [vmem:[#allocation16 + $0x10] sm:$0xff]
    %v3294 = vld [vmem:[#allocation16 + $0x18] sm:$0xff]
    %v3295 = vld [vmem:[#allocation16 + $0x20] sm:$0xff]
    %v3296 = vld [vmem:[#allocation16 + $0x28] sm:$0xff]
    %v3297 = vld [vmem:[#allocation16 + $0x30] sm:$0xff]
    %v3298 = vld [vmem:[#allocation16 + $0x38] sm:$0xff]
    %v3299 = vld [vmem:[#allocation16 + $0x40] sm:$0xff]
    %v3300 = vld [vmem:[#allocation16 + $0x48] sm:$0xff]
    %v3301 = vld [vmem:[#allocation16 + $0x50] sm:$0xff]
    %v3302 = vld [vmem:[#allocation16 + $0x58] sm:$0xff]
    %v3303 = vld [vmem:[#allocation16 + $0x60] sm:$0xff]
    %v3304 = vld [vmem:[#allocation16 + $0x68] sm:$0xff]
    %v3305 = vld [vmem:[#allocation16 + $0x70] sm:$0xff]
    %v3306 = vld [vmem:[#allocation16 + $0x78] sm:$0xff]
    %v3307 = vld [vmem:[#allocation16 + $0x80] sm:$0xff]
    %v3308 = vld [vmem:[#allocation16 + $0x88] sm:$0xff]
    %v3309 = vld [vmem:[#allocation16 + $0x90] sm:$0xff]
    %v3310 = vld [vmem:[#allocation16 + $0x98] sm:$0xff]
    %v3311 = vld [vmem:[#allocation16 + $0xa0] sm:$0xff]
    %v3312 = vld [vmem:[#allocation16 + $0xa8] sm:$0xff]
    %v3313 = vld [vmem:[#allocation16 + $0xb0] sm:$0xff]
    %v3314 = vld [vmem:[#allocation16 + $0xb8] sm:$0xff]
    %v3315 = vld [vmem:[#allocation16 + $0xc0] sm:$0xff]
    %v3316 = vld [vmem:[#allocation16 + $0xc8] sm:$0xff]
    %v3317 = vld [vmem:[#allocation16 + $0xd0] sm:$0xff]
    %v3318 = vld [vmem:[#allocation16 + $0xd8] sm:$0xff]
    %v3319 = vld [vmem:[#allocation16 + $0xe0] sm:$0xff]
    %v3320 = vld [vmem:[#allocation16 + $0xe8] sm:$0xff]
    %v3321 = vld [vmem:[#allocation16 + $0xf0] sm:$0xff]
    %v3322 = vld [vmem:[#allocation16 + $0xf8] sm:$0xff]
    %v3323 = vld [vmem:[%s11] sm:$0x3]
    %v3325 = vperm.slane %v3323, 0
    %v3326 = vperm.slane %v3323, 1
    %3329 = vmatpush.msra.mxu0 %v3321
    %3330 = vmatpush.msra.mxu0 %v3319
    %3331 = vmatpush.msra.mxu0 %v3317
    %3332 = vmatpush.msra.mxu0 %v3315
    %3333 = vmatpush.msra.mxu0 %v3313
    %3334 = vmatpush.msra.mxu0 %v3311
    %3335 = vmatpush.msra.mxu0 %v3309
    %3336 = vmatpush.msra.mxu0 %v3307
    %3337 = vmatpush.msra.mxu0 %v3305
    %3338 = vmatpush.msra.mxu0 %v3303
    %3339 = vmatpush.msra.mxu0 %v3301
    %3340 = vmatpush.msra.mxu0 %v3299
    %3341 = vmatpush.msra.mxu0 %v3297
    %3342 = vmatpush.msra.mxu0 %v3295
    %3343 = vmatpush.msra.mxu0 %v3293
    %3344 = vmatpush.msra.mxu0 %v3291
    %3345 = vmatmul.f32.gmra.mxu0 %v267
    %v3346 = vpop.f32.mrf.mxu0
    %v3347 = vadd.f32 %v3325, %v3346
    %3348 = vmatmul.f32.gmra.mxu0 %v268
    %v3349 = vpop.f32.mrf.mxu0
    %v3350 = vadd.f32 %v3325, %v3349
    %3351 = vmatmul.f32.gmra.mxu0 %v269
    %v3352 = vpop.f32.mrf.mxu0
    %v3353 = vadd.f32 %v3325, %v3352
    %3354 = vmatmul.f32.gmra.mxu0 %v270
    %v3355 = vpop.f32.mrf.mxu0
    %v3356 = vadd.f32 %v3325, %v3355
    %3357 = vdwg.mxu0
    %3358 = vmatpush.msra.mxu0 %v3322
    %3359 = vmatpush.msra.mxu0 %v3320
    %3360 = vmatpush.msra.mxu0 %v3318
    %3361 = vmatpush.msra.mxu0 %v3316
    %3362 = vmatpush.msra.mxu0 %v3314
    %3363 = vmatpush.msra.mxu0 %v3312
    %3364 = vmatpush.msra.mxu0 %v3310
    %3365 = vmatpush.msra.mxu0 %v3308
    %3366 = vmatpush.msra.mxu0 %v3306
    %3367 = vmatpush.msra.mxu0 %v3304
    %3368 = vmatpush.msra.mxu0 %v3302
    %3369 = vmatpush.msra.mxu0 %v3300
    %3370 = vmatpush.msra.mxu0 %v3298
    %3371 = vmatpush.msra.mxu0 %v3296
    %3372 = vmatpush.msra.mxu0 %v3294
    %3373 = vmatpush.msra.mxu0 %v3292
    %3374 = vmatmul.f32.gmra.mxu0 %v267
    %v3375 = vpop.f32.mrf.mxu0
    %v3376 = vadd.f32 %v3326, %v3375
    %3377 = vmatmul.f32.gmra.mxu0 %v268
    %v3378 = vpop.f32.mrf.mxu0
    %v3379 = vadd.f32 %v3326, %v3378
    %3380 = vmatmul.f32.gmra.mxu0 %v269
    %v3381 = vpop.f32.mrf.mxu0
    %v3382 = vadd.f32 %v3326, %v3381
    %3383 = vmatmul.f32.gmra.mxu0 %v270
    %v3384 = vpop.f32.mrf.mxu0
    %v3385 = vadd.f32 %v3326, %v3384
    %3386 = vdwg.mxu0
    %v3387 = vld [vmem:[#allocation17] sm:$0xff]
    %v3388 = vld [vmem:[#allocation17 + $0x8] sm:$0xff]
    %v3389 = vld [vmem:[#allocation17 + $0x10] sm:$0xff]
    %v3390 = vld [vmem:[#allocation17 + $0x18] sm:$0xff]
    %v3391 = vld [vmem:[#allocation17 + $0x20] sm:$0xff]
    %v3392 = vld [vmem:[#allocation17 + $0x28] sm:$0xff]
    %v3393 = vld [vmem:[#allocation17 + $0x30] sm:$0xff]
    %v3394 = vld [vmem:[#allocation17 + $0x38] sm:$0xff]
    %v3395 = vld [vmem:[#allocation17 + $0x40] sm:$0xff]
    %v3396 = vld [vmem:[#allocation17 + $0x48] sm:$0xff]
    %v3397 = vld [vmem:[#allocation17 + $0x50] sm:$0xff]
    %v3398 = vld [vmem:[#allocation17 + $0x58] sm:$0xff]
    %v3399 = vld [vmem:[#allocation17 + $0x60] sm:$0xff]
    %v3400 = vld [vmem:[#allocation17 + $0x68] sm:$0xff]
    %v3401 = vld [vmem:[#allocation17 + $0x70] sm:$0xff]
    %v3402 = vld [vmem:[#allocation17 + $0x78] sm:$0xff]
    %v3403 = vld [vmem:[%s13] sm:$0x1]
    %3408 = vrot.lane.b32.xlu0 %v3280, 96
    %v3409 = vpop.permute.xlu0 %3408
    %3410 = vrot.lane.b32.xlu0 %v3283, 96
    %v3411 = vpop.permute.xlu0 %3410
    %3412 = vrot.lane.b32.xlu0 %v3286, 96
    %v3413 = vpop.permute.xlu0 %3412
    %3414 = vrot.lane.b32.xlu0 %v3289, 96
    %v3415 = vpop.permute.xlu0 %3414
    %3420 = vrot.lane.b32.xlu0 %v3280, 64
    %v3421 = vpop.permute.xlu0 %3420
    %3422 = vrot.lane.b32.xlu0 %v3283, 64
    %v3423 = vpop.permute.xlu0 %3422
    %3424 = vrot.lane.b32.xlu0 %v3286, 64
    %v3425 = vpop.permute.xlu0 %3424
    %3426 = vrot.lane.b32.xlu0 %v3289, 64
    %v3427 = vpop.permute.xlu0 %3426
    %3432 = vrot.lane.b32.xlu0 %v3280, 32
    %v3433 = vpop.permute.xlu0 %3432
    %3434 = vrot.lane.b32.xlu0 %v3283, 32
    %v3435 = vpop.permute.xlu0 %3434
    %3436 = vrot.lane.b32.xlu0 %v3286, 32
    %v3437 = vpop.permute.xlu0 %3436
    %3438 = vrot.lane.b32.xlu0 %v3289, 32
    %v3439 = vpop.permute.xlu0 %3438
    %v3444 = vrot.slane %v3421, 4
    %v3445 = vsel %vm495, %v3444, %v3280
    %v3446 = vrot.slane %v3280, 4
    %v3447 = vsel %vm495, %v3421, %v3446
    %v3449 = vunpack.c.l.s4 1983009808
    %v3450 = vunpack.c.0.s8 %v3449
    %v3451 = vperm.slane %v3445, %v3450
    %v3453 = vunpack.c.l.s4 1983009808
    %v3454 = vunpack.c.0.s8 %v3453
    %v3455 = vperm.slane %v3447, %v3454
    %v3456 = vrot.slane %v3433, 4
    %v3457 = vsel %vm495, %v3456, %v3409
    %v3458 = vrot.slane %v3409, 4
    %v3459 = vsel %vm495, %v3433, %v3458
    %v3461 = vunpack.c.l.s4 1983009808
    %v3462 = vunpack.c.0.s8 %v3461
    %v3463 = vperm.slane %v3457, %v3462
    %v3465 = vunpack.c.l.s4 1983009808
    %v3466 = vunpack.c.0.s8 %v3465
    %v3467 = vperm.slane %v3459, %v3466
    %v3468 = vrot.slane %v3463, 4
    %v3469 = vsel %vm495, %v3468, %v3451
    %v3470 = vrot.slane %v3451, 4
    %v3471 = vsel %vm495, %v3463, %v3470
    %v3473 = vunpack.c.l.s4 1934713408
    %v3474 = vunpack.c.0.s8 %v3473
    %v3475 = vperm.slane %v3469, %v3474
    %v3477 = vunpack.c.l.s4 1934713408
    %v3478 = vunpack.c.0.s8 %v3477
    %v3479 = vperm.slane %v3471, %v3478
    %v3480 = vrot.slane %v3467, 4
    %v3481 = vsel %vm495, %v3480, %v3455
    %v3482 = vrot.slane %v3455, 4
    %v3483 = vsel %vm495, %v3467, %v3482
    %v3485 = vunpack.c.l.s4 1934713408
    %v3486 = vunpack.c.0.s8 %v3485
    %v3487 = vperm.slane %v3481, %v3486
    %v3489 = vunpack.c.l.s4 1934713408
    %v3490 = vunpack.c.0.s8 %v3489
    %v3491 = vperm.slane %v3483, %v3490
    %v3492 = vrot.slane %v3475, 4
    %v3493 = vsel %vm495, 0.0, %v3492
    %v3494 = vrot.slane %v3479, 4
    %v3495 = vsel %vm495, 0.0, %v3494
    %v3496 = vrot.slane %v3487, 4
    %v3497 = vsel %vm495, 0.0, %v3496
    %v3498 = vrot.slane %v3491, 4
    %v3499 = vsel %vm495, 0.0, %v3498
    %v3500 = vrot.slane %v3423, 4
    %v3501 = vsel %vm495, %v3500, %v3283
    %v3502 = vrot.slane %v3283, 4
    %v3503 = vsel %vm495, %v3423, %v3502
    %v3505 = vunpack.c.l.s4 1983009808
    %v3506 = vunpack.c.0.s8 %v3505
    %v3507 = vperm.slane %v3501, %v3506
    %v3509 = vunpack.c.l.s4 1983009808
    %v3510 = vunpack.c.0.s8 %v3509
    %v3511 = vperm.slane %v3503, %v3510
    %v3512 = vrot.slane %v3435, 4
    %v3513 = vsel %vm495, %v3512, %v3411
    %v3514 = vrot.slane %v3411, 4
    %v3515 = vsel %vm495, %v3435, %v3514
    %v3517 = vunpack.c.l.s4 1983009808
    %v3518 = vunpack.c.0.s8 %v3517
    %v3519 = vperm.slane %v3513, %v3518
    %v3521 = vunpack.c.l.s4 1983009808
    %v3522 = vunpack.c.0.s8 %v3521
    %v3523 = vperm.slane %v3515, %v3522
    %v3524 = vrot.slane %v3519, 4
    %v3525 = vsel %vm495, %v3524, %v3507
    %v3526 = vrot.slane %v3507, 4
    %v3527 = vsel %vm495, %v3519, %v3526
    %v3529 = vunpack.c.l.s4 1934713408
    %v3530 = vunpack.c.0.s8 %v3529
    %v3531 = vperm.slane %v3525, %v3530
    %v3533 = vunpack.c.l.s4 1934713408
    %v3534 = vunpack.c.0.s8 %v3533
    %v3535 = vperm.slane %v3527, %v3534
    %v3536 = vrot.slane %v3523, 4
    %v3537 = vsel %vm495, %v3536, %v3511
    %v3538 = vrot.slane %v3511, 4
    %v3539 = vsel %vm495, %v3523, %v3538
    %v3541 = vunpack.c.l.s4 1934713408
    %v3542 = vunpack.c.0.s8 %v3541
    %v3543 = vperm.slane %v3537, %v3542
    %v3545 = vunpack.c.l.s4 1934713408
    %v3546 = vunpack.c.0.s8 %v3545
    %v3547 = vperm.slane %v3539, %v3546
    %v3548 = vrot.slane %v3531, 4
    %v3549 = vsel %vm495, 0.0, %v3548
    %v3550 = vrot.slane %v3535, 4
    %v3551 = vsel %vm495, 0.0, %v3550
    %v3552 = vrot.slane %v3543, 4
    %v3553 = vsel %vm495, 0.0, %v3552
    %v3554 = vrot.slane %v3547, 4
    %v3555 = vsel %vm495, 0.0, %v3554
    %v3556 = vrot.slane %v3425, 4
    %v3557 = vsel %vm495, %v3556, %v3286
    %v3558 = vrot.slane %v3286, 4
    %v3559 = vsel %vm495, %v3425, %v3558
    %v3561 = vunpack.c.l.s4 1983009808
    %v3562 = vunpack.c.0.s8 %v3561
    %v3563 = vperm.slane %v3557, %v3562
    %v3565 = vunpack.c.l.s4 1983009808
    %v3566 = vunpack.c.0.s8 %v3565
    %v3567 = vperm.slane %v3559, %v3566
    %v3568 = vrot.slane %v3437, 4
    %v3569 = vsel %vm495, %v3568, %v3413
    %v3570 = vrot.slane %v3413, 4
    %v3571 = vsel %vm495, %v3437, %v3570
    %v3573 = vunpack.c.l.s4 1983009808
    %v3574 = vunpack.c.0.s8 %v3573
    %v3575 = vperm.slane %v3569, %v3574
    %v3577 = vunpack.c.l.s4 1983009808
    %v3578 = vunpack.c.0.s8 %v3577
    %v3579 = vperm.slane %v3571, %v3578
    %v3580 = vrot.slane %v3575, 4
    %v3581 = vsel %vm495, %v3580, %v3563
    %v3582 = vrot.slane %v3563, 4
    %v3583 = vsel %vm495, %v3575, %v3582
    %v3585 = vunpack.c.l.s4 1934713408
    %v3586 = vunpack.c.0.s8 %v3585
    %v3587 = vperm.slane %v3581, %v3586
    %v3589 = vunpack.c.l.s4 1934713408
    %v3590 = vunpack.c.0.s8 %v3589
    %v3591 = vperm.slane %v3583, %v3590
    %v3592 = vrot.slane %v3579, 4
    %v3593 = vsel %vm495, %v3592, %v3567
    %v3594 = vrot.slane %v3567, 4
    %v3595 = vsel %vm495, %v3579, %v3594
    %v3597 = vunpack.c.l.s4 1934713408
    %v3598 = vunpack.c.0.s8 %v3597
    %v3599 = vperm.slane %v3593, %v3598
    %v3601 = vunpack.c.l.s4 1934713408
    %v3602 = vunpack.c.0.s8 %v3601
    %v3603 = vperm.slane %v3595, %v3602
    %v3604 = vrot.slane %v3587, 4
    %v3605 = vsel %vm495, 0.0, %v3604
    %v3606 = vrot.slane %v3591, 4
    %v3607 = vsel %vm495, 0.0, %v3606
    %v3608 = vrot.slane %v3599, 4
    %v3609 = vsel %vm495, 0.0, %v3608
    %v3610 = vrot.slane %v3603, 4
    %v3611 = vsel %vm495, 0.0, %v3610
    %v3612 = vrot.slane %v3427, 4
    %v3613 = vsel %vm495, %v3612, %v3289
    %v3614 = vrot.slane %v3289, 4
    %v3615 = vsel %vm495, %v3427, %v3614
    %v3617 = vunpack.c.l.s4 1983009808
    %v3618 = vunpack.c.0.s8 %v3617
    %v3619 = vperm.slane %v3613, %v3618
    %v3621 = vunpack.c.l.s4 1983009808
    %v3622 = vunpack.c.0.s8 %v3621
    %v3623 = vperm.slane %v3615, %v3622
    %v3624 = vrot.slane %v3439, 4
    %v3625 = vsel %vm495, %v3624, %v3415
    %v3626 = vrot.slane %v3415, 4
    %v3627 = vsel %vm495, %v3439, %v3626
    %v3629 = vunpack.c.l.s4 1983009808
    %v3630 = vunpack.c.0.s8 %v3629
    %v3631 = vperm.slane %v3625, %v3630
    %v3633 = vunpack.c.l.s4 1983009808
    %v3634 = vunpack.c.0.s8 %v3633
    %v3635 = vperm.slane %v3627, %v3634
    %v3636 = vrot.slane %v3631, 4
    %v3637 = vsel %vm495, %v3636, %v3619
    %v3638 = vrot.slane %v3619, 4
    %v3639 = vsel %vm495, %v3631, %v3638
    %v3641 = vunpack.c.l.s4 1934713408
    %v3642 = vunpack.c.0.s8 %v3641
    %v3643 = vperm.slane %v3637, %v3642
    %v3645 = vunpack.c.l.s4 1934713408
    %v3646 = vunpack.c.0.s8 %v3645
    %v3647 = vperm.slane %v3639, %v3646
    %v3648 = vrot.slane %v3635, 4
    %v3649 = vsel %vm495, %v3648, %v3623
    %v3650 = vrot.slane %v3623, 4
    %v3651 = vsel %vm495, %v3635, %v3650
    %v3653 = vunpack.c.l.s4 1934713408
    %v3654 = vunpack.c.0.s8 %v3653
    %v3655 = vperm.slane %v3649, %v3654
    %v3657 = vunpack.c.l.s4 1934713408
    %v3658 = vunpack.c.0.s8 %v3657
    %v3659 = vperm.slane %v3651, %v3658
    %v3660 = vrot.slane %v3643, 4
    %v3661 = vsel %vm495, 0.0, %v3660
    %v3662 = vrot.slane %v3647, 4
    %v3663 = vsel %vm495, 0.0, %v3662
    %v3664 = vrot.slane %v3655, 4
    %v3665 = vsel %vm495, 0.0, %v3664
    %v3666 = vrot.slane %v3659, 4
    %v3667 = vsel %vm495, 0.0, %v3666
    %v3668 = vsel %vm495, %v3494, %v3475
    %v3670 = vunpack.c.l.s4 1983009808
    %v3671 = vunpack.c.0.s8 %v3670
    %v3672 = vperm.slane %v3668, %v3671
    %v3673 = vrot.slane %v3495, 4
    %v3674 = vsel %vm495, %v3673, %v3493
    %v3676 = vunpack.c.l.s4 1983009808
    %v3677 = vunpack.c.0.s8 %v3676
    %v3678 = vperm.slane %v3674, %v3677
    %v3679 = vsel %vm495, %v3498, %v3487
    %v3681 = vunpack.c.l.s4 1983009808
    %v3682 = vunpack.c.0.s8 %v3681
    %v3683 = vperm.slane %v3679, %v3682
    %v3684 = vrot.slane %v3499, 4
    %v3685 = vsel %vm495, %v3684, %v3497
    %v3687 = vunpack.c.l.s4 1983009808
    %v3688 = vunpack.c.0.s8 %v3687
    %v3689 = vperm.slane %v3685, %v3688
    %v3690 = vrot.slane %v3678, 4
    %v3691 = vsel %vm495, %v3690, %v3672
    %v3692 = vrot.slane %v3672, 4
    %v3693 = vsel %vm495, %v3678, %v3692
    %v3695 = vunpack.c.l.s4 1934713408
    %v3696 = vunpack.c.0.s8 %v3695
    %v3697 = vperm.slane %v3691, %v3696
    %v3699 = vunpack.c.l.s4 1934713408
    %v3700 = vunpack.c.0.s8 %v3699
    %v3701 = vperm.slane %v3693, %v3700
    %v3702 = vrot.slane %v3689, 4
    %v3703 = vsel %vm495, %v3702, %v3683
    %v3704 = vrot.slane %v3683, 4
    %v3705 = vsel %vm495, %v3689, %v3704
    %v3707 = vunpack.c.l.s4 1934713408
    %v3708 = vunpack.c.0.s8 %v3707
    %v3709 = vperm.slane %v3703, %v3708
    %v3711 = vunpack.c.l.s4 1934713408
    %v3712 = vunpack.c.0.s8 %v3711
    %v3713 = vperm.slane %v3705, %v3712
    %v3714 = vrot.slane %v3709, 4
    %v3715 = vsel %vm495, %v3714, %v3697
    %v3716 = vrot.slane %v3697, 4
    %v3717 = vsel %vm495, %v3709, %v3716
    %v3718 = vrot.slane %v3713, 4
    %v3719 = vsel %vm495, %v3718, %v3701
    %v3720 = vrot.slane %v3701, 4
    %v3721 = vsel %vm495, %v3713, %v3720
    %v3722 = vsel %vm495, %v3550, %v3531
    %v3724 = vunpack.c.l.s4 1983009808
    %v3725 = vunpack.c.0.s8 %v3724
    %v3726 = vperm.slane %v3722, %v3725
    %v3727 = vrot.slane %v3551, 4
    %v3728 = vsel %vm495, %v3727, %v3549
    %v3730 = vunpack.c.l.s4 1983009808
    %v3731 = vunpack.c.0.s8 %v3730
    %v3732 = vperm.slane %v3728, %v3731
    %v3733 = vsel %vm495, %v3554, %v3543
    %v3735 = vunpack.c.l.s4 1983009808
    %v3736 = vunpack.c.0.s8 %v3735
    %v3737 = vperm.slane %v3733, %v3736
    %v3738 = vrot.slane %v3555, 4
    %v3739 = vsel %vm495, %v3738, %v3553
    %v3741 = vunpack.c.l.s4 1983009808
    %v3742 = vunpack.c.0.s8 %v3741
    %v3743 = vperm.slane %v3739, %v3742
    %v3744 = vrot.slane %v3732, 4
    %v3745 = vsel %vm495, %v3744, %v3726
    %v3746 = vrot.slane %v3726, 4
    %v3747 = vsel %vm495, %v3732, %v3746
    %v3749 = vunpack.c.l.s4 1934713408
    %v3750 = vunpack.c.0.s8 %v3749
    %v3751 = vperm.slane %v3745, %v3750
    %v3753 = vunpack.c.l.s4 1934713408
    %v3754 = vunpack.c.0.s8 %v3753
    %v3755 = vperm.slane %v3747, %v3754
    %v3756 = vrot.slane %v3743, 4
    %v3757 = vsel %vm495, %v3756, %v3737
    %v3758 = vrot.slane %v3737, 4
    %v3759 = vsel %vm495, %v3743, %v3758
    %v3761 = vunpack.c.l.s4 1934713408
    %v3762 = vunpack.c.0.s8 %v3761
    %v3763 = vperm.slane %v3757, %v3762
    %v3765 = vunpack.c.l.s4 1934713408
    %v3766 = vunpack.c.0.s8 %v3765
    %v3767 = vperm.slane %v3759, %v3766
    %v3768 = vrot.slane %v3763, 4
    %v3769 = vsel %vm495, %v3768, %v3751
    %v3770 = vrot.slane %v3751, 4
    %v3771 = vsel %vm495, %v3763, %v3770
    %v3772 = vrot.slane %v3767, 4
    %v3773 = vsel %vm495, %v3772, %v3755
    %v3774 = vrot.slane %v3755, 4
    %v3775 = vsel %vm495, %v3767, %v3774
    %v3776 = vsel %vm495, %v3606, %v3587
    %v3778 = vunpack.c.l.s4 1983009808
    %v3779 = vunpack.c.0.s8 %v3778
    %v3780 = vperm.slane %v3776, %v3779
    %v3781 = vrot.slane %v3607, 4
    %v3782 = vsel %vm495, %v3781, %v3605
    %v3784 = vunpack.c.l.s4 1983009808
    %v3785 = vunpack.c.0.s8 %v3784
    %v3786 = vperm.slane %v3782, %v3785
    %v3787 = vsel %vm495, %v3610, %v3599
    %v3789 = vunpack.c.l.s4 1983009808
    %v3790 = vunpack.c.0.s8 %v3789
    %v3791 = vperm.slane %v3787, %v3790
    %v3792 = vrot.slane %v3611, 4
    %v3793 = vsel %vm495, %v3792, %v3609
    %v3795 = vunpack.c.l.s4 1983009808
    %v3796 = vunpack.c.0.s8 %v3795
    %v3797 = vperm.slane %v3793, %v3796
    %v3798 = vrot.slane %v3786, 4
    %v3799 = vsel %vm495, %v3798, %v3780
    %v3800 = vrot.slane %v3780, 4
    %v3801 = vsel %vm495, %v3786, %v3800
    %v3803 = vunpack.c.l.s4 1934713408
    %v3804 = vunpack.c.0.s8 %v3803
    %v3805 = vperm.slane %v3799, %v3804
    %v3807 = vunpack.c.l.s4 1934713408
    %v3808 = vunpack.c.0.s8 %v3807
    %v3809 = vperm.slane %v3801, %v3808
    %v3810 = vrot.slane %v3797, 4
    %v3811 = vsel %vm495, %v3810, %v3791
    %v3812 = vrot.slane %v3791, 4
    %v3813 = vsel %vm495, %v3797, %v3812
    %v3815 = vunpack.c.l.s4 1934713408
    %v3816 = vunpack.c.0.s8 %v3815
    %v3817 = vperm.slane %v3811, %v3816
    %v3819 = vunpack.c.l.s4 1934713408
    %v3820 = vunpack.c.0.s8 %v3819
    %v3821 = vperm.slane %v3813, %v3820
    %v3822 = vrot.slane %v3817, 4
    %v3823 = vsel %vm495, %v3822, %v3805
    %v3824 = vrot.slane %v3805, 4
    %v3825 = vsel %vm495, %v3817, %v3824
    %v3826 = vrot.slane %v3821, 4
    %v3827 = vsel %vm495, %v3826, %v3809
    %v3828 = vrot.slane %v3809, 4
    %v3829 = vsel %vm495, %v3821, %v3828
    %v3830 = vsel %vm495, %v3662, %v3643
    %v3832 = vunpack.c.l.s4 1983009808
    %v3833 = vunpack.c.0.s8 %v3832
    %v3834 = vperm.slane %v3830, %v3833
    %v3835 = vrot.slane %v3663, 4
    %v3836 = vsel %vm495, %v3835, %v3661
    %v3838 = vunpack.c.l.s4 1983009808
    %v3839 = vunpack.c.0.s8 %v3838
    %v3840 = vperm.slane %v3836, %v3839
    %v3841 = vsel %vm495, %v3666, %v3655
    %v3843 = vunpack.c.l.s4 1983009808
    %v3844 = vunpack.c.0.s8 %v3843
    %v3845 = vperm.slane %v3841, %v3844
    %v3846 = vrot.slane %v3667, 4
    %v3847 = vsel %vm495, %v3846, %v3665
    %v3849 = vunpack.c.l.s4 1983009808
    %v3850 = vunpack.c.0.s8 %v3849
    %v3851 = vperm.slane %v3847, %v3850
    %v3852 = vrot.slane %v3840, 4
    %v3853 = vsel %vm495, %v3852, %v3834
    %v3854 = vrot.slane %v3834, 4
    %v3855 = vsel %vm495, %v3840, %v3854
    %v3857 = vunpack.c.l.s4 1934713408
    %v3858 = vunpack.c.0.s8 %v3857
    %v3859 = vperm.slane %v3853, %v3858
    %v3861 = vunpack.c.l.s4 1934713408
    %v3862 = vunpack.c.0.s8 %v3861
    %v3863 = vperm.slane %v3855, %v3862
    %v3864 = vrot.slane %v3851, 4
    %v3865 = vsel %vm495, %v3864, %v3845
    %v3866 = vrot.slane %v3845, 4
    %v3867 = vsel %vm495, %v3851, %v3866
    %v3869 = vunpack.c.l.s4 1934713408
    %v3870 = vunpack.c.0.s8 %v3869
    %v3871 = vperm.slane %v3865, %v3870
    %v3873 = vunpack.c.l.s4 1934713408
    %v3874 = vunpack.c.0.s8 %v3873
    %v3875 = vperm.slane %v3867, %v3874
    %v3876 = vrot.slane %v3871, 4
    %v3877 = vsel %vm495, %v3876, %v3859
    %v3878 = vrot.slane %v3859, 4
    %v3879 = vsel %vm495, %v3871, %v3878
    %v3880 = vrot.slane %v3875, 4
    %v3881 = vsel %vm495, %v3880, %v3863
    %v3882 = vrot.slane %v3863, 4
    %v3883 = vsel %vm495, %v3875, %v3882
    %3888 = vrot.lane.b32.xlu0 %v3347, 96
    %v3889 = vpop.permute.xlu0 %3888
    %3890 = vrot.lane.b32.xlu0 %v3350, 96
    %v3891 = vpop.permute.xlu0 %3890
    %3892 = vrot.lane.b32.xlu0 %v3353, 96
    %v3893 = vpop.permute.xlu0 %3892
    %3894 = vrot.lane.b32.xlu0 %v3356, 96
    %v3895 = vpop.permute.xlu0 %3894
    %3900 = vrot.lane.b32.xlu0 %v3347, 64
    %v3901 = vpop.permute.xlu0 %3900
    %3902 = vrot.lane.b32.xlu0 %v3350, 64
    %v3903 = vpop.permute.xlu0 %3902
    %3904 = vrot.lane.b32.xlu0 %v3353, 64
    %v3905 = vpop.permute.xlu0 %3904
    %3906 = vrot.lane.b32.xlu0 %v3356, 64
    %v3907 = vpop.permute.xlu0 %3906
    %3912 = vrot.lane.b32.xlu0 %v3347, 32
    %v3913 = vpop.permute.xlu0 %3912
    %3914 = vrot.lane.b32.xlu0 %v3350, 32
    %v3915 = vpop.permute.xlu0 %3914
    %3916 = vrot.lane.b32.xlu0 %v3353, 32
    %v3917 = vpop.permute.xlu0 %3916
    %3918 = vrot.lane.b32.xlu0 %v3356, 32
    %v3919 = vpop.permute.xlu0 %3918
    %v3924 = vrot.slane %v3901, 4
    %v3925 = vsel %vm495, %v3924, %v3347
    %v3926 = vrot.slane %v3347, 4
    %v3927 = vsel %vm495, %v3901, %v3926
    %v3929 = vunpack.c.l.s4 1983009808
    %v3930 = vunpack.c.0.s8 %v3929
    %v3931 = vperm.slane %v3925, %v3930
    %v3933 = vunpack.c.l.s4 1983009808
    %v3934 = vunpack.c.0.s8 %v3933
    %v3935 = vperm.slane %v3927, %v3934
    %v3936 = vrot.slane %v3913, 4
    %v3937 = vsel %vm495, %v3936, %v3889
    %v3938 = vrot.slane %v3889, 4
    %v3939 = vsel %vm495, %v3913, %v3938
    %v3941 = vunpack.c.l.s4 1983009808
    %v3942 = vunpack.c.0.s8 %v3941
    %v3943 = vperm.slane %v3937, %v3942
    %v3945 = vunpack.c.l.s4 1983009808
    %v3946 = vunpack.c.0.s8 %v3945
    %v3947 = vperm.slane %v3939, %v3946
    %v3948 = vrot.slane %v3943, 4
    %v3949 = vsel %vm495, %v3948, %v3931
    %v3950 = vrot.slane %v3931, 4
    %v3951 = vsel %vm495, %v3943, %v3950
    %v3953 = vunpack.c.l.s4 1934713408
    %v3954 = vunpack.c.0.s8 %v3953
    %v3955 = vperm.slane %v3949, %v3954
    %v3957 = vunpack.c.l.s4 1934713408
    %v3958 = vunpack.c.0.s8 %v3957
    %v3959 = vperm.slane %v3951, %v3958
    %v3960 = vrot.slane %v3947, 4
    %v3961 = vsel %vm495, %v3960, %v3935
    %v3962 = vrot.slane %v3935, 4
    %v3963 = vsel %vm495, %v3947, %v3962
    %v3965 = vunpack.c.l.s4 1934713408
    %v3966 = vunpack.c.0.s8 %v3965
    %v3967 = vperm.slane %v3961, %v3966
    %v3969 = vunpack.c.l.s4 1934713408
    %v3970 = vunpack.c.0.s8 %v3969
    %v3971 = vperm.slane %v3963, %v3970
    %v3972 = vrot.slane %v3955, 4
    %v3973 = vsel %vm495, 0.0, %v3972
    %v3974 = vrot.slane %v3959, 4
    %v3975 = vsel %vm495, 0.0, %v3974
    %v3976 = vrot.slane %v3967, 4
    %v3977 = vsel %vm495, 0.0, %v3976
    %v3978 = vrot.slane %v3971, 4
    %v3979 = vsel %vm495, 0.0, %v3978
    %v3980 = vrot.slane %v3903, 4
    %v3981 = vsel %vm495, %v3980, %v3350
    %v3982 = vrot.slane %v3350, 4
    %v3983 = vsel %vm495, %v3903, %v3982
    %v3985 = vunpack.c.l.s4 1983009808
    %v3986 = vunpack.c.0.s8 %v3985
    %v3987 = vperm.slane %v3981, %v3986
    %v3989 = vunpack.c.l.s4 1983009808
    %v3990 = vunpack.c.0.s8 %v3989
    %v3991 = vperm.slane %v3983, %v3990
    %v3992 = vrot.slane %v3915, 4
    %v3993 = vsel %vm495, %v3992, %v3891
    %v3994 = vrot.slane %v3891, 4
    %v3995 = vsel %vm495, %v3915, %v3994
    %v3997 = vunpack.c.l.s4 1983009808
    %v3998 = vunpack.c.0.s8 %v3997
    %v3999 = vperm.slane %v3993, %v3998
    %v4001 = vunpack.c.l.s4 1983009808
    %v4002 = vunpack.c.0.s8 %v4001
    %v4003 = vperm.slane %v3995, %v4002
    %v4004 = vrot.slane %v3999, 4
    %v4005 = vsel %vm495, %v4004, %v3987
    %v4006 = vrot.slane %v3987, 4
    %v4007 = vsel %vm495, %v3999, %v4006
    %v4009 = vunpack.c.l.s4 1934713408
    %v4010 = vunpack.c.0.s8 %v4009
    %v4011 = vperm.slane %v4005, %v4010
    %v4013 = vunpack.c.l.s4 1934713408
    %v4014 = vunpack.c.0.s8 %v4013
    %v4015 = vperm.slane %v4007, %v4014
    %v4016 = vrot.slane %v4003, 4
    %v4017 = vsel %vm495, %v4016, %v3991
    %v4018 = vrot.slane %v3991, 4
    %v4019 = vsel %vm495, %v4003, %v4018
    %v4021 = vunpack.c.l.s4 1934713408
    %v4022 = vunpack.c.0.s8 %v4021
    %v4023 = vperm.slane %v4017, %v4022
    %v4025 = vunpack.c.l.s4 1934713408
    %v4026 = vunpack.c.0.s8 %v4025
    %v4027 = vperm.slane %v4019, %v4026
    %v4028 = vrot.slane %v4011, 4
    %v4029 = vsel %vm495, 0.0, %v4028
    %v4030 = vrot.slane %v4015, 4
    %v4031 = vsel %vm495, 0.0, %v4030
    %v4032 = vrot.slane %v4023, 4
    %v4033 = vsel %vm495, 0.0, %v4032
    %v4034 = vrot.slane %v4027, 4
    %v4035 = vsel %vm495, 0.0, %v4034
    %v4036 = vrot.slane %v3905, 4
    %v4037 = vsel %vm495, %v4036, %v3353
    %v4038 = vrot.slane %v3353, 4
    %v4039 = vsel %vm495, %v3905, %v4038
    %v4041 = vunpack.c.l.s4 1983009808
    %v4042 = vunpack.c.0.s8 %v4041
    %v4043 = vperm.slane %v4037, %v4042
    %v4045 = vunpack.c.l.s4 1983009808
    %v4046 = vunpack.c.0.s8 %v4045
    %v4047 = vperm.slane %v4039, %v4046
    %v4048 = vrot.slane %v3917, 4
    %v4049 = vsel %vm495, %v4048, %v3893
    %v4050 = vrot.slane %v3893, 4
    %v4051 = vsel %vm495, %v3917, %v4050
    %v4053 = vunpack.c.l.s4 1983009808
    %v4054 = vunpack.c.0.s8 %v4053
    %v4055 = vperm.slane %v4049, %v4054
    %v4057 = vunpack.c.l.s4 1983009808
    %v4058 = vunpack.c.0.s8 %v4057
    %v4059 = vperm.slane %v4051, %v4058
    %v4060 = vrot.slane %v4055, 4
    %v4061 = vsel %vm495, %v4060, %v4043
    %v4062 = vrot.slane %v4043, 4
    %v4063 = vsel %vm495, %v4055, %v4062
    %v4065 = vunpack.c.l.s4 1934713408
    %v4066 = vunpack.c.0.s8 %v4065
    %v4067 = vperm.slane %v4061, %v4066
    %v4069 = vunpack.c.l.s4 1934713408
    %v4070 = vunpack.c.0.s8 %v4069
    %v4071 = vperm.slane %v4063, %v4070
    %v4072 = vrot.slane %v4059, 4
    %v4073 = vsel %vm495, %v4072, %v4047
    %v4074 = vrot.slane %v4047, 4
    %v4075 = vsel %vm495, %v4059, %v4074
    %v4077 = vunpack.c.l.s4 1934713408
    %v4078 = vunpack.c.0.s8 %v4077
    %v4079 = vperm.slane %v4073, %v4078
    %v4081 = vunpack.c.l.s4 1934713408
    %v4082 = vunpack.c.0.s8 %v4081
    %v4083 = vperm.slane %v4075, %v4082
    %v4084 = vrot.slane %v4067, 4
    %v4085 = vsel %vm495, 0.0, %v4084
    %v4086 = vrot.slane %v4071, 4
    %v4087 = vsel %vm495, 0.0, %v4086
    %v4088 = vrot.slane %v4079, 4
    %v4089 = vsel %vm495, 0.0, %v4088
    %v4090 = vrot.slane %v4083, 4
    %v4091 = vsel %vm495, 0.0, %v4090
    %v4092 = vrot.slane %v3907, 4
    %v4093 = vsel %vm495, %v4092, %v3356
    %v4094 = vrot.slane %v3356, 4
    %v4095 = vsel %vm495, %v3907, %v4094
    %v4097 = vunpack.c.l.s4 1983009808
    %v4098 = vunpack.c.0.s8 %v4097
    %v4099 = vperm.slane %v4093, %v4098
    %v4101 = vunpack.c.l.s4 1983009808
    %v4102 = vunpack.c.0.s8 %v4101
    %v4103 = vperm.slane %v4095, %v4102
    %v4104 = vrot.slane %v3919, 4
    %v4105 = vsel %vm495, %v4104, %v3895
    %v4106 = vrot.slane %v3895, 4
    %v4107 = vsel %vm495, %v3919, %v4106
    %v4109 = vunpack.c.l.s4 1983009808
    %v4110 = vunpack.c.0.s8 %v4109
    %v4111 = vperm.slane %v4105, %v4110
    %v4113 = vunpack.c.l.s4 1983009808
    %v4114 = vunpack.c.0.s8 %v4113
    %v4115 = vperm.slane %v4107, %v4114
    %v4116 = vrot.slane %v4111, 4
    %v4117 = vsel %vm495, %v4116, %v4099
    %v4118 = vrot.slane %v4099, 4
    %v4119 = vsel %vm495, %v4111, %v4118
    %v4121 = vunpack.c.l.s4 1934713408
    %v4122 = vunpack.c.0.s8 %v4121
    %v4123 = vperm.slane %v4117, %v4122
    %v4125 = vunpack.c.l.s4 1934713408
    %v4126 = vunpack.c.0.s8 %v4125
    %v4127 = vperm.slane %v4119, %v4126
    %v4128 = vrot.slane %v4115, 4
    %v4129 = vsel %vm495, %v4128, %v4103
    %v4130 = vrot.slane %v4103, 4
    %v4131 = vsel %vm495, %v4115, %v4130
    %v4133 = vunpack.c.l.s4 1934713408
    %v4134 = vunpack.c.0.s8 %v4133
    %v4135 = vperm.slane %v4129, %v4134
    %v4137 = vunpack.c.l.s4 1934713408
    %v4138 = vunpack.c.0.s8 %v4137
    %v4139 = vperm.slane %v4131, %v4138
    %v4140 = vrot.slane %v4123, 4
    %v4141 = vsel %vm495, 0.0, %v4140
    %v4142 = vrot.slane %v4127, 4
    %v4143 = vsel %vm495, 0.0, %v4142
    %v4144 = vrot.slane %v4135, 4
    %v4145 = vsel %vm495, 0.0, %v4144
    %v4146 = vrot.slane %v4139, 4
    %v4147 = vsel %vm495, 0.0, %v4146
    %v4148 = vsel %vm495, %v3974, %v3955
    %v4150 = vunpack.c.l.s4 1983009808
    %v4151 = vunpack.c.0.s8 %v4150
    %v4152 = vperm.slane %v4148, %v4151
    %v4153 = vrot.slane %v3975, 4
    %v4154 = vsel %vm495, %v4153, %v3973
    %v4156 = vunpack.c.l.s4 1983009808
    %v4157 = vunpack.c.0.s8 %v4156
    %v4158 = vperm.slane %v4154, %v4157
    %v4159 = vsel %vm495, %v3978, %v3967
    %v4161 = vunpack.c.l.s4 1983009808
    %v4162 = vunpack.c.0.s8 %v4161
    %v4163 = vperm.slane %v4159, %v4162
    %v4164 = vrot.slane %v3979, 4
    %v4165 = vsel %vm495, %v4164, %v3977
    %v4167 = vunpack.c.l.s4 1983009808
    %v4168 = vunpack.c.0.s8 %v4167
    %v4169 = vperm.slane %v4165, %v4168
    %v4170 = vrot.slane %v4158, 4
    %v4171 = vsel %vm495, %v4170, %v4152
    %v4172 = vrot.slane %v4152, 4
    %v4173 = vsel %vm495, %v4158, %v4172
    %v4175 = vunpack.c.l.s4 1934713408
    %v4176 = vunpack.c.0.s8 %v4175
    %v4177 = vperm.slane %v4171, %v4176
    %v4179 = vunpack.c.l.s4 1934713408
    %v4180 = vunpack.c.0.s8 %v4179
    %v4181 = vperm.slane %v4173, %v4180
    %v4182 = vrot.slane %v4169, 4
    %v4183 = vsel %vm495, %v4182, %v4163
    %v4184 = vrot.slane %v4163, 4
    %v4185 = vsel %vm495, %v4169, %v4184
    %v4187 = vunpack.c.l.s4 1934713408
    %v4188 = vunpack.c.0.s8 %v4187
    %v4189 = vperm.slane %v4183, %v4188
    %v4191 = vunpack.c.l.s4 1934713408
    %v4192 = vunpack.c.0.s8 %v4191
    %v4193 = vperm.slane %v4185, %v4192
    %v4194 = vrot.slane %v4189, 4
    %v4195 = vsel %vm495, %v4194, %v4177
    %v4196 = vrot.slane %v4177, 4
    %v4197 = vsel %vm495, %v4189, %v4196
    %v4198 = vrot.slane %v4193, 4
    %v4199 = vsel %vm495, %v4198, %v4181
    %v4200 = vrot.slane %v4181, 4
    %v4201 = vsel %vm495, %v4193, %v4200
    %v4202 = vsel %vm495, %v4030, %v4011
    %v4204 = vunpack.c.l.s4 1983009808
    %v4205 = vunpack.c.0.s8 %v4204
    %v4206 = vperm.slane %v4202, %v4205
    %v4207 = vrot.slane %v4031, 4
    %v4208 = vsel %vm495, %v4207, %v4029
    %v4210 = vunpack.c.l.s4 1983009808
    %v4211 = vunpack.c.0.s8 %v4210
    %v4212 = vperm.slane %v4208, %v4211
    %v4213 = vsel %vm495, %v4034, %v4023
    %v4215 = vunpack.c.l.s4 1983009808
    %v4216 = vunpack.c.0.s8 %v4215
    %v4217 = vperm.slane %v4213, %v4216
    %v4218 = vrot.slane %v4035, 4
    %v4219 = vsel %vm495, %v4218, %v4033
    %v4221 = vunpack.c.l.s4 1983009808
    %v4222 = vunpack.c.0.s8 %v4221
    %v4223 = vperm.slane %v4219, %v4222
    %v4224 = vrot.slane %v4212, 4
    %v4225 = vsel %vm495, %v4224, %v4206
    %v4226 = vrot.slane %v4206, 4
    %v4227 = vsel %vm495, %v4212, %v4226
    %v4229 = vunpack.c.l.s4 1934713408
    %v4230 = vunpack.c.0.s8 %v4229
    %v4231 = vperm.slane %v4225, %v4230
    %v4233 = vunpack.c.l.s4 1934713408
    %v4234 = vunpack.c.0.s8 %v4233
    %v4235 = vperm.slane %v4227, %v4234
    %v4236 = vrot.slane %v4223, 4
    %v4237 = vsel %vm495, %v4236, %v4217
    %v4238 = vrot.slane %v4217, 4
    %v4239 = vsel %vm495, %v4223, %v4238
    %v4241 = vunpack.c.l.s4 1934713408
    %v4242 = vunpack.c.0.s8 %v4241
    %v4243 = vperm.slane %v4237, %v4242
    %v4245 = vunpack.c.l.s4 1934713408
    %v4246 = vunpack.c.0.s8 %v4245
    %v4247 = vperm.slane %v4239, %v4246
    %v4248 = vrot.slane %v4243, 4
    %v4249 = vsel %vm495, %v4248, %v4231
    %v4250 = vrot.slane %v4231, 4
    %v4251 = vsel %vm495, %v4243, %v4250
    %v4252 = vrot.slane %v4247, 4
    %v4253 = vsel %vm495, %v4252, %v4235
    %v4254 = vrot.slane %v4235, 4
    %v4255 = vsel %vm495, %v4247, %v4254
    %v4256 = vsel %vm495, %v4086, %v4067
    %v4258 = vunpack.c.l.s4 1983009808
    %v4259 = vunpack.c.0.s8 %v4258
    %v4260 = vperm.slane %v4256, %v4259
    %v4261 = vrot.slane %v4087, 4
    %v4262 = vsel %vm495, %v4261, %v4085
    %v4264 = vunpack.c.l.s4 1983009808
    %v4265 = vunpack.c.0.s8 %v4264
    %v4266 = vperm.slane %v4262, %v4265
    %v4267 = vsel %vm495, %v4090, %v4079
    %v4269 = vunpack.c.l.s4 1983009808
    %v4270 = vunpack.c.0.s8 %v4269
    %v4271 = vperm.slane %v4267, %v4270
    %v4272 = vrot.slane %v4091, 4
    %v4273 = vsel %vm495, %v4272, %v4089
    %v4275 = vunpack.c.l.s4 1983009808
    %v4276 = vunpack.c.0.s8 %v4275
    %v4277 = vperm.slane %v4273, %v4276
    %v4278 = vrot.slane %v4266, 4
    %v4279 = vsel %vm495, %v4278, %v4260
    %v4280 = vrot.slane %v4260, 4
    %v4281 = vsel %vm495, %v4266, %v4280
    %v4283 = vunpack.c.l.s4 1934713408
    %v4284 = vunpack.c.0.s8 %v4283
    %v4285 = vperm.slane %v4279, %v4284
    %v4287 = vunpack.c.l.s4 1934713408
    %v4288 = vunpack.c.0.s8 %v4287
    %v4289 = vperm.slane %v4281, %v4288
    %v4290 = vrot.slane %v4277, 4
    %v4291 = vsel %vm495, %v4290, %v4271
    %v4292 = vrot.slane %v4271, 4
    %v4293 = vsel %vm495, %v4277, %v4292
    %v4295 = vunpack.c.l.s4 1934713408
    %v4296 = vunpack.c.0.s8 %v4295
    %v4297 = vperm.slane %v4291, %v4296
    %v4299 = vunpack.c.l.s4 1934713408
    %v4300 = vunpack.c.0.s8 %v4299
    %v4301 = vperm.slane %v4293, %v4300
    %v4302 = vrot.slane %v4297, 4
    %v4303 = vsel %vm495, %v4302, %v4285
    %v4304 = vrot.slane %v4285, 4
    %v4305 = vsel %vm495, %v4297, %v4304
    %v4306 = vrot.slane %v4301, 4
    %v4307 = vsel %vm495, %v4306, %v4289
    %v4308 = vrot.slane %v4289, 4
    %v4309 = vsel %vm495, %v4301, %v4308
    %v4310 = vsel %vm495, %v4142, %v4123
    %v4312 = vunpack.c.l.s4 1983009808
    %v4313 = vunpack.c.0.s8 %v4312
    %v4314 = vperm.slane %v4310, %v4313
    %v4315 = vrot.slane %v4143, 4
    %v4316 = vsel %vm495, %v4315, %v4141
    %v4318 = vunpack.c.l.s4 1983009808
    %v4319 = vunpack.c.0.s8 %v4318
    %v4320 = vperm.slane %v4316, %v4319
    %v4321 = vsel %vm495, %v4146, %v4135
    %v4323 = vunpack.c.l.s4 1983009808
    %v4324 = vunpack.c.0.s8 %v4323
    %v4325 = vperm.slane %v4321, %v4324
    %v4326 = vrot.slane %v4147, 4
    %v4327 = vsel %vm495, %v4326, %v4145
    %v4329 = vunpack.c.l.s4 1983009808
    %v4330 = vunpack.c.0.s8 %v4329
    %v4331 = vperm.slane %v4327, %v4330
    %v4332 = vrot.slane %v4320, 4
    %v4333 = vsel %vm495, %v4332, %v4314
    %v4334 = vrot.slane %v4314, 4
    %v4335 = vsel %vm495, %v4320, %v4334
    %v4337 = vunpack.c.l.s4 1934713408
    %v4338 = vunpack.c.0.s8 %v4337
    %v4339 = vperm.slane %v4333, %v4338
    %v4341 = vunpack.c.l.s4 1934713408
    %v4342 = vunpack.c.0.s8 %v4341
    %v4343 = vperm.slane %v4335, %v4342
    %v4344 = vrot.slane %v4331, 4
    %v4345 = vsel %vm495, %v4344, %v4325
    %v4346 = vrot.slane %v4325, 4
    %v4347 = vsel %vm495, %v4331, %v4346
    %v4349 = vunpack.c.l.s4 1934713408
    %v4350 = vunpack.c.0.s8 %v4349
    %v4351 = vperm.slane %v4345, %v4350
    %v4353 = vunpack.c.l.s4 1934713408
    %v4354 = vunpack.c.0.s8 %v4353
    %v4355 = vperm.slane %v4347, %v4354
    %v4356 = vrot.slane %v4351, 4
    %v4357 = vsel %vm495, %v4356, %v4339
    %v4358 = vrot.slane %v4339, 4
    %v4359 = vsel %vm495, %v4351, %v4358
    %v4360 = vrot.slane %v4355, 4
    %v4361 = vsel %vm495, %v4360, %v4343
    %v4362 = vrot.slane %v4343, 4
    %v4363 = vsel %vm495, %v4355, %v4362
    %4368 = vrot.lane.b32.xlu0 %v3376, 96
    %v4369 = vpop.permute.xlu0 %4368
    %4370 = vrot.lane.b32.xlu0 %v3379, 96
    %v4371 = vpop.permute.xlu0 %4370
    %4372 = vrot.lane.b32.xlu0 %v3382, 96
    %v4373 = vpop.permute.xlu0 %4372
    %4374 = vrot.lane.b32.xlu0 %v3385, 96
    %v4375 = vpop.permute.xlu0 %4374
    %4380 = vrot.lane.b32.xlu0 %v3376, 64
    %v4381 = vpop.permute.xlu0 %4380
    %4382 = vrot.lane.b32.xlu0 %v3379, 64
    %v4383 = vpop.permute.xlu0 %4382
    %4384 = vrot.lane.b32.xlu0 %v3382, 64
    %v4385 = vpop.permute.xlu0 %4384
    %4386 = vrot.lane.b32.xlu0 %v3385, 64
    %v4387 = vpop.permute.xlu0 %4386
    %4392 = vrot.lane.b32.xlu0 %v3376, 32
    %v4393 = vpop.permute.xlu0 %4392
    %4394 = vrot.lane.b32.xlu0 %v3379, 32
    %v4395 = vpop.permute.xlu0 %4394
    %4396 = vrot.lane.b32.xlu0 %v3382, 32
    %v4397 = vpop.permute.xlu0 %4396
    %4398 = vrot.lane.b32.xlu0 %v3385, 32
    %v4399 = vpop.permute.xlu0 %4398
    %v4404 = vrot.slane %v4381, 4
    %v4405 = vsel %vm495, %v4404, %v3376
    %v4406 = vrot.slane %v3376, 4
    %v4407 = vsel %vm495, %v4381, %v4406
    %v4409 = vunpack.c.l.s4 1983009808
    %v4410 = vunpack.c.0.s8 %v4409
    %v4411 = vperm.slane %v4405, %v4410
    %v4413 = vunpack.c.l.s4 1983009808
    %v4414 = vunpack.c.0.s8 %v4413
    %v4415 = vperm.slane %v4407, %v4414
    %v4416 = vrot.slane %v4393, 4
    %v4417 = vsel %vm495, %v4416, %v4369
    %v4418 = vrot.slane %v4369, 4
    %v4419 = vsel %vm495, %v4393, %v4418
    %v4421 = vunpack.c.l.s4 1983009808
    %v4422 = vunpack.c.0.s8 %v4421
    %v4423 = vperm.slane %v4417, %v4422
    %v4425 = vunpack.c.l.s4 1983009808
    %v4426 = vunpack.c.0.s8 %v4425
    %v4427 = vperm.slane %v4419, %v4426
    %v4428 = vrot.slane %v4423, 4
    %v4429 = vsel %vm495, %v4428, %v4411
    %v4430 = vrot.slane %v4411, 4
    %v4431 = vsel %vm495, %v4423, %v4430
    %v4433 = vunpack.c.l.s4 1934713408
    %v4434 = vunpack.c.0.s8 %v4433
    %v4435 = vperm.slane %v4429, %v4434
    %v4437 = vunpack.c.l.s4 1934713408
    %v4438 = vunpack.c.0.s8 %v4437
    %v4439 = vperm.slane %v4431, %v4438
    %v4440 = vrot.slane %v4427, 4
    %v4441 = vsel %vm495, %v4440, %v4415
    %v4442 = vrot.slane %v4415, 4
    %v4443 = vsel %vm495, %v4427, %v4442
    %v4445 = vunpack.c.l.s4 1934713408
    %v4446 = vunpack.c.0.s8 %v4445
    %v4447 = vperm.slane %v4441, %v4446
    %v4449 = vunpack.c.l.s4 1934713408
    %v4450 = vunpack.c.0.s8 %v4449
    %v4451 = vperm.slane %v4443, %v4450
    %v4452 = vrot.slane %v4435, 4
    %v4453 = vsel %vm495, 0.0, %v4452
    %v4454 = vrot.slane %v4439, 4
    %v4455 = vsel %vm495, 0.0, %v4454
    %v4456 = vrot.slane %v4447, 4
    %v4457 = vsel %vm495, 0.0, %v4456
    %v4458 = vrot.slane %v4451, 4
    %v4459 = vsel %vm495, 0.0, %v4458
    %v4460 = vrot.slane %v4383, 4
    %v4461 = vsel %vm495, %v4460, %v3379
    %v4462 = vrot.slane %v3379, 4
    %v4463 = vsel %vm495, %v4383, %v4462
    %v4465 = vunpack.c.l.s4 1983009808
    %v4466 = vunpack.c.0.s8 %v4465
    %v4467 = vperm.slane %v4461, %v4466
    %v4469 = vunpack.c.l.s4 1983009808
    %v4470 = vunpack.c.0.s8 %v4469
    %v4471 = vperm.slane %v4463, %v4470
    %v4472 = vrot.slane %v4395, 4
    %v4473 = vsel %vm495, %v4472, %v4371
    %v4474 = vrot.slane %v4371, 4
    %v4475 = vsel %vm495, %v4395, %v4474
    %v4477 = vunpack.c.l.s4 1983009808
    %v4478 = vunpack.c.0.s8 %v4477
    %v4479 = vperm.slane %v4473, %v4478
    %v4481 = vunpack.c.l.s4 1983009808
    %v4482 = vunpack.c.0.s8 %v4481
    %v4483 = vperm.slane %v4475, %v4482
    %v4484 = vrot.slane %v4479, 4
    %v4485 = vsel %vm495, %v4484, %v4467
    %v4486 = vrot.slane %v4467, 4
    %v4487 = vsel %vm495, %v4479, %v4486
    %v4489 = vunpack.c.l.s4 1934713408
    %v4490 = vunpack.c.0.s8 %v4489
    %v4491 = vperm.slane %v4485, %v4490
    %v4493 = vunpack.c.l.s4 1934713408
    %v4494 = vunpack.c.0.s8 %v4493
    %v4495 = vperm.slane %v4487, %v4494
    %v4496 = vrot.slane %v4483, 4
    %v4497 = vsel %vm495, %v4496, %v4471
    %v4498 = vrot.slane %v4471, 4
    %v4499 = vsel %vm495, %v4483, %v4498
    %v4501 = vunpack.c.l.s4 1934713408
    %v4502 = vunpack.c.0.s8 %v4501
    %v4503 = vperm.slane %v4497, %v4502
    %v4505 = vunpack.c.l.s4 1934713408
    %v4506 = vunpack.c.0.s8 %v4505
    %v4507 = vperm.slane %v4499, %v4506
    %v4508 = vrot.slane %v4491, 4
    %v4509 = vsel %vm495, 0.0, %v4508
    %v4510 = vrot.slane %v4495, 4
    %v4511 = vsel %vm495, 0.0, %v4510
    %v4512 = vrot.slane %v4503, 4
    %v4513 = vsel %vm495, 0.0, %v4512
    %v4514 = vrot.slane %v4507, 4
    %v4515 = vsel %vm495, 0.0, %v4514
    %v4516 = vrot.slane %v4385, 4
    %v4517 = vsel %vm495, %v4516, %v3382
    %v4518 = vrot.slane %v3382, 4
    %v4519 = vsel %vm495, %v4385, %v4518
    %v4521 = vunpack.c.l.s4 1983009808
    %v4522 = vunpack.c.0.s8 %v4521
    %v4523 = vperm.slane %v4517, %v4522
    %v4525 = vunpack.c.l.s4 1983009808
    %v4526 = vunpack.c.0.s8 %v4525
    %v4527 = vperm.slane %v4519, %v4526
    %v4528 = vrot.slane %v4397, 4
    %v4529 = vsel %vm495, %v4528, %v4373
    %v4530 = vrot.slane %v4373, 4
    %v4531 = vsel %vm495, %v4397, %v4530
    %v4533 = vunpack.c.l.s4 1983009808
    %v4534 = vunpack.c.0.s8 %v4533
    %v4535 = vperm.slane %v4529, %v4534
    %v4537 = vunpack.c.l.s4 1983009808
    %v4538 = vunpack.c.0.s8 %v4537
    %v4539 = vperm.slane %v4531, %v4538
    %v4540 = vrot.slane %v4535, 4
    %v4541 = vsel %vm495, %v4540, %v4523
    %v4542 = vrot.slane %v4523, 4
    %v4543 = vsel %vm495, %v4535, %v4542
    %v4545 = vunpack.c.l.s4 1934713408
    %v4546 = vunpack.c.0.s8 %v4545
    %v4547 = vperm.slane %v4541, %v4546
    %v4549 = vunpack.c.l.s4 1934713408
    %v4550 = vunpack.c.0.s8 %v4549
    %v4551 = vperm.slane %v4543, %v4550
    %v4552 = vrot.slane %v4539, 4
    %v4553 = vsel %vm495, %v4552, %v4527
    %v4554 = vrot.slane %v4527, 4
    %v4555 = vsel %vm495, %v4539, %v4554
    %v4557 = vunpack.c.l.s4 1934713408
    %v4558 = vunpack.c.0.s8 %v4557
    %v4559 = vperm.slane %v4553, %v4558
    %v4561 = vunpack.c.l.s4 1934713408
    %v4562 = vunpack.c.0.s8 %v4561
    %v4563 = vperm.slane %v4555, %v4562
    %v4564 = vrot.slane %v4547, 4
    %v4565 = vsel %vm495, 0.0, %v4564
    %v4566 = vrot.slane %v4551, 4
    %v4567 = vsel %vm495, 0.0, %v4566
    %v4568 = vrot.slane %v4559, 4
    %v4569 = vsel %vm495, 0.0, %v4568
    %v4570 = vrot.slane %v4563, 4
    %v4571 = vsel %vm495, 0.0, %v4570
    %v4572 = vrot.slane %v4387, 4
    %v4573 = vsel %vm495, %v4572, %v3385
    %v4574 = vrot.slane %v3385, 4
    %v4575 = vsel %vm495, %v4387, %v4574
    %v4577 = vunpack.c.l.s4 1983009808
    %v4578 = vunpack.c.0.s8 %v4577
    %v4579 = vperm.slane %v4573, %v4578
    %v4581 = vunpack.c.l.s4 1983009808
    %v4582 = vunpack.c.0.s8 %v4581
    %v4583 = vperm.slane %v4575, %v4582
    %v4584 = vrot.slane %v4399, 4
    %v4585 = vsel %vm495, %v4584, %v4375
    %v4586 = vrot.slane %v4375, 4
    %v4587 = vsel %vm495, %v4399, %v4586
    %v4589 = vunpack.c.l.s4 1983009808
    %v4590 = vunpack.c.0.s8 %v4589
    %v4591 = vperm.slane %v4585, %v4590
    %v4593 = vunpack.c.l.s4 1983009808
    %v4594 = vunpack.c.0.s8 %v4593
    %v4595 = vperm.slane %v4587, %v4594
    %v4596 = vrot.slane %v4591, 4
    %v4597 = vsel %vm495, %v4596, %v4579
    %v4598 = vrot.slane %v4579, 4
    %v4599 = vsel %vm495, %v4591, %v4598
    %v4601 = vunpack.c.l.s4 1934713408
    %v4602 = vunpack.c.0.s8 %v4601
    %v4603 = vperm.slane %v4597, %v4602
    %v4605 = vunpack.c.l.s4 1934713408
    %v4606 = vunpack.c.0.s8 %v4605
    %v4607 = vperm.slane %v4599, %v4606
    %v4608 = vrot.slane %v4595, 4
    %v4609 = vsel %vm495, %v4608, %v4583
    %v4610 = vrot.slane %v4583, 4
    %v4611 = vsel %vm495, %v4595, %v4610
    %v4613 = vunpack.c.l.s4 1934713408
    %v4614 = vunpack.c.0.s8 %v4613
    %v4615 = vperm.slane %v4609, %v4614
    %v4617 = vunpack.c.l.s4 1934713408
    %v4618 = vunpack.c.0.s8 %v4617
    %v4619 = vperm.slane %v4611, %v4618
    %v4620 = vrot.slane %v4603, 4
    %v4621 = vsel %vm495, 0.0, %v4620
    %v4622 = vrot.slane %v4607, 4
    %v4623 = vsel %vm495, 0.0, %v4622
    %v4624 = vrot.slane %v4615, 4
    %v4625 = vsel %vm495, 0.0, %v4624
    %v4626 = vrot.slane %v4619, 4
    %v4627 = vsel %vm495, 0.0, %v4626
    %v4628 = vsel %vm495, %v4454, %v4435
    %v4630 = vunpack.c.l.s4 1983009808
    %v4631 = vunpack.c.0.s8 %v4630
    %v4632 = vperm.slane %v4628, %v4631
    %v4633 = vrot.slane %v4455, 4
    %v4634 = vsel %vm495, %v4633, %v4453
    %v4636 = vunpack.c.l.s4 1983009808
    %v4637 = vunpack.c.0.s8 %v4636
    %v4638 = vperm.slane %v4634, %v4637
    %v4639 = vsel %vm495, %v4458, %v4447
    %v4641 = vunpack.c.l.s4 1983009808
    %v4642 = vunpack.c.0.s8 %v4641
    %v4643 = vperm.slane %v4639, %v4642
    %v4644 = vrot.slane %v4459, 4
    %v4645 = vsel %vm495, %v4644, %v4457
    %v4647 = vunpack.c.l.s4 1983009808
    %v4648 = vunpack.c.0.s8 %v4647
    %v4649 = vperm.slane %v4645, %v4648
    %v4650 = vrot.slane %v4638, 4
    %v4651 = vsel %vm495, %v4650, %v4632
    %v4652 = vrot.slane %v4632, 4
    %v4653 = vsel %vm495, %v4638, %v4652
    %v4655 = vunpack.c.l.s4 1934713408
    %v4656 = vunpack.c.0.s8 %v4655
    %v4657 = vperm.slane %v4651, %v4656
    %v4659 = vunpack.c.l.s4 1934713408
    %v4660 = vunpack.c.0.s8 %v4659
    %v4661 = vperm.slane %v4653, %v4660
    %v4662 = vrot.slane %v4649, 4
    %v4663 = vsel %vm495, %v4662, %v4643
    %v4664 = vrot.slane %v4643, 4
    %v4665 = vsel %vm495, %v4649, %v4664
    %v4667 = vunpack.c.l.s4 1934713408
    %v4668 = vunpack.c.0.s8 %v4667
    %v4669 = vperm.slane %v4663, %v4668
    %v4671 = vunpack.c.l.s4 1934713408
    %v4672 = vunpack.c.0.s8 %v4671
    %v4673 = vperm.slane %v4665, %v4672
    %v4674 = vrot.slane %v4669, 4
    %v4675 = vsel %vm495, %v4674, %v4657
    %v4676 = vrot.slane %v4657, 4
    %v4677 = vsel %vm495, %v4669, %v4676
    %v4678 = vrot.slane %v4673, 4
    %v4679 = vsel %vm495, %v4678, %v4661
    %v4680 = vrot.slane %v4661, 4
    %v4681 = vsel %vm495, %v4673, %v4680
    %v4682 = vsel %vm495, %v4510, %v4491
    %v4684 = vunpack.c.l.s4 1983009808
    %v4685 = vunpack.c.0.s8 %v4684
    %v4686 = vperm.slane %v4682, %v4685
    %v4687 = vrot.slane %v4511, 4
    %v4688 = vsel %vm495, %v4687, %v4509
    %v4690 = vunpack.c.l.s4 1983009808
    %v4691 = vunpack.c.0.s8 %v4690
    %v4692 = vperm.slane %v4688, %v4691
    %v4693 = vsel %vm495, %v4514, %v4503
    %v4695 = vunpack.c.l.s4 1983009808
    %v4696 = vunpack.c.0.s8 %v4695
    %v4697 = vperm.slane %v4693, %v4696
    %v4698 = vrot.slane %v4515, 4
    %v4699 = vsel %vm495, %v4698, %v4513
    %v4701 = vunpack.c.l.s4 1983009808
    %v4702 = vunpack.c.0.s8 %v4701
    %v4703 = vperm.slane %v4699, %v4702
    %v4704 = vrot.slane %v4692, 4
    %v4705 = vsel %vm495, %v4704, %v4686
    %v4706 = vrot.slane %v4686, 4
    %v4707 = vsel %vm495, %v4692, %v4706
    %v4709 = vunpack.c.l.s4 1934713408
    %v4710 = vunpack.c.0.s8 %v4709
    %v4711 = vperm.slane %v4705, %v4710
    %v4713 = vunpack.c.l.s4 1934713408
    %v4714 = vunpack.c.0.s8 %v4713
    %v4715 = vperm.slane %v4707, %v4714
    %v4716 = vrot.slane %v4703, 4
    %v4717 = vsel %vm495, %v4716, %v4697
    %v4718 = vrot.slane %v4697, 4
    %v4719 = vsel %vm495, %v4703, %v4718
    %v4721 = vunpack.c.l.s4 1934713408
    %v4722 = vunpack.c.0.s8 %v4721
    %v4723 = vperm.slane %v4717, %v4722
    %v4725 = vunpack.c.l.s4 1934713408
    %v4726 = vunpack.c.0.s8 %v4725
    %v4727 = vperm.slane %v4719, %v4726
    %v4728 = vrot.slane %v4723, 4
    %v4729 = vsel %vm495, %v4728, %v4711
    %v4730 = vrot.slane %v4711, 4
    %v4731 = vsel %vm495, %v4723, %v4730
    %v4732 = vrot.slane %v4727, 4
    %v4733 = vsel %vm495, %v4732, %v4715
    %v4734 = vrot.slane %v4715, 4
    %v4735 = vsel %vm495, %v4727, %v4734
    %v4736 = vsel %vm495, %v4566, %v4547
    %v4738 = vunpack.c.l.s4 1983009808
    %v4739 = vunpack.c.0.s8 %v4738
    %v4740 = vperm.slane %v4736, %v4739
    %v4741 = vrot.slane %v4567, 4
    %v4742 = vsel %vm495, %v4741, %v4565
    %v4744 = vunpack.c.l.s4 1983009808
    %v4745 = vunpack.c.0.s8 %v4744
    %v4746 = vperm.slane %v4742, %v4745
    %v4747 = vsel %vm495, %v4570, %v4559
    %v4749 = vunpack.c.l.s4 1983009808
    %v4750 = vunpack.c.0.s8 %v4749
    %v4751 = vperm.slane %v4747, %v4750
    %v4752 = vrot.slane %v4571, 4
    %v4753 = vsel %vm495, %v4752, %v4569
    %v4755 = vunpack.c.l.s4 1983009808
    %v4756 = vunpack.c.0.s8 %v4755
    %v4757 = vperm.slane %v4753, %v4756
    %v4758 = vrot.slane %v4746, 4
    %v4759 = vsel %vm495, %v4758, %v4740
    %v4760 = vrot.slane %v4740, 4
    %v4761 = vsel %vm495, %v4746, %v4760
    %v4763 = vunpack.c.l.s4 1934713408
    %v4764 = vunpack.c.0.s8 %v4763
    %v4765 = vperm.slane %v4759, %v4764
    %v4767 = vunpack.c.l.s4 1934713408
    %v4768 = vunpack.c.0.s8 %v4767
    %v4769 = vperm.slane %v4761, %v4768
    %v4770 = vrot.slane %v4757, 4
    %v4771 = vsel %vm495, %v4770, %v4751
    %v4772 = vrot.slane %v4751, 4
    %v4773 = vsel %vm495, %v4757, %v4772
    %v4775 = vunpack.c.l.s4 1934713408
    %v4776 = vunpack.c.0.s8 %v4775
    %v4777 = vperm.slane %v4771, %v4776
    %v4779 = vunpack.c.l.s4 1934713408
    %v4780 = vunpack.c.0.s8 %v4779
    %v4781 = vperm.slane %v4773, %v4780
    %v4782 = vrot.slane %v4777, 4
    %v4783 = vsel %vm495, %v4782, %v4765
    %v4784 = vrot.slane %v4765, 4
    %v4785 = vsel %vm495, %v4777, %v4784
    %v4786 = vrot.slane %v4781, 4
    %v4787 = vsel %vm495, %v4786, %v4769
    %v4788 = vrot.slane %v4769, 4
    %v4789 = vsel %vm495, %v4781, %v4788
    %v4790 = vsel %vm495, %v4622, %v4603
    %v4792 = vunpack.c.l.s4 1983009808
    %v4793 = vunpack.c.0.s8 %v4792
    %v4794 = vperm.slane %v4790, %v4793
    %v4795 = vrot.slane %v4623, 4
    %v4796 = vsel %vm495, %v4795, %v4621
    %v4798 = vunpack.c.l.s4 1983009808
    %v4799 = vunpack.c.0.s8 %v4798
    %v4800 = vperm.slane %v4796, %v4799
    %v4801 = vsel %vm495, %v4626, %v4615
    %v4803 = vunpack.c.l.s4 1983009808
    %v4804 = vunpack.c.0.s8 %v4803
    %v4805 = vperm.slane %v4801, %v4804
    %v4806 = vrot.slane %v4627, 4
    %v4807 = vsel %vm495, %v4806, %v4625
    %v4809 = vunpack.c.l.s4 1983009808
    %v4810 = vunpack.c.0.s8 %v4809
    %v4811 = vperm.slane %v4807, %v4810
    %v4812 = vrot.slane %v4800, 4
    %v4813 = vsel %vm495, %v4812, %v4794
    %v4814 = vrot.slane %v4794, 4
    %v4815 = vsel %vm495, %v4800, %v4814
    %v4817 = vunpack.c.l.s4 1934713408
    %v4818 = vunpack.c.0.s8 %v4817
    %v4819 = vperm.slane %v4813, %v4818
    %v4821 = vunpack.c.l.s4 1934713408
    %v4822 = vunpack.c.0.s8 %v4821
    %v4823 = vperm.slane %v4815, %v4822
    %v4824 = vrot.slane %v4811, 4
    %v4825 = vsel %vm495, %v4824, %v4805
    %v4826 = vrot.slane %v4805, 4
    %v4827 = vsel %vm495, %v4811, %v4826
    %v4829 = vunpack.c.l.s4 1934713408
    %v4830 = vunpack.c.0.s8 %v4829
    %v4831 = vperm.slane %v4825, %v4830
    %v4833 = vunpack.c.l.s4 1934713408
    %v4834 = vunpack.c.0.s8 %v4833
    %v4835 = vperm.slane %v4827, %v4834
    %v4836 = vrot.slane %v4831, 4
    %v4837 = vsel %vm495, %v4836, %v4819
    %v4838 = vrot.slane %v4819, 4
    %v4839 = vsel %vm495, %v4831, %v4838
    %v4840 = vrot.slane %v4835, 4
    %v4841 = vsel %vm495, %v4840, %v4823
    %v4842 = vrot.slane %v4823, 4
    %v4843 = vsel %vm495, %v4835, %v4842
    %v4845 = vsel %vm1895, %v3715, 0
    %v4848 = vsel %vm1895, %v3769, 0
    %v4851 = vsel %vm1895, %v4195, 0
    %v4854 = vsel %vm1895, %v4249, 0
    %4856 = vmatpush.xpose.msra.mxu0 0.0
    %4857 = vmatpush.xpose.msra.mxu0 0.0
    %4858 = vmatpush.xpose.msra.mxu0 0.0
    %4859 = vmatpush.xpose.msra.mxu0 0.0
    %4860 = vmatpush.xpose.msra.mxu0 0.0
    %4861 = vmatpush.xpose.msra.mxu0 0.0
    %4862 = vmatpush.xpose.msra.mxu0 0.0
    %4863 = vmatpush.xpose.msra.mxu0 0.0
    %4864 = vmatpush.xpose.msra.mxu0 0.0
    %4865 = vmatpush.xpose.msra.mxu0 0.0
    %4866 = vmatpush.xpose.msra.mxu0 0.0
    %4867 = vmatpush.xpose.msra.mxu0 0.0
    %4868 = vmatpush.xpose.msra.mxu0 0.0
    %4869 = vmatpush.xpose.msra.mxu0 0.0
    %4870 = vmatpush.xpose.msra.mxu0 %v4854
    %4871 = vmatpush.xpose.msra.mxu0 %v4851
    %4872 = vmatmul.f32.gmra.mxu0 %v4845
    %v4873 = vpop.f32.mrf.mxu0
    %v4874 = vadd.f32 0.0, %v4873
    %4875 = vmatmul.f32.gmra.mxu0 %v4848
    %v4876 = vpop.f32.mrf.mxu0
    %v4877 = vadd.f32 0.0, %v4876
    %4878 = vdwg.mxu0
    %v4880 = vsel %vm1895, %v3717, 0
    %v4883 = vsel %vm1895, %v3771, 0
    %v4886 = vsel %vm1895, %v4197, 0
    %v4889 = vsel %vm1895, %v4251, 0
    %4891 = vmatpush.xpose.msra.mxu0 0.0
    %4892 = vmatpush.xpose.msra.mxu0 0.0
    %4893 = vmatpush.xpose.msra.mxu0 0.0
    %4894 = vmatpush.xpose.msra.mxu0 0.0
    %4895 = vmatpush.xpose.msra.mxu0 0.0
    %4896 = vmatpush.xpose.msra.mxu0 0.0
    %4897 = vmatpush.xpose.msra.mxu0 0.0
    %4898 = vmatpush.xpose.msra.mxu0 0.0
    %4899 = vmatpush.xpose.msra.mxu0 0.0
    %4900 = vmatpush.xpose.msra.mxu0 0.0
    %4901 = vmatpush.xpose.msra.mxu0 0.0
    %4902 = vmatpush.xpose.msra.mxu0 0.0
    %4903 = vmatpush.xpose.msra.mxu0 0.0
    %4904 = vmatpush.xpose.msra.mxu0 0.0
    %4905 = vmatpush.xpose.msra.mxu0 %v4889
    %4906 = vmatpush.xpose.msra.mxu0 %v4886
    %4907 = vmatmul.f32.gmra.mxu0 %v4880
    %v4908 = vpop.f32.mrf.mxu0
    %v4909 = vadd.f32 0.0, %v4908
    %4910 = vmatmul.f32.gmra.mxu0 %v4883
    %v4911 = vpop.f32.mrf.mxu0
    %v4912 = vadd.f32 0.0, %v4911
    %4913 = vdwg.mxu0
    %v4915 = vsel %vm1895, %v3719, 0
    %v4918 = vsel %vm1895, %v3773, 0
    %v4921 = vsel %vm1895, %v4199, 0
    %v4924 = vsel %vm1895, %v4253, 0
    %4926 = vmatpush.xpose.msra.mxu0 0.0
    %4927 = vmatpush.xpose.msra.mxu0 0.0
    %4928 = vmatpush.xpose.msra.mxu0 0.0
    %4929 = vmatpush.xpose.msra.mxu0 0.0
    %4930 = vmatpush.xpose.msra.mxu0 0.0
    %4931 = vmatpush.xpose.msra.mxu0 0.0
    %4932 = vmatpush.xpose.msra.mxu0 0.0
    %4933 = vmatpush.xpose.msra.mxu0 0.0
    %4934 = vmatpush.xpose.msra.mxu0 0.0
    %4935 = vmatpush.xpose.msra.mxu0 0.0
    %4936 = vmatpush.xpose.msra.mxu0 0.0
    %4937 = vmatpush.xpose.msra.mxu0 0.0
    %4938 = vmatpush.xpose.msra.mxu0 0.0
    %4939 = vmatpush.xpose.msra.mxu0 0.0
    %4940 = vmatpush.xpose.msra.mxu0 %v4924
    %4941 = vmatpush.xpose.msra.mxu0 %v4921
    %4942 = vmatmul.f32.gmra.mxu0 %v4915
    %v4943 = vpop.f32.mrf.mxu0
    %v4944 = vadd.f32 0.0, %v4943
    %4945 = vmatmul.f32.gmra.mxu0 %v4918
    %v4946 = vpop.f32.mrf.mxu0
    %v4947 = vadd.f32 0.0, %v4946
    %4948 = vdwg.mxu0
    %v4950 = vsel %vm1895, %v3721, 0
    %v4953 = vsel %vm1895, %v3775, 0
    %v4956 = vsel %vm1895, %v4201, 0
    %v4959 = vsel %vm1895, %v4255, 0
    %4961 = vmatpush.xpose.msra.mxu0 0.0
    %4962 = vmatpush.xpose.msra.mxu0 0.0
    %4963 = vmatpush.xpose.msra.mxu0 0.0
    %4964 = vmatpush.xpose.msra.mxu0 0.0
    %4965 = vmatpush.xpose.msra.mxu0 0.0
    %4966 = vmatpush.xpose.msra.mxu0 0.0
    %4967 = vmatpush.xpose.msra.mxu0 0.0
    %4968 = vmatpush.xpose.msra.mxu0 0.0
    %4969 = vmatpush.xpose.msra.mxu0 0.0
    %4970 = vmatpush.xpose.msra.mxu0 0.0
    %4971 = vmatpush.xpose.msra.mxu0 0.0
    %4972 = vmatpush.xpose.msra.mxu0 0.0
    %4973 = vmatpush.xpose.msra.mxu0 0.0
    %4974 = vmatpush.xpose.msra.mxu0 0.0
    %4975 = vmatpush.xpose.msra.mxu0 %v4959
    %4976 = vmatpush.xpose.msra.mxu0 %v4956
    %4977 = vmatmul.f32.gmra.mxu0 %v4950
    %v4978 = vpop.f32.mrf.mxu0
    %v4979 = vadd.f32 0.0, %v4978
    %4980 = vmatmul.f32.gmra.mxu0 %v4953
    %v4981 = vpop.f32.mrf.mxu0
    %v4982 = vadd.f32 0.0, %v4981
    %4983 = vdwg.mxu0
    %v4985 = vsel %vm1895, %v3823, 0
    %v4988 = vsel %vm1895, %v3877, 0
    %v4991 = vsel %vm1895, %v4303, 0
    %v4994 = vsel %vm1895, %v4357, 0
    %4996 = vmatpush.xpose.msra.mxu0 0.0
    %4997 = vmatpush.xpose.msra.mxu0 0.0
    %4998 = vmatpush.xpose.msra.mxu0 0.0
    %4999 = vmatpush.xpose.msra.mxu0 0.0
    %5000 = vmatpush.xpose.msra.mxu0 0.0
    %5001 = vmatpush.xpose.msra.mxu0 0.0
    %5002 = vmatpush.xpose.msra.mxu0 0.0
    %5003 = vmatpush.xpose.msra.mxu0 0.0
    %5004 = vmatpush.xpose.msra.mxu0 0.0
    %5005 = vmatpush.xpose.msra.mxu0 0.0
    %5006 = vmatpush.xpose.msra.mxu0 0.0
    %5007 = vmatpush.xpose.msra.mxu0 0.0
    %5008 = vmatpush.xpose.msra.mxu0 0.0
    %5009 = vmatpush.xpose.msra.mxu0 0.0
    %5010 = vmatpush.xpose.msra.mxu0 %v4994
    %5011 = vmatpush.xpose.msra.mxu0 %v4991
    %5012 = vmatmul.f32.gmra.mxu0 %v4985
    %v5013 = vpop.f32.mrf.mxu0
    %v5014 = vadd.f32 0.0, %v5013
    %5015 = vmatmul.f32.gmra.mxu0 %v4988
    %v5016 = vpop.f32.mrf.mxu0
    %v5017 = vadd.f32 0.0, %v5016
    %5018 = vdwg.mxu0
    %v5020 = vsel %vm1895, %v3825, 0
    %v5023 = vsel %vm1895, %v3879, 0
    %v5026 = vsel %vm1895, %v4305, 0
    %v5029 = vsel %vm1895, %v4359, 0
    %5031 = vmatpush.xpose.msra.mxu0 0.0
    %5032 = vmatpush.xpose.msra.mxu0 0.0
    %5033 = vmatpush.xpose.msra.mxu0 0.0
    %5034 = vmatpush.xpose.msra.mxu0 0.0
    %5035 = vmatpush.xpose.msra.mxu0 0.0
    %5036 = vmatpush.xpose.msra.mxu0 0.0
    %5037 = vmatpush.xpose.msra.mxu0 0.0
    %5038 = vmatpush.xpose.msra.mxu0 0.0
    %5039 = vmatpush.xpose.msra.mxu0 0.0
    %5040 = vmatpush.xpose.msra.mxu0 0.0
    %5041 = vmatpush.xpose.msra.mxu0 0.0
    %5042 = vmatpush.xpose.msra.mxu0 0.0
    %5043 = vmatpush.xpose.msra.mxu0 0.0
    %5044 = vmatpush.xpose.msra.mxu0 0.0
    %5045 = vmatpush.xpose.msra.mxu0 %v5029
    %5046 = vmatpush.xpose.msra.mxu0 %v5026
    %5047 = vmatmul.f32.gmra.mxu0 %v5020
    %v5048 = vpop.f32.mrf.mxu0
    %v5049 = vadd.f32 0.0, %v5048
    %5050 = vmatmul.f32.gmra.mxu0 %v5023
    %v5051 = vpop.f32.mrf.mxu0
    %v5052 = vadd.f32 0.0, %v5051
    %5053 = vdwg.mxu0
    %v5055 = vsel %vm1895, %v3827, 0
    %v5058 = vsel %vm1895, %v3881, 0
    %v5061 = vsel %vm1895, %v4307, 0
    %v5064 = vsel %vm1895, %v4361, 0
    %5066 = vmatpush.xpose.msra.mxu0 0.0
    %5067 = vmatpush.xpose.msra.mxu0 0.0
    %5068 = vmatpush.xpose.msra.mxu0 0.0
    %5069 = vmatpush.xpose.msra.mxu0 0.0
    %5070 = vmatpush.xpose.msra.mxu0 0.0
    %5071 = vmatpush.xpose.msra.mxu0 0.0
    %5072 = vmatpush.xpose.msra.mxu0 0.0
    %5073 = vmatpush.xpose.msra.mxu0 0.0
    %5074 = vmatpush.xpose.msra.mxu0 0.0
    %5075 = vmatpush.xpose.msra.mxu0 0.0
    %5076 = vmatpush.xpose.msra.mxu0 0.0
    %5077 = vmatpush.xpose.msra.mxu0 0.0
    %5078 = vmatpush.xpose.msra.mxu0 0.0
    %5079 = vmatpush.xpose.msra.mxu0 0.0
    %5080 = vmatpush.xpose.msra.mxu0 %v5064
    %5081 = vmatpush.xpose.msra.mxu0 %v5061
    %5082 = vmatmul.f32.gmra.mxu0 %v5055
    %v5083 = vpop.f32.mrf.mxu0
    %v5084 = vadd.f32 0.0, %v5083
    %5085 = vmatmul.f32.gmra.mxu0 %v5058
    %v5086 = vpop.f32.mrf.mxu0
    %v5087 = vadd.f32 0.0, %v5086
    %5088 = vdwg.mxu0
    %v5090 = vsel %vm1895, %v3829, 0
    %v5093 = vsel %vm1895, %v3883, 0
    %v5096 = vsel %vm1895, %v4309, 0
    %v5099 = vsel %vm1895, %v4363, 0
    %5101 = vmatpush.xpose.msra.mxu0 0.0
    %5102 = vmatpush.xpose.msra.mxu0 0.0
    %5103 = vmatpush.xpose.msra.mxu0 0.0
    %5104 = vmatpush.xpose.msra.mxu0 0.0
    %5105 = vmatpush.xpose.msra.mxu0 0.0
    %5106 = vmatpush.xpose.msra.mxu0 0.0
    %5107 = vmatpush.xpose.msra.mxu0 0.0
    %5108 = vmatpush.xpose.msra.mxu0 0.0
    %5109 = vmatpush.xpose.msra.mxu0 0.0
    %5110 = vmatpush.xpose.msra.mxu0 0.0
    %5111 = vmatpush.xpose.msra.mxu0 0.0
    %5112 = vmatpush.xpose.msra.mxu0 0.0
    %5113 = vmatpush.xpose.msra.mxu0 0.0
    %5114 = vmatpush.xpose.msra.mxu0 0.0
    %5115 = vmatpush.xpose.msra.mxu0 %v5099
    %5116 = vmatpush.xpose.msra.mxu0 %v5096
    %5117 = vmatmul.f32.gmra.mxu0 %v5090
    %v5118 = vpop.f32.mrf.mxu0
    %v5119 = vadd.f32 0.0, %v5118
    %5120 = vmatmul.f32.gmra.mxu0 %v5093
    %v5121 = vpop.f32.mrf.mxu0
    %v5122 = vadd.f32 0.0, %v5121
    %5123 = vdwg.mxu0
    %v5126 = vperm.slane %v292, 0
    %v5127 = vperm.slane %v293, 0
    %v5130 = vadd.f32 %v4874, %v5126
    %v5131 = vadd.f32 %v4877, %v5126
    %v5132 = vadd.f32 %v4909, %v5126
    %v5133 = vadd.f32 %v4912, %v5126
    %v5134 = vadd.f32 %v4944, %v5126
    %v5135 = vadd.f32 %v4947, %v5126
    %v5136 = vadd.f32 %v4979, %v5126
    %v5137 = vadd.f32 %v4982, %v5126
    %v5138 = vadd.f32 %v5014, %v5127
    %v5139 = vadd.f32 %v5017, %v5127
    %v5140 = vadd.f32 %v5049, %v5127
    %v5141 = vadd.f32 %v5052, %v5127
    %v5142 = vadd.f32 %v5084, %v5127
    %v5143 = vadd.f32 %v5087, %v5127
    %v5144 = vadd.f32 %v5119, %v5127
    %v5145 = vadd.f32 %v5122, %v5127
    %v5146 = vsel %vm2192, %v5130, -inf
    %5147 = vmax.xlane.f32.xlu0 %v5146
    %v5148 = vpop.xlane.xlu0 %5147
    %v5149 = vsel %vm2192, %v5131, -inf
    %5150 = vmax.xlane.f32.xlu0 %v5149
    %v5151 = vpop.xlane.xlu0 %5150
    %v5152 = vsel %vm2192, %v5132, -inf
    %5153 = vmax.xlane.f32.xlu0 %v5152
    %v5154 = vpop.xlane.xlu0 %5153
    %v5155 = vsel %vm2192, %v5133, -inf
    %5156 = vmax.xlane.f32.xlu0 %v5155
    %v5157 = vpop.xlane.xlu0 %5156
    %v5158 = vsel %vm2192, %v5134, -inf
    %5159 = vmax.xlane.f32.xlu0 %v5158
    %v5160 = vpop.xlane.xlu0 %5159
    %v5161 = vsel %vm2192, %v5135, -inf
    %5162 = vmax.xlane.f32.xlu0 %v5161
    %v5163 = vpop.xlane.xlu0 %5162
    %v5164 = vsel %vm2192, %v5136, -inf
    %5165 = vmax.xlane.f32.xlu0 %v5164
    %v5166 = vpop.xlane.xlu0 %5165
    %v5167 = vsel %vm2192, %v5137, -inf
    %5168 = vmax.xlane.f32.xlu0 %v5167
    %v5169 = vpop.xlane.xlu0 %5168
    %v5170 = vsel %vm2192, %v5138, -inf
    %5171 = vmax.xlane.f32.xlu0 %v5170
    %v5172 = vpop.xlane.xlu0 %5171
    %v5173 = vsel %vm2192, %v5139, -inf
    %5174 = vmax.xlane.f32.xlu0 %v5173
    %v5175 = vpop.xlane.xlu0 %5174
    %v5176 = vsel %vm2192, %v5140, -inf
    %5177 = vmax.xlane.f32.xlu0 %v5176
    %v5178 = vpop.xlane.xlu0 %5177
    %v5179 = vsel %vm2192, %v5141, -inf
    %5180 = vmax.xlane.f32.xlu0 %v5179
    %v5181 = vpop.xlane.xlu0 %5180
    %v5182 = vsel %vm2192, %v5142, -inf
    %5183 = vmax.xlane.f32.xlu0 %v5182
    %v5184 = vpop.xlane.xlu0 %5183
    %v5185 = vsel %vm2192, %v5143, -inf
    %5186 = vmax.xlane.f32.xlu0 %v5185
    %v5187 = vpop.xlane.xlu0 %5186
    %v5188 = vsel %vm2192, %v5144, -inf
    %5189 = vmax.xlane.f32.xlu0 %v5188
    %v5190 = vpop.xlane.xlu0 %5189
    %v5191 = vsel %vm2192, %v5145, -inf
    %5192 = vmax.xlane.f32.xlu0 %v5191
    %v5193 = vpop.xlane.xlu0 %5192
    %v5194 = vsub.f32 %v5130, %v5148
    %v5195 = vsub.f32 %v5131, %v5151
    %v5196 = vsub.f32 %v5132, %v5154
    %v5197 = vsub.f32 %v5133, %v5157
    %v5198 = vsub.f32 %v5134, %v5160
    %v5199 = vsub.f32 %v5135, %v5163
    %v5200 = vsub.f32 %v5136, %v5166
    %v5201 = vsub.f32 %v5137, %v5169
    %v5202 = vsub.f32 %v5138, %v5172
    %v5203 = vsub.f32 %v5139, %v5175
    %v5204 = vsub.f32 %v5140, %v5178
    %v5205 = vsub.f32 %v5141, %v5181
    %v5206 = vsub.f32 %v5142, %v5184
    %v5207 = vsub.f32 %v5143, %v5187
    %v5208 = vsub.f32 %v5144, %v5190
    %v5209 = vsub.f32 %v5145, %v5193
    %v5210 = vmul.f32 %v5194, 1.442695
    %v5211 = vpow.pop %v5210
    %v5212 = vmul.f32 %v5195, 1.442695
    %v5213 = vpow.pop %v5212
    %v5214 = vmul.f32 %v5196, 1.442695
    %v5215 = vpow.pop %v5214
    %v5216 = vmul.f32 %v5197, 1.442695
    %v5217 = vpow.pop %v5216
    %v5218 = vmul.f32 %v5198, 1.442695
    %v5219 = vpow.pop %v5218
    %v5220 = vmul.f32 %v5199, 1.442695
    %v5221 = vpow.pop %v5220
    %v5222 = vmul.f32 %v5200, 1.442695
    %v5223 = vpow.pop %v5222
    %v5224 = vmul.f32 %v5201, 1.442695
    %v5225 = vpow.pop %v5224
    %v5226 = vmul.f32 %v5202, 1.442695
    %v5227 = vpow.pop %v5226
    %v5228 = vmul.f32 %v5203, 1.442695
    %v5229 = vpow.pop %v5228
    %v5230 = vmul.f32 %v5204, 1.442695
    %v5231 = vpow.pop %v5230
    %v5232 = vmul.f32 %v5205, 1.442695
    %v5233 = vpow.pop %v5232
    %v5234 = vmul.f32 %v5206, 1.442695
    %v5235 = vpow.pop %v5234
    %v5236 = vmul.f32 %v5207, 1.442695
    %v5237 = vpow.pop %v5236
    %v5238 = vmul.f32 %v5208, 1.442695
    %v5239 = vpow.pop %v5238
    %v5240 = vmul.f32 %v5209, 1.442695
    %v5241 = vpow.pop %v5240
    %v5242 = vsel %vm2192, %v5211, 0.0
    %5243 = vadd.xlane.f32.xlu0 %v5242
    %v5244 = vpop.xlane.xlu0 %5243
    %v5245 = vsel %vm2192, %v5213, 0.0
    %5246 = vadd.xlane.f32.xlu0 %v5245
    %v5247 = vpop.xlane.xlu0 %5246
    %v5248 = vsel %vm2192, %v5215, 0.0
    %5249 = vadd.xlane.f32.xlu0 %v5248
    %v5250 = vpop.xlane.xlu0 %5249
    %v5251 = vsel %vm2192, %v5217, 0.0
    %5252 = vadd.xlane.f32.xlu0 %v5251
    %v5253 = vpop.xlane.xlu0 %5252
    %v5254 = vsel %vm2192, %v5219, 0.0
    %5255 = vadd.xlane.f32.xlu0 %v5254
    %v5256 = vpop.xlane.xlu0 %5255
    %v5257 = vsel %vm2192, %v5221, 0.0
    %5258 = vadd.xlane.f32.xlu0 %v5257
    %v5259 = vpop.xlane.xlu0 %5258
    %v5260 = vsel %vm2192, %v5223, 0.0
    %5261 = vadd.xlane.f32.xlu0 %v5260
    %v5262 = vpop.xlane.xlu0 %5261
    %v5263 = vsel %vm2192, %v5225, 0.0
    %5264 = vadd.xlane.f32.xlu0 %v5263
    %v5265 = vpop.xlane.xlu0 %5264
    %v5266 = vsel %vm2192, %v5227, 0.0
    %5267 = vadd.xlane.f32.xlu0 %v5266
    %v5268 = vpop.xlane.xlu0 %5267
    %v5269 = vsel %vm2192, %v5229, 0.0
    %5270 = vadd.xlane.f32.xlu0 %v5269
    %v5271 = vpop.xlane.xlu0 %5270
    %v5272 = vsel %vm2192, %v5231, 0.0
    %5273 = vadd.xlane.f32.xlu0 %v5272
    %v5274 = vpop.xlane.xlu0 %5273
    %v5275 = vsel %vm2192, %v5233, 0.0
    %5276 = vadd.xlane.f32.xlu0 %v5275
    %v5277 = vpop.xlane.xlu0 %5276
    %v5278 = vsel %vm2192, %v5235, 0.0
    %5279 = vadd.xlane.f32.xlu0 %v5278
    %v5280 = vpop.xlane.xlu0 %5279
    %v5281 = vsel %vm2192, %v5237, 0.0
    %5282 = vadd.xlane.f32.xlu0 %v5281
    %v5283 = vpop.xlane.xlu0 %5282
    %v5284 = vsel %vm2192, %v5239, 0.0
    %5285 = vadd.xlane.f32.xlu0 %v5284
    %v5286 = vpop.xlane.xlu0 %5285
    %v5287 = vsel %vm2192, %v5241, 0.0
    %5288 = vadd.xlane.f32.xlu0 %v5287
    %v5289 = vpop.xlane.xlu0 %5288
    %v5290 = vrcp.pop %v5244
    %v5291 = vrcp.pop %v5247
    %v5292 = vrcp.pop %v5250
    %v5293 = vrcp.pop %v5253
    %v5294 = vrcp.pop %v5256
    %v5295 = vrcp.pop %v5259
    %v5296 = vrcp.pop %v5262
    %v5297 = vrcp.pop %v5265
    %v5298 = vrcp.pop %v5268
    %v5299 = vrcp.pop %v5271
    %v5300 = vrcp.pop %v5274
    %v5301 = vrcp.pop %v5277
    %v5302 = vrcp.pop %v5280
    %v5303 = vrcp.pop %v5283
    %v5304 = vrcp.pop %v5286
    %v5305 = vrcp.pop %v5289
    %v5306 = vmul.f32 %v5211, %v5290
    %v5307 = vmul.f32 %v5213, %v5291
    %v5308 = vmul.f32 %v5215, %v5292
    %v5309 = vmul.f32 %v5217, %v5293
    %v5310 = vmul.f32 %v5219, %v5294
    %v5311 = vmul.f32 %v5221, %v5295
    %v5312 = vmul.f32 %v5223, %v5296
    %v5313 = vmul.f32 %v5225, %v5297
    %v5314 = vmul.f32 %v5227, %v5298
    %v5315 = vmul.f32 %v5229, %v5299
    %v5316 = vmul.f32 %v5231, %v5300
    %v5317 = vmul.f32 %v5233, %v5301
    %v5318 = vmul.f32 %v5235, %v5302
    %v5319 = vmul.f32 %v5237, %v5303
    %v5320 = vmul.f32 %v5239, %v5304
    %v5321 = vmul.f32 %v5241, %v5305
    %v5323 = vsel %vm2192, %v5306, 0
    %v5326 = vsel %vm2192, %v5307, 0
    %5328 = vmatpush.msra.mxu0 0.0
    %5329 = vmatpush.msra.mxu0 0.0
    %5330 = vmatpush.msra.mxu0 0.0
    %5331 = vmatpush.msra.mxu0 0.0
    %5332 = vmatpush.msra.mxu0 0.0
    %5333 = vmatpush.msra.mxu0 0.0
    %5334 = vmatpush.msra.mxu0 0.0
    %5335 = vmatpush.msra.mxu0 0.0
    %5336 = vmatpush.msra.mxu0 0.0
    %5337 = vmatpush.msra.mxu0 0.0
    %5338 = vmatpush.msra.mxu0 0.0
    %5339 = vmatpush.msra.mxu0 0.0
    %5340 = vmatpush.msra.mxu0 0.0
    %5341 = vmatpush.msra.mxu0 0.0
    %5342 = vmatpush.msra.mxu0 %v4729
    %5343 = vmatpush.msra.mxu0 %v4675
    %5344 = vmatmul.f32.gmra.mxu0 %v5323
    %v5345 = vpop.f32.mrf.mxu0
    %v5346 = vadd.f32 0.0, %v5345
    %5347 = vmatmul.f32.gmra.mxu0 %v5326
    %v5348 = vpop.f32.mrf.mxu0
    %v5349 = vadd.f32 0.0, %v5348
    %5350 = vdwg.mxu0
    %v5352 = vsel %vm2192, %v5308, 0
    %v5355 = vsel %vm2192, %v5309, 0
    %5357 = vmatpush.msra.mxu0 0.0
    %5358 = vmatpush.msra.mxu0 0.0
    %5359 = vmatpush.msra.mxu0 0.0
    %5360 = vmatpush.msra.mxu0 0.0
    %5361 = vmatpush.msra.mxu0 0.0
    %5362 = vmatpush.msra.mxu0 0.0
    %5363 = vmatpush.msra.mxu0 0.0
    %5364 = vmatpush.msra.mxu0 0.0
    %5365 = vmatpush.msra.mxu0 0.0
    %5366 = vmatpush.msra.mxu0 0.0
    %5367 = vmatpush.msra.mxu0 0.0
    %5368 = vmatpush.msra.mxu0 0.0
    %5369 = vmatpush.msra.mxu0 0.0
    %5370 = vmatpush.msra.mxu0 0.0
    %5371 = vmatpush.msra.mxu0 %v4731
    %5372 = vmatpush.msra.mxu0 %v4677
    %5373 = vmatmul.f32.gmra.mxu0 %v5352
    %v5374 = vpop.f32.mrf.mxu0
    %v5375 = vadd.f32 0.0, %v5374
    %5376 = vmatmul.f32.gmra.mxu0 %v5355
    %v5377 = vpop.f32.mrf.mxu0
    %v5378 = vadd.f32 0.0, %v5377
    %5379 = vdwg.mxu0
    %v5381 = vsel %vm2192, %v5310, 0
    %v5384 = vsel %vm2192, %v5311, 0
    %5386 = vmatpush.msra.mxu0 0.0
    %5387 = vmatpush.msra.mxu0 0.0
    %5388 = vmatpush.msra.mxu0 0.0
    %5389 = vmatpush.msra.mxu0 0.0
    %5390 = vmatpush.msra.mxu0 0.0
    %5391 = vmatpush.msra.mxu0 0.0
    %5392 = vmatpush.msra.mxu0 0.0
    %5393 = vmatpush.msra.mxu0 0.0
    %5394 = vmatpush.msra.mxu0 0.0
    %5395 = vmatpush.msra.mxu0 0.0
    %5396 = vmatpush.msra.mxu0 0.0
    %5397 = vmatpush.msra.mxu0 0.0
    %5398 = vmatpush.msra.mxu0 0.0
    %5399 = vmatpush.msra.mxu0 0.0
    %5400 = vmatpush.msra.mxu0 %v4733
    %5401 = vmatpush.msra.mxu0 %v4679
    %5402 = vmatmul.f32.gmra.mxu0 %v5381
    %v5403 = vpop.f32.mrf.mxu0
    %v5404 = vadd.f32 0.0, %v5403
    %5405 = vmatmul.f32.gmra.mxu0 %v5384
    %v5406 = vpop.f32.mrf.mxu0
    %v5407 = vadd.f32 0.0, %v5406
    %5408 = vdwg.mxu0
    %v5410 = vsel %vm2192, %v5312, 0
    %v5413 = vsel %vm2192, %v5313, 0
    %5415 = vmatpush.msra.mxu0 0.0
    %5416 = vmatpush.msra.mxu0 0.0
    %5417 = vmatpush.msra.mxu0 0.0
    %5418 = vmatpush.msra.mxu0 0.0
    %5419 = vmatpush.msra.mxu0 0.0
    %5420 = vmatpush.msra.mxu0 0.0
    %5421 = vmatpush.msra.mxu0 0.0
    %5422 = vmatpush.msra.mxu0 0.0
    %5423 = vmatpush.msra.mxu0 0.0
    %5424 = vmatpush.msra.mxu0 0.0
    %5425 = vmatpush.msra.mxu0 0.0
    %5426 = vmatpush.msra.mxu0 0.0
    %5427 = vmatpush.msra.mxu0 0.0
    %5428 = vmatpush.msra.mxu0 0.0
    %5429 = vmatpush.msra.mxu0 %v4735
    %5430 = vmatpush.msra.mxu0 %v4681
    %5431 = vmatmul.f32.gmra.mxu0 %v5410
    %v5432 = vpop.f32.mrf.mxu0
    %v5433 = vadd.f32 0.0, %v5432
    %5434 = vmatmul.f32.gmra.mxu0 %v5413
    %v5435 = vpop.f32.mrf.mxu0
    %v5436 = vadd.f32 0.0, %v5435
    %5437 = vdwg.mxu0
    %v5439 = vsel %vm2192, %v5314, 0
    %v5442 = vsel %vm2192, %v5315, 0
    %5444 = vmatpush.msra.mxu0 0.0
    %5445 = vmatpush.msra.mxu0 0.0
    %5446 = vmatpush.msra.mxu0 0.0
    %5447 = vmatpush.msra.mxu0 0.0
    %5448 = vmatpush.msra.mxu0 0.0
    %5449 = vmatpush.msra.mxu0 0.0
    %5450 = vmatpush.msra.mxu0 0.0
    %5451 = vmatpush.msra.mxu0 0.0
    %5452 = vmatpush.msra.mxu0 0.0
    %5453 = vmatpush.msra.mxu0 0.0
    %5454 = vmatpush.msra.mxu0 0.0
    %5455 = vmatpush.msra.mxu0 0.0
    %5456 = vmatpush.msra.mxu0 0.0
    %5457 = vmatpush.msra.mxu0 0.0
    %5458 = vmatpush.msra.mxu0 %v4837
    %5459 = vmatpush.msra.mxu0 %v4783
    %5460 = vmatmul.f32.gmra.mxu0 %v5439
    %v5461 = vpop.f32.mrf.mxu0
    %v5462 = vadd.f32 0.0, %v5461
    %5463 = vmatmul.f32.gmra.mxu0 %v5442
    %v5464 = vpop.f32.mrf.mxu0
    %v5465 = vadd.f32 0.0, %v5464
    %5466 = vdwg.mxu0
    %v5468 = vsel %vm2192, %v5316, 0
    %v5471 = vsel %vm2192, %v5317, 0
    %5473 = vmatpush.msra.mxu0 0.0
    %5474 = vmatpush.msra.mxu0 0.0
    %5475 = vmatpush.msra.mxu0 0.0
    %5476 = vmatpush.msra.mxu0 0.0
    %5477 = vmatpush.msra.mxu0 0.0
    %5478 = vmatpush.msra.mxu0 0.0
    %5479 = vmatpush.msra.mxu0 0.0
    %5480 = vmatpush.msra.mxu0 0.0
    %5481 = vmatpush.msra.mxu0 0.0
    %5482 = vmatpush.msra.mxu0 0.0
    %5483 = vmatpush.msra.mxu0 0.0
    %5484 = vmatpush.msra.mxu0 0.0
    %5485 = vmatpush.msra.mxu0 0.0
    %5486 = vmatpush.msra.mxu0 0.0
    %5487 = vmatpush.msra.mxu0 %v4839
    %5488 = vmatpush.msra.mxu0 %v4785
    %5489 = vmatmul.f32.gmra.mxu0 %v5468
    %v5490 = vpop.f32.mrf.mxu0
    %v5491 = vadd.f32 0.0, %v5490
    %5492 = vmatmul.f32.gmra.mxu0 %v5471
    %v5493 = vpop.f32.mrf.mxu0
    %v5494 = vadd.f32 0.0, %v5493
    %5495 = vdwg.mxu0
    %v5497 = vsel %vm2192, %v5318, 0
    %v5500 = vsel %vm2192, %v5319, 0
    %5502 = vmatpush.msra.mxu0 0.0
    %5503 = vmatpush.msra.mxu0 0.0
    %5504 = vmatpush.msra.mxu0 0.0
    %5505 = vmatpush.msra.mxu0 0.0
    %5506 = vmatpush.msra.mxu0 0.0
    %5507 = vmatpush.msra.mxu0 0.0
    %5508 = vmatpush.msra.mxu0 0.0
    %5509 = vmatpush.msra.mxu0 0.0
    %5510 = vmatpush.msra.mxu0 0.0
    %5511 = vmatpush.msra.mxu0 0.0
    %5512 = vmatpush.msra.mxu0 0.0
    %5513 = vmatpush.msra.mxu0 0.0
    %5514 = vmatpush.msra.mxu0 0.0
    %5515 = vmatpush.msra.mxu0 0.0
    %5516 = vmatpush.msra.mxu0 %v4841
    %5517 = vmatpush.msra.mxu0 %v4787
    %5518 = vmatmul.f32.gmra.mxu0 %v5497
    %v5519 = vpop.f32.mrf.mxu0
    %v5520 = vadd.f32 0.0, %v5519
    %5521 = vmatmul.f32.gmra.mxu0 %v5500
    %v5522 = vpop.f32.mrf.mxu0
    %v5523 = vadd.f32 0.0, %v5522
    %5524 = vdwg.mxu0
    %v5526 = vsel %vm2192, %v5320, 0
    %v5529 = vsel %vm2192, %v5321, 0
    %5531 = vmatpush.msra.mxu0 0.0
    %5532 = vmatpush.msra.mxu0 0.0
    %5533 = vmatpush.msra.mxu0 0.0
    %5534 = vmatpush.msra.mxu0 0.0
    %5535 = vmatpush.msra.mxu0 0.0
    %5536 = vmatpush.msra.mxu0 0.0
    %5537 = vmatpush.msra.mxu0 0.0
    %5538 = vmatpush.msra.mxu0 0.0
    %5539 = vmatpush.msra.mxu0 0.0
    %5540 = vmatpush.msra.mxu0 0.0
    %5541 = vmatpush.msra.mxu0 0.0
    %5542 = vmatpush.msra.mxu0 0.0
    %5543 = vmatpush.msra.mxu0 0.0
    %5544 = vmatpush.msra.mxu0 0.0
    %5545 = vmatpush.msra.mxu0 %v4843
    %5546 = vmatpush.msra.mxu0 %v4789
    %5547 = vmatmul.f32.gmra.mxu0 %v5526
    %v5548 = vpop.f32.mrf.mxu0
    %v5549 = vadd.f32 0.0, %v5548
    %5550 = vmatmul.f32.gmra.mxu0 %v5529
    %v5551 = vpop.f32.mrf.mxu0
    %v5552 = vadd.f32 0.0, %v5551
    %5553 = vdwg.mxu0
    %v5554 = vrot.slane %v5404, 4
    %v5555 = vsel %vm495, %v5554, %v5346
    %v5556 = vrot.slane %v5346, 4
    %v5557 = vsel %vm495, %v5404, %v5556
    %v5559 = vunpack.c.l.s4 1983009808
    %v5560 = vunpack.c.0.s8 %v5559
    %v5561 = vperm.slane %v5555, %v5560
    %v5563 = vunpack.c.l.s4 1983009808
    %v5564 = vunpack.c.0.s8 %v5563
    %v5565 = vperm.slane %v5557, %v5564
    %v5566 = vrot.slane %v5433, 4
    %v5567 = vsel %vm495, %v5566, %v5375
    %v5568 = vrot.slane %v5375, 4
    %v5569 = vsel %vm495, %v5433, %v5568
    %v5571 = vunpack.c.l.s4 1983009808
    %v5572 = vunpack.c.0.s8 %v5571
    %v5573 = vperm.slane %v5567, %v5572
    %v5575 = vunpack.c.l.s4 1983009808
    %v5576 = vunpack.c.0.s8 %v5575
    %v5577 = vperm.slane %v5569, %v5576
    %v5578 = vrot.slane %v5573, 4
    %v5579 = vsel %vm495, %v5578, %v5561
    %v5580 = vrot.slane %v5561, 4
    %v5581 = vsel %vm495, %v5573, %v5580
    %v5583 = vunpack.c.l.s4 1934713408
    %v5584 = vunpack.c.0.s8 %v5583
    %v5585 = vperm.slane %v5579, %v5584
    %v5587 = vunpack.c.l.s4 1934713408
    %v5588 = vunpack.c.0.s8 %v5587
    %v5589 = vperm.slane %v5581, %v5588
    %v5590 = vrot.slane %v5577, 4
    %v5591 = vsel %vm495, %v5590, %v5565
    %v5592 = vrot.slane %v5565, 4
    %v5593 = vsel %vm495, %v5577, %v5592
    %v5595 = vunpack.c.l.s4 1934713408
    %v5596 = vunpack.c.0.s8 %v5595
    %v5597 = vperm.slane %v5591, %v5596
    %v5599 = vunpack.c.l.s4 1934713408
    %v5600 = vunpack.c.0.s8 %v5599
    %v5601 = vperm.slane %v5593, %v5600
    %v5602 = vrot.slane %v5585, 4
    %v5603 = vsel %vm495, 0.0, %v5602
    %v5604 = vrot.slane %v5589, 4
    %v5605 = vsel %vm495, 0.0, %v5604
    %v5606 = vrot.slane %v5597, 4
    %v5607 = vsel %vm495, 0.0, %v5606
    %v5608 = vrot.slane %v5601, 4
    %v5609 = vsel %vm495, 0.0, %v5608
    %v5610 = vrot.slane %v5407, 4
    %v5611 = vsel %vm495, %v5610, %v5349
    %v5612 = vrot.slane %v5349, 4
    %v5613 = vsel %vm495, %v5407, %v5612
    %v5615 = vunpack.c.l.s4 1983009808
    %v5616 = vunpack.c.0.s8 %v5615
    %v5617 = vperm.slane %v5611, %v5616
    %v5619 = vunpack.c.l.s4 1983009808
    %v5620 = vunpack.c.0.s8 %v5619
    %v5621 = vperm.slane %v5613, %v5620
    %v5622 = vrot.slane %v5436, 4
    %v5623 = vsel %vm495, %v5622, %v5378
    %v5624 = vrot.slane %v5378, 4
    %v5625 = vsel %vm495, %v5436, %v5624
    %v5627 = vunpack.c.l.s4 1983009808
    %v5628 = vunpack.c.0.s8 %v5627
    %v5629 = vperm.slane %v5623, %v5628
    %v5631 = vunpack.c.l.s4 1983009808
    %v5632 = vunpack.c.0.s8 %v5631
    %v5633 = vperm.slane %v5625, %v5632
    %v5634 = vrot.slane %v5629, 4
    %v5635 = vsel %vm495, %v5634, %v5617
    %v5636 = vrot.slane %v5617, 4
    %v5637 = vsel %vm495, %v5629, %v5636
    %v5639 = vunpack.c.l.s4 1934713408
    %v5640 = vunpack.c.0.s8 %v5639
    %v5641 = vperm.slane %v5635, %v5640
    %v5643 = vunpack.c.l.s4 1934713408
    %v5644 = vunpack.c.0.s8 %v5643
    %v5645 = vperm.slane %v5637, %v5644
    %v5646 = vrot.slane %v5633, 4
    %v5647 = vsel %vm495, %v5646, %v5621
    %v5648 = vrot.slane %v5621, 4
    %v5649 = vsel %vm495, %v5633, %v5648
    %v5651 = vunpack.c.l.s4 1934713408
    %v5652 = vunpack.c.0.s8 %v5651
    %v5653 = vperm.slane %v5647, %v5652
    %v5655 = vunpack.c.l.s4 1934713408
    %v5656 = vunpack.c.0.s8 %v5655
    %v5657 = vperm.slane %v5649, %v5656
    %v5658 = vrot.slane %v5641, 4
    %v5659 = vsel %vm495, 0.0, %v5658
    %v5660 = vrot.slane %v5645, 4
    %v5661 = vsel %vm495, 0.0, %v5660
    %v5662 = vrot.slane %v5653, 4
    %v5663 = vsel %vm495, 0.0, %v5662
    %v5664 = vrot.slane %v5657, 4
    %v5665 = vsel %vm495, 0.0, %v5664
    %v5666 = vrot.slane %v5520, 4
    %v5667 = vsel %vm495, %v5666, %v5462
    %v5668 = vrot.slane %v5462, 4
    %v5669 = vsel %vm495, %v5520, %v5668
    %v5671 = vunpack.c.l.s4 1983009808
    %v5672 = vunpack.c.0.s8 %v5671
    %v5673 = vperm.slane %v5667, %v5672
    %v5675 = vunpack.c.l.s4 1983009808
    %v5676 = vunpack.c.0.s8 %v5675
    %v5677 = vperm.slane %v5669, %v5676
    %v5678 = vrot.slane %v5549, 4
    %v5679 = vsel %vm495, %v5678, %v5491
    %v5680 = vrot.slane %v5491, 4
    %v5681 = vsel %vm495, %v5549, %v5680
    %v5683 = vunpack.c.l.s4 1983009808
    %v5684 = vunpack.c.0.s8 %v5683
    %v5685 = vperm.slane %v5679, %v5684
    %v5687 = vunpack.c.l.s4 1983009808
    %v5688 = vunpack.c.0.s8 %v5687
    %v5689 = vperm.slane %v5681, %v5688
    %v5690 = vrot.slane %v5685, 4
    %v5691 = vsel %vm495, %v5690, %v5673
    %v5692 = vrot.slane %v5673, 4
    %v5693 = vsel %vm495, %v5685, %v5692
    %v5695 = vunpack.c.l.s4 1934713408
    %v5696 = vunpack.c.0.s8 %v5695
    %v5697 = vperm.slane %v5691, %v5696
    %v5699 = vunpack.c.l.s4 1934713408
    %v5700 = vunpack.c.0.s8 %v5699
    %v5701 = vperm.slane %v5693, %v5700
    %v5702 = vrot.slane %v5689, 4
    %v5703 = vsel %vm495, %v5702, %v5677
    %v5704 = vrot.slane %v5677, 4
    %v5705 = vsel %vm495, %v5689, %v5704
    %v5707 = vunpack.c.l.s4 1934713408
    %v5708 = vunpack.c.0.s8 %v5707
    %v5709 = vperm.slane %v5703, %v5708
    %v5711 = vunpack.c.l.s4 1934713408
    %v5712 = vunpack.c.0.s8 %v5711
    %v5713 = vperm.slane %v5705, %v5712
    %v5714 = vrot.slane %v5697, 4
    %v5715 = vsel %vm495, 0.0, %v5714
    %v5716 = vrot.slane %v5701, 4
    %v5717 = vsel %vm495, 0.0, %v5716
    %v5718 = vrot.slane %v5709, 4
    %v5719 = vsel %vm495, 0.0, %v5718
    %v5720 = vrot.slane %v5713, 4
    %v5721 = vsel %vm495, 0.0, %v5720
    %v5722 = vrot.slane %v5523, 4
    %v5723 = vsel %vm495, %v5722, %v5465
    %v5724 = vrot.slane %v5465, 4
    %v5725 = vsel %vm495, %v5523, %v5724
    %v5727 = vunpack.c.l.s4 1983009808
    %v5728 = vunpack.c.0.s8 %v5727
    %v5729 = vperm.slane %v5723, %v5728
    %v5731 = vunpack.c.l.s4 1983009808
    %v5732 = vunpack.c.0.s8 %v5731
    %v5733 = vperm.slane %v5725, %v5732
    %v5734 = vrot.slane %v5552, 4
    %v5735 = vsel %vm495, %v5734, %v5494
    %v5736 = vrot.slane %v5494, 4
    %v5737 = vsel %vm495, %v5552, %v5736
    %v5739 = vunpack.c.l.s4 1983009808
    %v5740 = vunpack.c.0.s8 %v5739
    %v5741 = vperm.slane %v5735, %v5740
    %v5743 = vunpack.c.l.s4 1983009808
    %v5744 = vunpack.c.0.s8 %v5743
    %v5745 = vperm.slane %v5737, %v5744
    %v5746 = vrot.slane %v5741, 4
    %v5747 = vsel %vm495, %v5746, %v5729
    %v5748 = vrot.slane %v5729, 4
    %v5749 = vsel %vm495, %v5741, %v5748
    %v5751 = vunpack.c.l.s4 1934713408
    %v5752 = vunpack.c.0.s8 %v5751
    %v5753 = vperm.slane %v5747, %v5752
    %v5755 = vunpack.c.l.s4 1934713408
    %v5756 = vunpack.c.0.s8 %v5755
    %v5757 = vperm.slane %v5749, %v5756
    %v5758 = vrot.slane %v5745, 4
    %v5759 = vsel %vm495, %v5758, %v5733
    %v5760 = vrot.slane %v5733, 4
    %v5761 = vsel %vm495, %v5745, %v5760
    %v5763 = vunpack.c.l.s4 1934713408
    %v5764 = vunpack.c.0.s8 %v5763
    %v5765 = vperm.slane %v5759, %v5764
    %v5767 = vunpack.c.l.s4 1934713408
    %v5768 = vunpack.c.0.s8 %v5767
    %v5769 = vperm.slane %v5761, %v5768
    %v5770 = vrot.slane %v5753, 4
    %v5771 = vsel %vm495, 0.0, %v5770
    %v5772 = vrot.slane %v5757, 4
    %v5773 = vsel %vm495, 0.0, %v5772
    %v5774 = vrot.slane %v5765, 4
    %v5775 = vsel %vm495, 0.0, %v5774
    %v5776 = vrot.slane %v5769, 4
    %v5777 = vsel %vm495, 0.0, %v5776
    %v5778 = vsel %vm495, %v5604, %v5585
    %v5780 = vunpack.c.l.s4 1983009808
    %v5781 = vunpack.c.0.s8 %v5780
    %v5782 = vperm.slane %v5778, %v5781
    %v5783 = vrot.slane %v5605, 4
    %v5784 = vsel %vm495, %v5783, %v5603
    %v5786 = vunpack.c.l.s4 1983009808
    %v5787 = vunpack.c.0.s8 %v5786
    %v5788 = vperm.slane %v5784, %v5787
    %v5789 = vsel %vm495, %v5608, %v5597
    %v5791 = vunpack.c.l.s4 1983009808
    %v5792 = vunpack.c.0.s8 %v5791
    %v5793 = vperm.slane %v5789, %v5792
    %v5794 = vrot.slane %v5609, 4
    %v5795 = vsel %vm495, %v5794, %v5607
    %v5797 = vunpack.c.l.s4 1983009808
    %v5798 = vunpack.c.0.s8 %v5797
    %v5799 = vperm.slane %v5795, %v5798
    %v5800 = vrot.slane %v5788, 4
    %v5801 = vsel %vm495, %v5800, %v5782
    %v5802 = vrot.slane %v5782, 4
    %v5803 = vsel %vm495, %v5788, %v5802
    %v5805 = vunpack.c.l.s4 1934713408
    %v5806 = vunpack.c.0.s8 %v5805
    %v5807 = vperm.slane %v5801, %v5806
    %v5809 = vunpack.c.l.s4 1934713408
    %v5810 = vunpack.c.0.s8 %v5809
    %v5811 = vperm.slane %v5803, %v5810
    %v5812 = vrot.slane %v5799, 4
    %v5813 = vsel %vm495, %v5812, %v5793
    %v5814 = vrot.slane %v5793, 4
    %v5815 = vsel %vm495, %v5799, %v5814
    %v5817 = vunpack.c.l.s4 1934713408
    %v5818 = vunpack.c.0.s8 %v5817
    %v5819 = vperm.slane %v5813, %v5818
    %v5821 = vunpack.c.l.s4 1934713408
    %v5822 = vunpack.c.0.s8 %v5821
    %v5823 = vperm.slane %v5815, %v5822
    %v5824 = vrot.slane %v5819, 4
    %v5825 = vsel %vm495, %v5824, %v5807
    %v5826 = vrot.slane %v5807, 4
    %v5827 = vsel %vm495, %v5819, %v5826
    %v5828 = vrot.slane %v5823, 4
    %v5829 = vsel %vm495, %v5828, %v5811
    %v5830 = vrot.slane %v5811, 4
    %v5831 = vsel %vm495, %v5823, %v5830
    %v5832 = vsel %vm495, %v5660, %v5641
    %v5834 = vunpack.c.l.s4 1983009808
    %v5835 = vunpack.c.0.s8 %v5834
    %v5836 = vperm.slane %v5832, %v5835
    %v5837 = vrot.slane %v5661, 4
    %v5838 = vsel %vm495, %v5837, %v5659
    %v5840 = vunpack.c.l.s4 1983009808
    %v5841 = vunpack.c.0.s8 %v5840
    %v5842 = vperm.slane %v5838, %v5841
    %v5843 = vsel %vm495, %v5664, %v5653
    %v5845 = vunpack.c.l.s4 1983009808
    %v5846 = vunpack.c.0.s8 %v5845
    %v5847 = vperm.slane %v5843, %v5846
    %v5848 = vrot.slane %v5665, 4
    %v5849 = vsel %vm495, %v5848, %v5663
    %v5851 = vunpack.c.l.s4 1983009808
    %v5852 = vunpack.c.0.s8 %v5851
    %v5853 = vperm.slane %v5849, %v5852
    %v5854 = vrot.slane %v5842, 4
    %v5855 = vsel %vm495, %v5854, %v5836
    %v5856 = vrot.slane %v5836, 4
    %v5857 = vsel %vm495, %v5842, %v5856
    %v5859 = vunpack.c.l.s4 1934713408
    %v5860 = vunpack.c.0.s8 %v5859
    %v5861 = vperm.slane %v5855, %v5860
    %v5863 = vunpack.c.l.s4 1934713408
    %v5864 = vunpack.c.0.s8 %v5863
    %v5865 = vperm.slane %v5857, %v5864
    %v5866 = vrot.slane %v5853, 4
    %v5867 = vsel %vm495, %v5866, %v5847
    %v5868 = vrot.slane %v5847, 4
    %v5869 = vsel %vm495, %v5853, %v5868
    %v5871 = vunpack.c.l.s4 1934713408
    %v5872 = vunpack.c.0.s8 %v5871
    %v5873 = vperm.slane %v5867, %v5872
    %v5875 = vunpack.c.l.s4 1934713408
    %v5876 = vunpack.c.0.s8 %v5875
    %v5877 = vperm.slane %v5869, %v5876
    %v5878 = vrot.slane %v5873, 4
    %v5879 = vsel %vm495, %v5878, %v5861
    %v5880 = vrot.slane %v5861, 4
    %v5881 = vsel %vm495, %v5873, %v5880
    %v5882 = vrot.slane %v5877, 4
    %v5883 = vsel %vm495, %v5882, %v5865
    %v5884 = vrot.slane %v5865, 4
    %v5885 = vsel %vm495, %v5877, %v5884
    %v5886 = vsel %vm495, %v5716, %v5697
    %v5888 = vunpack.c.l.s4 1983009808
    %v5889 = vunpack.c.0.s8 %v5888
    %v5890 = vperm.slane %v5886, %v5889
    %v5891 = vrot.slane %v5717, 4
    %v5892 = vsel %vm495, %v5891, %v5715
    %v5894 = vunpack.c.l.s4 1983009808
    %v5895 = vunpack.c.0.s8 %v5894
    %v5896 = vperm.slane %v5892, %v5895
    %v5897 = vsel %vm495, %v5720, %v5709
    %v5899 = vunpack.c.l.s4 1983009808
    %v5900 = vunpack.c.0.s8 %v5899
    %v5901 = vperm.slane %v5897, %v5900
    %v5902 = vrot.slane %v5721, 4
    %v5903 = vsel %vm495, %v5902, %v5719
    %v5905 = vunpack.c.l.s4 1983009808
    %v5906 = vunpack.c.0.s8 %v5905
    %v5907 = vperm.slane %v5903, %v5906
    %v5908 = vrot.slane %v5896, 4
    %v5909 = vsel %vm495, %v5908, %v5890
    %v5910 = vrot.slane %v5890, 4
    %v5911 = vsel %vm495, %v5896, %v5910
    %v5913 = vunpack.c.l.s4 1934713408
    %v5914 = vunpack.c.0.s8 %v5913
    %v5915 = vperm.slane %v5909, %v5914
    %v5917 = vunpack.c.l.s4 1934713408
    %v5918 = vunpack.c.0.s8 %v5917
    %v5919 = vperm.slane %v5911, %v5918
    %v5920 = vrot.slane %v5907, 4
    %v5921 = vsel %vm495, %v5920, %v5901
    %v5922 = vrot.slane %v5901, 4
    %v5923 = vsel %vm495, %v5907, %v5922
    %v5925 = vunpack.c.l.s4 1934713408
    %v5926 = vunpack.c.0.s8 %v5925
    %v5927 = vperm.slane %v5921, %v5926
    %v5929 = vunpack.c.l.s4 1934713408
    %v5930 = vunpack.c.0.s8 %v5929
    %v5931 = vperm.slane %v5923, %v5930
    %v5932 = vrot.slane %v5927, 4
    %v5933 = vsel %vm495, %v5932, %v5915
    %v5934 = vrot.slane %v5915, 4
    %v5935 = vsel %vm495, %v5927, %v5934
    %v5936 = vrot.slane %v5931, 4
    %v5937 = vsel %vm495, %v5936, %v5919
    %v5938 = vrot.slane %v5919, 4
    %v5939 = vsel %vm495, %v5931, %v5938
    %v5940 = vsel %vm495, %v5772, %v5753
    %v5942 = vunpack.c.l.s4 1983009808
    %v5943 = vunpack.c.0.s8 %v5942
    %v5944 = vperm.slane %v5940, %v5943
    %v5945 = vrot.slane %v5773, 4
    %v5946 = vsel %vm495, %v5945, %v5771
    %v5948 = vunpack.c.l.s4 1983009808
    %v5949 = vunpack.c.0.s8 %v5948
    %v5950 = vperm.slane %v5946, %v5949
    %v5951 = vsel %vm495, %v5776, %v5765
    %v5953 = vunpack.c.l.s4 1983009808
    %v5954 = vunpack.c.0.s8 %v5953
    %v5955 = vperm.slane %v5951, %v5954
    %v5956 = vrot.slane %v5777, 4
    %v5957 = vsel %vm495, %v5956, %v5775
    %v5959 = vunpack.c.l.s4 1983009808
    %v5960 = vunpack.c.0.s8 %v5959
    %v5961 = vperm.slane %v5957, %v5960
    %v5962 = vrot.slane %v5950, 4
    %v5963 = vsel %vm495, %v5962, %v5944
    %v5964 = vrot.slane %v5944, 4
    %v5965 = vsel %vm495, %v5950, %v5964
    %v5967 = vunpack.c.l.s4 1934713408
    %v5968 = vunpack.c.0.s8 %v5967
    %v5969 = vperm.slane %v5963, %v5968
    %v5971 = vunpack.c.l.s4 1934713408
    %v5972 = vunpack.c.0.s8 %v5971
    %v5973 = vperm.slane %v5965, %v5972
    %v5974 = vrot.slane %v5961, 4
    %v5975 = vsel %vm495, %v5974, %v5955
    %v5976 = vrot.slane %v5955, 4
    %v5977 = vsel %vm495, %v5961, %v5976
    %v5979 = vunpack.c.l.s4 1934713408
    %v5980 = vunpack.c.0.s8 %v5979
    %v5981 = vperm.slane %v5975, %v5980
    %v5983 = vunpack.c.l.s4 1934713408
    %v5984 = vunpack.c.0.s8 %v5983
    %v5985 = vperm.slane %v5977, %v5984
    %v5986 = vrot.slane %v5981, 4
    %v5987 = vsel %vm495, %v5986, %v5969
    %v5988 = vrot.slane %v5969, 4
    %v5989 = vsel %vm495, %v5981, %v5988
    %v5990 = vrot.slane %v5985, 4
    %v5991 = vsel %vm495, %v5990, %v5973
    %v5992 = vrot.slane %v5973, 4
    %v5993 = vsel %vm495, %v5985, %v5992
    %5998 = vrot.lane.b32.xlu0 %v5827, 32
    %v5999 = vpop.permute.xlu0 %5998
    %6000 = vrot.lane.b32.xlu0 %v5881, 32
    %v6001 = vpop.permute.xlu0 %6000
    %6002 = vrot.lane.b32.xlu0 %v5935, 32
    %v6003 = vpop.permute.xlu0 %6002
    %6004 = vrot.lane.b32.xlu0 %v5989, 32
    %v6005 = vpop.permute.xlu0 %6004
    %6014 = vrot.lane.b32.xlu0 %v5829, 64
    %v6015 = vpop.permute.xlu0 %6014
    %6016 = vrot.lane.b32.xlu0 %v5883, 64
    %v6017 = vpop.permute.xlu0 %6016
    %6018 = vrot.lane.b32.xlu0 %v5937, 64
    %v6019 = vpop.permute.xlu0 %6018
    %6020 = vrot.lane.b32.xlu0 %v5991, 64
    %v6021 = vpop.permute.xlu0 %6020
    %6030 = vrot.lane.b32.xlu0 %v5831, 96
    %v6031 = vpop.permute.xlu0 %6030
    %6032 = vrot.lane.b32.xlu0 %v5885, 96
    %v6033 = vpop.permute.xlu0 %6032
    %6034 = vrot.lane.b32.xlu0 %v5939, 96
    %v6035 = vpop.permute.xlu0 %6034
    %6036 = vrot.lane.b32.xlu0 %v5993, 96
    %v6037 = vpop.permute.xlu0 %6036
    %v6042 = vsel %vm1895, %v5825, %v5999
    %v6043 = vsel %vm1895, %v5879, %v6001
    %v6044 = vsel %vm1895, %v5933, %v6003
    %v6045 = vsel %vm1895, %v5987, %v6005
    %v6046 = vsel %vm3093, %v6042, %v6015
    %v6047 = vsel %vm3093, %v6043, %v6017
    %v6048 = vsel %vm3093, %v6044, %v6019
    %v6049 = vsel %vm3093, %v6045, %v6021
    %v6050 = vsel %vm3098, %v6046, %v6031
    %v6051 = vsel %vm3098, %v6047, %v6033
    %v6052 = vsel %vm3098, %v6048, %v6035
    %v6053 = vsel %vm3098, %v6049, %v6037
    %v6055 = vperm.slane %v3403, 0
    %6057 = vmatpush.msra.mxu0 %v3402
    %6058 = vmatpush.msra.mxu0 %v3401
    %6059 = vmatpush.msra.mxu0 %v3400
    %6060 = vmatpush.msra.mxu0 %v3399
    %6061 = vmatpush.msra.mxu0 %v3398
    %6062 = vmatpush.msra.mxu0 %v3397
    %6063 = vmatpush.msra.mxu0 %v3396
    %6064 = vmatpush.msra.mxu0 %v3395
    %6065 = vmatpush.msra.mxu0 %v3394
    %6066 = vmatpush.msra.mxu0 %v3393
    %6067 = vmatpush.msra.mxu0 %v3392
    %6068 = vmatpush.msra.mxu0 %v3391
    %6069 = vmatpush.msra.mxu0 %v3390
    %6070 = vmatpush.msra.mxu0 %v3389
    %6071 = vmatpush.msra.mxu0 %v3388
    %6072 = vmatpush.msra.mxu0 %v3387
    %6073 = vmatmul.f32.gmra.mxu0 %v6050
    %v6074 = vpop.f32.mrf.mxu0
    %v6075 = vadd.f32 %v6055, %v6074
    %6076 = vmatmul.f32.gmra.mxu0 %v6051
    %v6077 = vpop.f32.mrf.mxu0
    %v6078 = vadd.f32 %v6055, %v6077
    %6079 = vmatmul.f32.gmra.mxu0 %v6052
    %v6080 = vpop.f32.mrf.mxu0
    %v6081 = vadd.f32 %v6055, %v6080
    %6082 = vmatmul.f32.gmra.mxu0 %v6053
    %v6083 = vpop.f32.mrf.mxu0
    %v6084 = vadd.f32 %v6055, %v6083
    %6085 = vdwg.mxu0
    %v6086 = vadd.f32 %v3238, %v6075
    %v6087 = vadd.f32 %v3239, %v6078
    %v6088 = vadd.f32 %v3240, %v6081
    %v6089 = vadd.f32 %v3241, %v6084
    %v6090 = vld [vmem:[%s16] sm:$0x1]
    %v6091 = vld [vmem:[%s17] sm:$0x1]
    %6092 = vadd.xlane.f32.xlu0 %v6086
    %v6093 = vpop.xlane.xlu0 %6092
    %6094 = vadd.xlane.f32.xlu0 %v6087
    %v6095 = vpop.xlane.xlu0 %6094
    %6096 = vadd.xlane.f32.xlu0 %v6088
    %v6097 = vpop.xlane.xlu0 %6096
    %6098 = vadd.xlane.f32.xlu0 %v6089
    %v6099 = vpop.xlane.xlu0 %6098
    %v6100 = vmul.f32 %v6093, %v3155
    %v6101 = vmul.f32 %v6095, %v3155
    %v6102 = vmul.f32 %v6097, %v3155
    %v6103 = vmul.f32 %v6099, %v3155
    %v6104 = vsub.f32 %v6086, %v6100
    %v6105 = vsub.f32 %v6087, %v6101
    %v6106 = vsub.f32 %v6088, %v6102
    %v6107 = vsub.f32 %v6089, %v6103
    %v6108 = vmul.f32 %v6104, %v6104
    %v6109 = vmul.f32 %v6105, %v6105
    %v6110 = vmul.f32 %v6106, %v6106
    %v6111 = vmul.f32 %v6107, %v6107
    %6112 = vadd.xlane.f32.xlu0 %v6108
    %v6113 = vpop.xlane.xlu0 %6112
    %6114 = vadd.xlane.f32.xlu0 %v6109
    %v6115 = vpop.xlane.xlu0 %6114
    %6116 = vadd.xlane.f32.xlu0 %v6110
    %v6117 = vpop.xlane.xlu0 %6116
    %6118 = vadd.xlane.f32.xlu0 %v6111
    %v6119 = vpop.xlane.xlu0 %6118
    %v6120 = vmul.f32 %v6113, %v3155
    %v6121 = vmul.f32 %v6115, %v3155
    %v6122 = vmul.f32 %v6117, %v3155
    %v6123 = vmul.f32 %v6119, %v3155
    %v6124 = vadd.f32 %v6120, 1e-05
    %v6125 = vadd.f32 %v6121, 1e-05
    %v6126 = vadd.f32 %v6122, 1e-05
    %v6127 = vadd.f32 %v6123, 1e-05
    %v6128 = vrsqrt.pop %v6124
    %v6129 = vmul.f32 %v6128, %v6124
    %v6130 = vmul.f32 %v6129, %v6128
    %v6131 = vmul.f32 0.5, %v6130
    %v6132 = vsub.f32 1.5, %v6131
    %v6133 = vmul.f32 %v6128, %v6132
    %vm6134 = vweird.f32 %v6124
    %vm6135 = vweird.f32 %v6128
    %vm6136 = vmor %vm6134, %vm6135
    %v6137 = vsel %vm6136, %v6128, %v6133
    %v6138 = vrsqrt.pop %v6125
    %v6139 = vmul.f32 %v6138, %v6125
    %v6140 = vmul.f32 %v6139, %v6138
    %v6141 = vmul.f32 0.5, %v6140
    %v6142 = vsub.f32 1.5, %v6141
    %v6143 = vmul.f32 %v6138, %v6142
    %vm6144 = vweird.f32 %v6125
    %vm6145 = vweird.f32 %v6138
    %vm6146 = vmor %vm6144, %vm6145
    %v6147 = vsel %vm6146, %v6138, %v6143
    %v6148 = vrsqrt.pop %v6126
    %v6149 = vmul.f32 %v6148, %v6126
    %v6150 = vmul.f32 %v6149, %v6148
    %v6151 = vmul.f32 0.5, %v6150
    %v6152 = vsub.f32 1.5, %v6151
    %v6153 = vmul.f32 %v6148, %v6152
    %vm6154 = vweird.f32 %v6126
    %vm6155 = vweird.f32 %v6148
    %vm6156 = vmor %vm6154, %vm6155
    %v6157 = vsel %vm6156, %v6148, %v6153
    %v6158 = vrsqrt.pop %v6127
    %v6159 = vmul.f32 %v6158, %v6127
    %v6160 = vmul.f32 %v6159, %v6158
    %v6161 = vmul.f32 0.5, %v6160
    %v6162 = vsub.f32 1.5, %v6161
    %v6163 = vmul.f32 %v6158, %v6162
    %vm6164 = vweird.f32 %v6127
    %vm6165 = vweird.f32 %v6158
    %vm6166 = vmor %vm6164, %vm6165
    %v6167 = vsel %vm6166, %v6158, %v6163
    %v6168 = vmul.f32 %v6104, %v6137
    %v6169 = vmul.f32 %v6105, %v6147
    %v6170 = vmul.f32 %v6106, %v6157
    %v6171 = vmul.f32 %v6107, %v6167
    %v6173 = vperm.slane %v6090, 0
    %v6175 = vmul.f32 %v6168, %v6173
    %v6176 = vmul.f32 %v6169, %v6173
    %v6177 = vmul.f32 %v6170, %v6173
    %v6178 = vmul.f32 %v6171, %v6173
    %v6180 = vperm.slane %v6091, 0
    %v6182 = vadd.f32 %v6175, %v6180
    %v6183 = vadd.f32 %v6176, %v6180
    %v6184 = vadd.f32 %v6177, %v6180
    %v6185 = vadd.f32 %v6178, %v6180
    %v6186 = vld [vmem:[#allocation19] sm:$0xff]
    %v6187 = vld [vmem:[#allocation19 + $0x8] sm:$0xff]
    %v6188 = vld [vmem:[#allocation19 + $0x10] sm:$0xff]
    %v6189 = vld [vmem:[#allocation19 + $0x18] sm:$0xff]
    %v6190 = vld [vmem:[#allocation19 + $0x20] sm:$0xff]
    %v6191 = vld [vmem:[#allocation19 + $0x28] sm:$0xff]
    %v6192 = vld [vmem:[#allocation19 + $0x30] sm:$0xff]
    %v6193 = vld [vmem:[#allocation19 + $0x38] sm:$0xff]
    %v6194 = vld [vmem:[#allocation19 + $0x40] sm:$0xff]
    %v6195 = vld [vmem:[#allocation19 + $0x48] sm:$0xff]
    %v6196 = vld [vmem:[#allocation19 + $0x50] sm:$0xff]
    %v6197 = vld [vmem:[#allocation19 + $0x58] sm:$0xff]
    %v6198 = vld [vmem:[#allocation19 + $0x60] sm:$0xff]
    %v6199 = vld [vmem:[#allocation19 + $0x68] sm:$0xff]
    %v6200 = vld [vmem:[#allocation19 + $0x70] sm:$0xff]
    %v6201 = vld [vmem:[#allocation19 + $0x78] sm:$0xff]
    %v6202 = vld [vmem:[#allocation19 + $0x80] sm:$0xff]
    %v6203 = vld [vmem:[#allocation19 + $0x88] sm:$0xff]
    %v6204 = vld [vmem:[#allocation19 + $0x90] sm:$0xff]
    %v6205 = vld [vmem:[#allocation19 + $0x98] sm:$0xff]
    %v6206 = vld [vmem:[#allocation19 + $0xa0] sm:$0xff]
    %v6207 = vld [vmem:[#allocation19 + $0xa8] sm:$0xff]
    %v6208 = vld [vmem:[#allocation19 + $0xb0] sm:$0xff]
    %v6209 = vld [vmem:[#allocation19 + $0xb8] sm:$0xff]
    %v6210 = vld [vmem:[#allocation19 + $0xc0] sm:$0xff]
    %v6211 = vld [vmem:[#allocation19 + $0xc8] sm:$0xff]
    %v6212 = vld [vmem:[#allocation19 + $0xd0] sm:$0xff]
    %v6213 = vld [vmem:[#allocation19 + $0xd8] sm:$0xff]
    %v6214 = vld [vmem:[#allocation19 + $0xe0] sm:$0xff]
    %v6215 = vld [vmem:[#allocation19 + $0xe8] sm:$0xff]
    %v6216 = vld [vmem:[#allocation19 + $0xf0] sm:$0xff]
    %v6217 = vld [vmem:[#allocation19 + $0xf8] sm:$0xff]
    %v6218 = vld [vmem:[%s21] sm:$0x3]
    %v6220 = vperm.slane %v6218, 0
    %v6221 = vperm.slane %v6218, 1
    %6224 = vmatpush.msra.mxu0 %v6216
    %6225 = vmatpush.msra.mxu0 %v6214
    %6226 = vmatpush.msra.mxu0 %v6212
    %6227 = vmatpush.msra.mxu0 %v6210
    %6228 = vmatpush.msra.mxu0 %v6208
    %6229 = vmatpush.msra.mxu0 %v6206
    %6230 = vmatpush.msra.mxu0 %v6204
    %6231 = vmatpush.msra.mxu0 %v6202
    %6232 = vmatpush.msra.mxu0 %v6200
    %6233 = vmatpush.msra.mxu0 %v6198
    %6234 = vmatpush.msra.mxu0 %v6196
    %6235 = vmatpush.msra.mxu0 %v6194
    %6236 = vmatpush.msra.mxu0 %v6192
    %6237 = vmatpush.msra.mxu0 %v6190
    %6238 = vmatpush.msra.mxu0 %v6188
    %6239 = vmatpush.msra.mxu0 %v6186
    %6240 = vmatmul.f32.gmra.mxu0 %v6182
    %v6241 = vpop.f32.mrf.mxu0
    %v6242 = vadd.f32 %v6220, %v6241
    %6243 = vmatmul.f32.gmra.mxu0 %v6183
    %v6244 = vpop.f32.mrf.mxu0
    %v6245 = vadd.f32 %v6220, %v6244
    %6246 = vmatmul.f32.gmra.mxu0 %v6184
    %v6247 = vpop.f32.mrf.mxu0
    %v6248 = vadd.f32 %v6220, %v6247
    %6249 = vmatmul.f32.gmra.mxu0 %v6185
    %v6250 = vpop.f32.mrf.mxu0
    %v6251 = vadd.f32 %v6220, %v6250
    %6252 = vdwg.mxu0
    %6253 = vmatpush.msra.mxu0 %v6217
    %6254 = vmatpush.msra.mxu0 %v6215
    %6255 = vmatpush.msra.mxu0 %v6213
    %6256 = vmatpush.msra.mxu0 %v6211
    %6257 = vmatpush.msra.mxu0 %v6209
    %6258 = vmatpush.msra.mxu0 %v6207
    %6259 = vmatpush.msra.mxu0 %v6205
    %6260 = vmatpush.msra.mxu0 %v6203
    %6261 = vmatpush.msra.mxu0 %v6201
    %6262 = vmatpush.msra.mxu0 %v6199
    %6263 = vmatpush.msra.mxu0 %v6197
    %6264 = vmatpush.msra.mxu0 %v6195
    %6265 = vmatpush.msra.mxu0 %v6193
    %6266 = vmatpush.msra.mxu0 %v6191
    %6267 = vmatpush.msra.mxu0 %v6189
    %6268 = vmatpush.msra.mxu0 %v6187
    %6269 = vmatmul.f32.gmra.mxu0 %v6182
    %v6270 = vpop.f32.mrf.mxu0
    %v6271 = vadd.f32 %v6221, %v6270
    %6272 = vmatmul.f32.gmra.mxu0 %v6183
    %v6273 = vpop.f32.mrf.mxu0
    %v6274 = vadd.f32 %v6221, %v6273
    %6275 = vmatmul.f32.gmra.mxu0 %v6184
    %v6276 = vpop.f32.mrf.mxu0
    %v6277 = vadd.f32 %v6221, %v6276
    %6278 = vmatmul.f32.gmra.mxu0 %v6185
    %v6279 = vpop.f32.mrf.mxu0
    %v6280 = vadd.f32 %v6221, %v6279
    %6281 = vdwg.mxu0
    %v6282 = vxor.u32 %v6242, 2147483648
    %v6283 = vxor.u32 %v6271, 2147483648
    %v6284 = vxor.u32 %v6245, 2147483648
    %v6285 = vxor.u32 %v6274, 2147483648
    %v6286 = vxor.u32 %v6248, 2147483648
    %v6287 = vxor.u32 %v6277, 2147483648
    %v6288 = vxor.u32 %v6251, 2147483648
    %v6289 = vxor.u32 %v6280, 2147483648
    %v6290 = vmul.f32 %v6282, 1.442695
    %v6291 = vpow.pop %v6290
    %v6292 = vmul.f32 %v6283, 1.442695
    %v6293 = vpow.pop %v6292
    %v6294 = vmul.f32 %v6284, 1.442695
    %v6295 = vpow.pop %v6294
    %v6296 = vmul.f32 %v6285, 1.442695
    %v6297 = vpow.pop %v6296
    %v6298 = vmul.f32 %v6286, 1.442695
    %v6299 = vpow.pop %v6298
    %v6300 = vmul.f32 %v6287, 1.442695
    %v6301 = vpow.pop %v6300
    %v6302 = vmul.f32 %v6288, 1.442695
    %v6303 = vpow.pop %v6302
    %v6304 = vmul.f32 %v6289, 1.442695
    %v6305 = vpow.pop %v6304
    %v6306 = vadd.f32 %v6291, 1.0
    %v6307 = vadd.f32 %v6293, 1.0
    %v6308 = vadd.f32 %v6295, 1.0
    %v6309 = vadd.f32 %v6297, 1.0
    %v6310 = vadd.f32 %v6299, 1.0
    %v6311 = vadd.f32 %v6301, 1.0
    %v6312 = vadd.f32 %v6303, 1.0
    %v6313 = vadd.f32 %v6305, 1.0
    %v6314 = vrcp.pop %v6306
    %v6315 = vmul.f32 %v6306, %v6314
    %v6316 = vsub.f32 1.0, %v6315
    %v6317 = vmul.f32 %v6314, %v6316
    %v6318 = vadd.f32 %v6314, %v6317
    %vm6319 = vweird.f32 %v6306
    %vm6320 = vweird.f32 %v6314
    %vm6321 = vmor %vm6319, %vm6320
    %v6322 = vsel %vm6321, %v6314, %v6318
    %v6323 = vand.u32 2147483647, %v6306
    %vm6324 = vcmp.eq.f32.partialorder %v6323, 8.507059e+37
    %v6325 = vand.u32 %v6306, 2147483648
    %v6326 = vor.u32 1.1754944e-38, %v6325
    %v6327 = vsel %vm6324, %v6326, %v6322
    %v6328 = vmul.f32 1.0, %v6327
    %v6329 = vrcp.pop %v6307
    %v6330 = vmul.f32 %v6307, %v6329
    %v6331 = vsub.f32 1.0, %v6330
    %v6332 = vmul.f32 %v6329, %v6331
    %v6333 = vadd.f32 %v6329, %v6332
    %vm6334 = vweird.f32 %v6307
    %vm6335 = vweird.f32 %v6329
    %vm6336 = vmor %vm6334, %vm6335
    %v6337 = vsel %vm6336, %v6329, %v6333
    %v6338 = vand.u32 2147483647, %v6307
    %vm6339 = vcmp.eq.f32.partialorder %v6338, 8.507059e+37
    %v6340 = vand.u32 %v6307, 2147483648
    %v6341 = vor.u32 1.1754944e-38, %v6340
    %v6342 = vsel %vm6339, %v6341, %v6337
    %v6343 = vmul.f32 1.0, %v6342
    %v6344 = vrcp.pop %v6308
    %v6345 = vmul.f32 %v6308, %v6344
    %v6346 = vsub.f32 1.0, %v6345
    %v6347 = vmul.f32 %v6344, %v6346
    %v6348 = vadd.f32 %v6344, %v6347
    %vm6349 = vweird.f32 %v6308
    %vm6350 = vweird.f32 %v6344
    %vm6351 = vmor %vm6349, %vm6350
    %v6352 = vsel %vm6351, %v6344, %v6348
    %v6353 = vand.u32 2147483647, %v6308
    %vm6354 = vcmp.eq.f32.partialorder %v6353, 8.507059e+37
    %v6355 = vand.u32 %v6308, 2147483648
    %v6356 = vor.u32 1.1754944e-38, %v6355
    %v6357 = vsel %vm6354, %v6356, %v6352
    %v6358 = vmul.f32 1.0, %v6357
    %v6359 = vrcp.pop %v6309
    %v6360 = vmul.f32 %v6309, %v6359
    %v6361 = vsub.f32 1.0, %v6360
    %v6362 = vmul.f32 %v6359, %v6361
    %v6363 = vadd.f32 %v6359, %v6362
    %vm6364 = vweird.f32 %v6309
    %vm6365 = vweird.f32 %v6359
    %vm6366 = vmor %vm6364, %vm6365
    %v6367 = vsel %vm6366, %v6359, %v6363
    %v6368 = vand.u32 2147483647, %v6309
    %vm6369 = vcmp.eq.f32.partialorder %v6368, 8.507059e+37
    %v6370 = vand.u32 %v6309, 2147483648
    %v6371 = vor.u32 1.1754944e-38, %v6370
    %v6372 = vsel %vm6369, %v6371, %v6367
    %v6373 = vmul.f32 1.0, %v6372
    %v6374 = vrcp.pop %v6310
    %v6375 = vmul.f32 %v6310, %v6374
    %v6376 = vsub.f32 1.0, %v6375
    %v6377 = vmul.f32 %v6374, %v6376
    %v6378 = vadd.f32 %v6374, %v6377
    %vm6379 = vweird.f32 %v6310
    %vm6380 = vweird.f32 %v6374
    %vm6381 = vmor %vm6379, %vm6380
    %v6382 = vsel %vm6381, %v6374, %v6378
    %v6383 = vand.u32 2147483647, %v6310
    %vm6384 = vcmp.eq.f32.partialorder %v6383, 8.507059e+37
    %v6385 = vand.u32 %v6310, 2147483648
    %v6386 = vor.u32 1.1754944e-38, %v6385
    %v6387 = vsel %vm6384, %v6386, %v6382
    %v6388 = vmul.f32 1.0, %v6387
    %v6389 = vrcp.pop %v6311
    %v6390 = vmul.f32 %v6311, %v6389
    %v6391 = vsub.f32 1.0, %v6390
    %v6392 = vmul.f32 %v6389, %v6391
    %v6393 = vadd.f32 %v6389, %v6392
    %vm6394 = vweird.f32 %v6311
    %vm6395 = vweird.f32 %v6389
    %vm6396 = vmor %vm6394, %vm6395
    %v6397 = vsel %vm6396, %v6389, %v6393
    %v6398 = vand.u32 2147483647, %v6311
    %vm6399 = vcmp.eq.f32.partialorder %v6398, 8.507059e+37
    %v6400 = vand.u32 %v6311, 2147483648
    %v6401 = vor.u32 1.1754944e-38, %v6400
    %v6402 = vsel %vm6399, %v6401, %v6397
    %v6403 = vmul.f32 1.0, %v6402
    %v6404 = vrcp.pop %v6312
    %v6405 = vmul.f32 %v6312, %v6404
    %v6406 = vsub.f32 1.0, %v6405
    %v6407 = vmul.f32 %v6404, %v6406
    %v6408 = vadd.f32 %v6404, %v6407
    %vm6409 = vweird.f32 %v6312
    %vm6410 = vweird.f32 %v6404
    %vm6411 = vmor %vm6409, %vm6410
    %v6412 = vsel %vm6411, %v6404, %v6408
    %v6413 = vand.u32 2147483647, %v6312
    %vm6414 = vcmp.eq.f32.partialorder %v6413, 8.507059e+37
    %v6415 = vand.u32 %v6312, 2147483648
    %v6416 = vor.u32 1.1754944e-38, %v6415
    %v6417 = vsel %vm6414, %v6416, %v6412
    %v6418 = vmul.f32 1.0, %v6417
    %v6419 = vrcp.pop %v6313
    %v6420 = vmul.f32 %v6313, %v6419
    %v6421 = vsub.f32 1.0, %v6420
    %v6422 = vmul.f32 %v6419, %v6421
    %v6423 = vadd.f32 %v6419, %v6422
    %vm6424 = vweird.f32 %v6313
    %vm6425 = vweird.f32 %v6419
    %vm6426 = vmor %vm6424, %vm6425
    %v6427 = vsel %vm6426, %v6419, %v6423
    %v6428 = vand.u32 2147483647, %v6313
    %vm6429 = vcmp.eq.f32.partialorder %v6428, 8.507059e+37
    %v6430 = vand.u32 %v6313, 2147483648
    %v6431 = vor.u32 1.1754944e-38, %v6430
    %v6432 = vsel %vm6429, %v6431, %v6427
    %v6433 = vmul.f32 1.0, %v6432
    %v6434 = vmul.f32 %v6242, %v6328
    %v6435 = vmul.f32 %v6271, %v6343
    %v6436 = vmul.f32 %v6245, %v6358
    %v6437 = vmul.f32 %v6274, %v6373
    %v6438 = vmul.f32 %v6248, %v6388
    %v6439 = vmul.f32 %v6277, %v6403
    %v6440 = vmul.f32 %v6251, %v6418
    %v6441 = vmul.f32 %v6280, %v6433
    %v6442 = vld [vmem:[#allocation20] sm:$0xff]
    %v6443 = vld [vmem:[#allocation20 + $0x8] sm:$0xff]
    %v6444 = vld [vmem:[#allocation20 + $0x10] sm:$0xff]
    %v6445 = vld [vmem:[#allocation20 + $0x18] sm:$0xff]
    %v6446 = vld [vmem:[#allocation20 + $0x20] sm:$0xff]
    %v6447 = vld [vmem:[#allocation20 + $0x28] sm:$0xff]
    %v6448 = vld [vmem:[#allocation20 + $0x30] sm:$0xff]
    %v6449 = vld [vmem:[#allocation20 + $0x38] sm:$0xff]
    %v6450 = vld [vmem:[#allocation20 + $0x40] sm:$0xff]
    %v6451 = vld [vmem:[#allocation20 + $0x48] sm:$0xff]
    %v6452 = vld [vmem:[#allocation20 + $0x50] sm:$0xff]
    %v6453 = vld [vmem:[#allocation20 + $0x58] sm:$0xff]
    %v6454 = vld [vmem:[#allocation20 + $0x60] sm:$0xff]
    %v6455 = vld [vmem:[#allocation20 + $0x68] sm:$0xff]
    %v6456 = vld [vmem:[#allocation20 + $0x70] sm:$0xff]
    %v6457 = vld [vmem:[#allocation20 + $0x78] sm:$0xff]
    %v6458 = vld [vmem:[#allocation20 + $0x80] sm:$0xff]
    %v6459 = vld [vmem:[#allocation20 + $0x88] sm:$0xff]
    %v6460 = vld [vmem:[#allocation20 + $0x90] sm:$0xff]
    %v6461 = vld [vmem:[#allocation20 + $0x98] sm:$0xff]
    %v6462 = vld [vmem:[#allocation20 + $0xa0] sm:$0xff]
    %v6463 = vld [vmem:[#allocation20 + $0xa8] sm:$0xff]
    %v6464 = vld [vmem:[#allocation20 + $0xb0] sm:$0xff]
    %v6465 = vld [vmem:[#allocation20 + $0xb8] sm:$0xff]
    %v6466 = vld [vmem:[#allocation20 + $0xc0] sm:$0xff]
    %v6467 = vld [vmem:[#allocation20 + $0xc8] sm:$0xff]
    %v6468 = vld [vmem:[#allocation20 + $0xd0] sm:$0xff]
    %v6469 = vld [vmem:[#allocation20 + $0xd8] sm:$0xff]
    %v6470 = vld [vmem:[#allocation20 + $0xe0] sm:$0xff]
    %v6471 = vld [vmem:[#allocation20 + $0xe8] sm:$0xff]
    %v6472 = vld [vmem:[#allocation20 + $0xf0] sm:$0xff]
    %v6473 = vld [vmem:[#allocation20 + $0xf8] sm:$0xff]
    %v6474 = vld [vmem:[%s23] sm:$0x1]
    %v6476 = vperm.slane %v6474, 0
    %6478 = vmatpush.msra.mxu0 %v6457
    %6479 = vmatpush.msra.mxu0 %v6456
    %6480 = vmatpush.msra.mxu0 %v6455
    %6481 = vmatpush.msra.mxu0 %v6454
    %6482 = vmatpush.msra.mxu0 %v6453
    %6483 = vmatpush.msra.mxu0 %v6452
    %6484 = vmatpush.msra.mxu0 %v6451
    %6485 = vmatpush.msra.mxu0 %v6450
    %6486 = vmatpush.msra.mxu0 %v6449
    %6487 = vmatpush.msra.mxu0 %v6448
    %6488 = vmatpush.msra.mxu0 %v6447
    %6489 = vmatpush.msra.mxu0 %v6446
    %6490 = vmatpush.msra.mxu0 %v6445
    %6491 = vmatpush.msra.mxu0 %v6444
    %6492 = vmatpush.msra.mxu0 %v6443
    %6493 = vmatpush.msra.mxu0 %v6442
    %6494 = vmatmul.f32.gmra.mxu0 %v6434
    %v6495 = vpop.f32.mrf.mxu0
    %v6496 = vadd.f32 %v6476, %v6495
    %6497 = vmatmul.f32.gmra.mxu0 %v6436
    %v6498 = vpop.f32.mrf.mxu0
    %v6499 = vadd.f32 %v6476, %v6498
    %6500 = vmatmul.f32.gmra.mxu0 %v6438
    %v6501 = vpop.f32.mrf.mxu0
    %v6502 = vadd.f32 %v6476, %v6501
    %6503 = vmatmul.f32.gmra.mxu0 %v6440
    %v6504 = vpop.f32.mrf.mxu0
    %v6505 = vadd.f32 %v6476, %v6504
    %6506 = vdwg.mxu0
    %6507 = vmatpush.msra.mxu0 %v6473
    %6508 = vmatpush.msra.mxu0 %v6472
    %6509 = vmatpush.msra.mxu0 %v6471
    %6510 = vmatpush.msra.mxu0 %v6470
    %6511 = vmatpush.msra.mxu0 %v6469
    %6512 = vmatpush.msra.mxu0 %v6468
    %6513 = vmatpush.msra.mxu0 %v6467
    %6514 = vmatpush.msra.mxu0 %v6466
    %6515 = vmatpush.msra.mxu0 %v6465
    %6516 = vmatpush.msra.mxu0 %v6464
    %6517 = vmatpush.msra.mxu0 %v6463
    %6518 = vmatpush.msra.mxu0 %v6462
    %6519 = vmatpush.msra.mxu0 %v6461
    %6520 = vmatpush.msra.mxu0 %v6460
    %6521 = vmatpush.msra.mxu0 %v6459
    %6522 = vmatpush.msra.mxu0 %v6458
    %6523 = vmatmul.f32.gmra.mxu0 %v6435
    %v6524 = vpop.f32.mrf.mxu0
    %v6525 = vadd.f32 %v6496, %v6524
    %6526 = vmatmul.f32.gmra.mxu0 %v6437
    %v6527 = vpop.f32.mrf.mxu0
    %v6528 = vadd.f32 %v6499, %v6527
    %6529 = vmatmul.f32.gmra.mxu0 %v6439
    %v6530 = vpop.f32.mrf.mxu0
    %v6531 = vadd.f32 %v6502, %v6530
    %6532 = vmatmul.f32.gmra.mxu0 %v6441
    %v6533 = vpop.f32.mrf.mxu0
    %v6534 = vadd.f32 %v6505, %v6533
    %6535 = vdwg.mxu0
    %v6536 = vadd.f32 %v6182, %v6525
    %v6537 = vadd.f32 %v6183, %v6528
    %v6538 = vadd.f32 %v6184, %v6531
    %v6539 = vadd.f32 %v6185, %v6534
    %v6540 = vld [vmem:[%s18] sm:$0x1]
    %v6541 = vld [vmem:[%s19] sm:$0x1]
    %6542 = vadd.xlane.f32.xlu0 %v6536
    %v6543 = vpop.xlane.xlu0 %6542
    %6544 = vadd.xlane.f32.xlu0 %v6537
    %v6545 = vpop.xlane.xlu0 %6544
    %6546 = vadd.xlane.f32.xlu0 %v6538
    %v6547 = vpop.xlane.xlu0 %6546
    %6548 = vadd.xlane.f32.xlu0 %v6539
    %v6549 = vpop.xlane.xlu0 %6548
    %v6550 = vmul.f32 %v6543, %v3155
    %v6551 = vmul.f32 %v6545, %v3155
    %v6552 = vmul.f32 %v6547, %v3155
    %v6553 = vmul.f32 %v6549, %v3155
    %v6554 = vsub.f32 %v6536, %v6550
    %v6555 = vsub.f32 %v6537, %v6551
    %v6556 = vsub.f32 %v6538, %v6552
    %v6557 = vsub.f32 %v6539, %v6553
    %v6558 = vmul.f32 %v6554, %v6554
    %v6559 = vmul.f32 %v6555, %v6555
    %v6560 = vmul.f32 %v6556, %v6556
    %v6561 = vmul.f32 %v6557, %v6557
    %6562 = vadd.xlane.f32.xlu0 %v6558
    %v6563 = vpop.xlane.xlu0 %6562
    %6564 = vadd.xlane.f32.xlu0 %v6559
    %v6565 = vpop.xlane.xlu0 %6564
    %6566 = vadd.xlane.f32.xlu0 %v6560
    %v6567 = vpop.xlane.xlu0 %6566
    %6568 = vadd.xlane.f32.xlu0 %v6561
    %v6569 = vpop.xlane.xlu0 %6568
    %v6570 = vmul.f32 %v6563, %v3155
    %v6571 = vmul.f32 %v6565, %v3155
    %v6572 = vmul.f32 %v6567, %v3155
    %v6573 = vmul.f32 %v6569, %v3155
    %v6574 = vadd.f32 %v6570, 1e-05
    %v6575 = vadd.f32 %v6571, 1e-05
    %v6576 = vadd.f32 %v6572, 1e-05
    %v6577 = vadd.f32 %v6573, 1e-05
    %v6578 = vrsqrt.pop %v6574
    %v6579 = vmul.f32 %v6578, %v6574
    %v6580 = vmul.f32 %v6579, %v6578
    %v6581 = vmul.f32 0.5, %v6580
    %v6582 = vsub.f32 1.5, %v6581
    %v6583 = vmul.f32 %v6578, %v6582
    %vm6584 = vweird.f32 %v6574
    %vm6585 = vweird.f32 %v6578
    %vm6586 = vmor %vm6584, %vm6585
    %v6587 = vsel %vm6586, %v6578, %v6583
    %v6588 = vrsqrt.pop %v6575
    %v6589 = vmul.f32 %v6588, %v6575
    %v6590 = vmul.f32 %v6589, %v6588
    %v6591 = vmul.f32 0.5, %v6590
    %v6592 = vsub.f32 1.5, %v6591
    %v6593 = vmul.f32 %v6588, %v6592
    %vm6594 = vweird.f32 %v6575
    %vm6595 = vweird.f32 %v6588
    %vm6596 = vmor %vm6594, %vm6595
    %v6597 = vsel %vm6596, %v6588, %v6593
    %v6598 = vrsqrt.pop %v6576
    %v6599 = vmul.f32 %v6598, %v6576
    %v6600 = vmul.f32 %v6599, %v6598
    %v6601 = vmul.f32 0.5, %v6600
    %v6602 = vsub.f32 1.5, %v6601
    %v6603 = vmul.f32 %v6598, %v6602
    %vm6604 = vweird.f32 %v6576
    %vm6605 = vweird.f32 %v6598
    %vm6606 = vmor %vm6604, %vm6605
    %v6607 = vsel %vm6606, %v6598, %v6603
    %v6608 = vrsqrt.pop %v6577
    %v6609 = vmul.f32 %v6608, %v6577
    %v6610 = vmul.f32 %v6609, %v6608
    %v6611 = vmul.f32 0.5, %v6610
    %v6612 = vsub.f32 1.5, %v6611
    %v6613 = vmul.f32 %v6608, %v6612
    %vm6614 = vweird.f32 %v6577
    %vm6615 = vweird.f32 %v6608
    %vm6616 = vmor %vm6614, %vm6615
    %v6617 = vsel %vm6616, %v6608, %v6613
    %v6618 = vmul.f32 %v6554, %v6587
    %v6619 = vmul.f32 %v6555, %v6597
    %v6620 = vmul.f32 %v6556, %v6607
    %v6621 = vmul.f32 %v6557, %v6617
    %v6623 = vperm.slane %v6540, 0
    %v6625 = vmul.f32 %v6618, %v6623
    %v6626 = vmul.f32 %v6619, %v6623
    %v6627 = vmul.f32 %v6620, %v6623
    %v6628 = vmul.f32 %v6621, %v6623
    %v6630 = vperm.slane %v6541, 0
    %v6632 = vadd.f32 %v6625, %v6630
    %v6633 = vadd.f32 %v6626, %v6630
    %v6634 = vadd.f32 %v6627, %v6630
    %v6635 = vadd.f32 %v6628, %v6630
    %6636 = vst [vmem:[#allocation22] sm:$0xff] %v6632
    %6637 = vst [vmem:[#allocation22 + $0x8] sm:$0xff] %v6633
    %6638 = vst [vmem:[#allocation22 + $0x10] sm:$0xff] %v6634
    %6639 = vst [vmem:[#allocation22 + $0x18] sm:$0xff] %v6635
    // Predicated region
    $region146: #{tpu_custom_call.1} parent=1 // pred_check
      _
    $region147: #{tpu_custom_call.1} parent=1 // pred_check_branch
      %6641 = sbr.rel (0) target = $region149
    $region148: #{tpu_custom_call.1} parent=1 // pred_region
      %6643 = vsyncadd [#allocation4], 0
      %s6644 = sshll.u32 [#allocation22], 4
      %s6645 = int_to_ptr.vmem [resolvable:$true] %s6644
      %s6646 = sshll.u32 %s24, 4
      %s6647 = int_to_ptr.hbm [resolvable:$true] %s6646
      %6652 = dma.vmem_to_hbm [thread:$0]  %s6645, 512, %s6647, [#allocation4], 128, 128, 8
    $region149: #{tpu_custom_call.1} parent=1 // pred_fallthru
      _
    // Predicated region
    $region150: #{tpu_custom_call.1} parent=1 // pred_check
      _
    $region151: #{tpu_custom_call.1} parent=1 // pred_check_branch
      %6654 = sbr.rel (0) target = $region153
    $region152: #{tpu_custom_call.1} parent=1 // pred_region
      %6656 = dma.done [#allocation4], 512
    $region153: #{tpu_custom_call.1} parent=1 // pred_fallthru
      _
    %6657 = vsyncpa [#allocation3], 1
    %6658 = vsyncpa [#allocation6], 1
    %6659 = vsyncpa [#allocation9], 1
    %6660 = vsyncpa [#allocation12], 1
    %6661 = vsyncpa [#allocation15], 1
    %6662 = vsyncpa [#allocation18], 1
    %6663 = vsyncpa [#allocation21], 1
    %6664 = vsyncpa [#allocation4], 1

</llo_original>
